<compile_context>
chip_gen: v7x
topology: tpu7x:2x2x1
jax: 0.10.0
libtpu: 0.0.40
codegen_flags: <defaults>
</compile_context>

<pallas_src>
import math

import jax
import jax.numpy as jnp
from jax.experimental import pallas as pl
from jax.experimental.pallas import tpu as pltpu


_INV_SQRT2 = 0.7071067811865476


def _erf(z):
    # Abramowitz & Stegun 7.1.26 polynomial, |abs err| <= 1.5e-7 — matches the
    # exact (erf-based) PyTorch nn.GELU() to float32 noise. The reciprocal is
    # routed to the EUP (approx=True) so it does not occupy a VALU slot.
    a1, a2, a3, a4, a5 = (0.254829592, -0.284496736, 1.421413741,
                          -1.453152027, 1.061405429)
    p = 0.3275911
    az = jnp.abs(z)
    t = pl.reciprocal(1.0 + p * az, approx=True)
    poly = ((((a5 * t + a4) * t + a3) * t + a2) * t + a1) * t
    erf_abs = 1.0 - poly * jnp.exp(-az * az)
    return jnp.where(z >= 0.0, erf_abs, -erf_abs)


def _gelu_erf(x):
    # Exact (erf) GELU, i.e. PyTorch nn.GELU() default behaviour.
    return 0.5 * x * (1.0 + _erf(x * _INV_SQRT2))


def _mlp_kernel(x_ref, w1_ref, b1_ref, w2_ref, b2_ref, o_ref, acc_ref):
    """Grid = (M tiles [parallel], hidden chunks [arbitrary, innermost]).

    x_ref  : (block_m, d_in)        — resident across the hidden axis
    w1_ref : (d_in, block_h)        b1_ref : (1, block_h)
    w2_ref : (block_h, d_out)       b2_ref : (1, d_out)
    o_ref  : (block_m, d_out)       — resident across the hidden axis
    acc_ref: (block_m, d_out) f32 scratch accumulator
    """
    h_idx = pl.program_id(1)

    @pl.when(h_idx == 0)
    def _():
        acc_ref[...] = jnp.zeros_like(acc_ref)

    # fc1 chunk: lane-dense MXU matmul, f32 accumulation.
    h = jnp.dot(x_ref[...], w1_ref[...], preferred_element_type=jnp.float32)
    h = h + b1_ref[...].astype(jnp.float32)
    # GELU (exact, erf-based) on VPU/EUP.
    h = _gelu_erf(h)
    # Partial fc2 for this hidden chunk, accumulated in f32.
    acc_ref[...] += jnp.dot(h.astype(w2_ref.dtype), w2_ref[...],
                            preferred_element_type=jnp.float32)

    @pl.when(h_idx == pl.num_programs(1) - 1)
    def _():
        out = acc_ref[...] + b2_ref[...].astype(jnp.float32)
        o_ref[...] = out.astype(o_ref.dtype)


def prepare_mlp_params(fc1_w, fc1_b, fc2_w, fc2_b, compute_dtype=jnp.bfloat16):
    """One-time parameter preprocessing (do NOT call per forward).

    PyTorch nn.Linear weights are (out, in); the kernel wants (in, out) so it can
    do x @ W as a single lane-dense MXU matmul. Weights are pre-cast to the MXU
    operand dtype (bf16 by default); biases stay f32 (added post-accumulation).
    """
    w1 = jnp.transpose(fc1_w).astype(compute_dtype)      # (d_in, hidden)
    w2 = jnp.transpose(fc2_w).astype(compute_dtype)      # (hidden, d_out)
    b1 = fc1_b.reshape(1, -1).astype(jnp.float32)        # (1, hidden)
    b2 = fc2_b.reshape(1, -1).astype(jnp.float32)        # (1, d_out)
    return w1, b1, w2, b2


def mlp_forward(x, w1, b1, w2, b2, *, block_m=256, block_h=512,
                drop=0.0, training=False):
    """Mlp forward: fc2(gelu(fc1(x))), dropout p=0 / eval identity.

    x  : (..., in_features)
    w1 : (in_features, hidden)   b1 : (1, hidden)     (from prepare_mlp_params)
    w2 : (hidden, out_features)  b2 : (1, out_features)
    returns (..., out_features), same dtype as x.
    """
    if drop > 0.0 and training:
        # TODO(synk): training-mode dropout (p > 0) not implemented; eval / p=0 only.
        raise NotImplementedError("training-mode dropout is not implemented")

    orig_dtype = x.dtype
    *lead, d_in = x.shape
    m = math.prod(lead)
    hidden = w1.shape[1]
    d_out = w2.shape[1]

    compute_dtype = w1.dtype
    x2 = x.reshape(m, d_in).astype(compute_dtype)

    # Hidden chunks participate in the fc2 reduction, so they must tile exactly
    # (a ragged hidden chunk would feed garbage into the accumulator).
    block_h = min(block_h, hidden)
    if hidden % block_h != 0:
        block_h = hidden
    grid_h = hidden // block_h

    # Ragged final M block is fine: Pallas masks the stores and rows are
    # independent, so no pad/slice HBM round trips are needed.
    grid_m = pl.cdiv(m, block_m)

    cd_bytes = jnp.dtype(compute_dtype).itemsize
    out_bytes = jnp.dtype(orig_dtype).itemsize

    flops = 2 * m * d_in * hidden + 2 * m * hidden * d_out
    bytes_accessed = int(
        m * d_in * cd_bytes                      # x streamed once
        + grid_m * (w1.size + w2.size) * cd_bytes  # weights re-streamed per M tile
        + (b1.size + b2.size) * 4 * grid_m
        + m * d_out * out_bytes                  # output
    )
    cost = pl.CostEstimate(flops=flops,
                           transcendentals=m * hidden,
                           bytes_accessed=bytes_accessed)

    # VMEM budget (double-buffered pipelined blocks + scratch + live intermediate),
    # with headroom; capped at 64 MiB so it also respects v7x's physical VMEM.
    vmem_est = (
        2 * block_m * d_in * cd_bytes            # x tile
        + 2 * d_in * block_h * cd_bytes          # w1 chunk
        + 2 * block_h * 4                        # b1 chunk
        + 2 * block_h * d_out * cd_bytes         # w2 chunk
        + 2 * d_out * 4                          # b2
        + 2 * block_m * d_out * out_bytes        # out tile
        + block_m * d_out * 4                    # f32 accumulator scratch
        + 2 * block_m * block_h * 4              # live fc1/GELU intermediate
    )
    vmem_limit = min(64 * 1024 * 1024,
                     max(32 * 1024 * 1024, int(vmem_est * 1.5)))

    out = pl.pallas_call(
        _mlp_kernel,
        out_shape=jax.ShapeDtypeStruct((m, d_out), orig_dtype),
        grid_spec=pltpu.PrefetchScalarGridSpec(
            num_scalar_prefetch=0,
            grid=(grid_m, grid_h),
            in_specs=[
                pl.BlockSpec((block_m, d_in), lambda i, h: (i, 0)),
                pl.BlockSpec((d_in, block_h), lambda i, h: (0, h)),
                pl.BlockSpec((1, block_h), lambda i, h: (0, h)),
                pl.BlockSpec((block_h, d_out), lambda i, h: (h, 0)),
                pl.BlockSpec((1, d_out), lambda i, h: (0, 0)),
            ],
            out_specs=pl.BlockSpec((block_m, d_out), lambda i, h: (i, 0)),
            scratch_shapes=[pltpu.VMEM((block_m, d_out), jnp.float32)],
        ),
        compiler_params=pltpu.CompilerParams(
            dimension_semantics=("parallel", "arbitrary"),
            vmem_limit_bytes=vmem_limit),
        cost_estimate=cost,
    )(x2, w1, b1, w2, b2)

    return out.reshape(*lead, d_out)


def _reference_mlp(x, fc1_w, fc1_b, fc2_w, fc2_b):
    """Pure-JAX reference matching PyTorch Mlp (exact GELU, dropout p=0)."""
    h = jnp.dot(x, fc1_w.T, precision=jax.lax.Precision.HIGHEST) + fc1_b
    h = jax.nn.gelu(h, approximate=False)
    return jnp.dot(h, fc2_w.T, precision=jax.lax.Precision.HIGHEST) + fc2_b


if __name__ == "__main__":
    # Mlp(in_features=128, hidden_features=512) applied to (B, L, C) tokens, as in
    # a Swin block. B*L = 384 with block_m=256 gives a ragged final M block
    # (exercising the masked-store path) and block_h=256 gives 2 hidden chunks
    # (exercising the accumulator path).
    B, L, D_IN, HIDDEN, D_OUT = 2, 192, 128, 512, 128

    key = jax.random.PRNGKey(0)
    kx, kw1, kb1, kw2, kb2 = jax.random.split(key, 5)

    x = jax.random.normal(kx, (B, L, D_IN), dtype=jnp.float32)
    # Deterministic init roughly matching PyTorch's kaiming-uniform Linear init.
    bound1 = 1.0 / math.sqrt(D_IN)
    fc1_w = jax.random.uniform(kw1, (HIDDEN, D_IN), minval=-bound1, maxval=bound1,
                               dtype=jnp.float32)
    fc1_b = jax.random.uniform(kb1, (HIDDEN,), minval=-bound1, maxval=bound1,
                               dtype=jnp.float32)
    bound2 = 1.0 / math.sqrt(HIDDEN)
    fc2_w = jax.random.uniform(kw2, (D_OUT, HIDDEN), minval=-bound2, maxval=bound2,
                               dtype=jnp.float32)
    fc2_b = jax.random.uniform(kb2, (D_OUT,), minval=-bound2, maxval=bound2,
                               dtype=jnp.float32)

    ref = jax.block_until_ready(_reference_mlp(x, fc1_w, fc1_b, fc2_w, fc2_b))

    # Default (recommended) path: bf16 MXU operands, f32 accumulation. Parameters
    # are prepared once (transpose + cast) outside the hot path.
    params_bf16 = prepare_mlp_params(fc1_w, fc1_b, fc2_w, fc2_b)
    out = jax.block_until_ready(
        mlp_forward(x, *params_bf16, block_m=256, block_h=256))
    assert out.shape == (B, L, D_OUT), out.shape
    assert bool(jnp.all(jnp.isfinite(out)))
    assert jnp.allclose(out, ref, atol=1e-1, rtol=1e-1), (
        "bf16 path mismatch vs reference, max abs diff = "
        f"{float(jnp.max(jnp.abs(out - ref)))}")

    # f32-operand path (tighter tolerance), different tiling: exact M tiles,
    # single hidden chunk.
    params_f32 = prepare_mlp_params(fc1_w, fc1_b, fc2_w, fc2_b,
                                    compute_dtype=jnp.float32)
    out_f32 = jax.block_until_ready(
        mlp_forward(x, *params_f32, block_m=128, block_h=512))
    assert out_f32.shape == (B, L, D_OUT)
    assert jnp.allclose(out_f32, ref, atol=2e-2, rtol=2e-2), (
        "f32 path mismatch vs reference, max abs diff = "
        f"{float(jnp.max(jnp.abs(out_f32 - ref)))}")

    print("KERNEL_OK")
</pallas_src>

<mosaic_0001>
module attributes {stable_mosaic.version = 11 : i64} {
  func.func @_mlp_kernel(%arg0: i32, %arg1: i32, %arg2: memref<256x128xbf16, #tpu.memory_space<vmem>>, %arg3: memref<128x256xbf16, #tpu.memory_space<vmem>>, %arg4: memref<1x256xf32, #tpu.memory_space<vmem>>, %arg5: memref<256x128xbf16, #tpu.memory_space<vmem>>, %arg6: memref<1x128xf32, #tpu.memory_space<vmem>>, %arg7: memref<256x128xf32, #tpu.memory_space<vmem>>, %arg8: memref<256x128xf32, #tpu.memory_space<vmem>>) attributes {dimension_semantics = [#tpu.dimension_semantics<parallel>, #tpu.dimension_semantics<arbitrary>], iteration_bounds = array<i64: 2, 2>, scalar_prefetch = 0 : i64, scratch_operands = 1 : i64, tpu.core_type = #tpu.core_type<tc>, window_params = [{transform_indices = @transform_0, window_bounds = array<i64: 256, 128>}, {transform_indices = @transform_1, window_bounds = array<i64: 128, 256>}, {transform_indices = @transform_2, window_bounds = array<i64: 1, 256>}, {transform_indices = @transform_3, window_bounds = array<i64: 256, 128>}, {pipeline_mode = #tpu.pipeline_mode<synchronous>, transform_indices = @transform_4, window_bounds = array<i64: 1, 128>}, {transform_indices = @transform_5, window_bounds = array<i64: 256, 128>}]} {
    %c0_i32 = arith.constant 0 : i32
    %0 = arith.cmpi eq, %arg1, %c0_i32 : i32
    %1 = arith.extui %0 : i1 to i32
    %c0_i32_0 = arith.constant 0 : i32
    %2 = arith.cmpi ne, %1, %c0_i32_0 : i32
    scf.if %2 {
      %cst_28 = arith.constant 0.000000e+00 : f32
      %57 = vector.broadcast %cst_28 : f32 to vector<256x128xf32>
      %c0_29 = arith.constant 0 : index
      %c0_30 = arith.constant 0 : index
      %58 = vector.load %arg8[%c0_29, %c0_30] : memref<256x128xf32, #tpu.memory_space<vmem>>, vector<256x128xf32>
      tpu.vector_store %arg8[%c0_29, %c0_30], %57 {strides = array<i32>} : memref<256x128xf32, #tpu.memory_space<vmem>>, vector<256x128xf32>,
    } else {
    }
    %c0 = arith.constant 0 : index
    %c0_1 = arith.constant 0 : index
    %3 = vector.load %arg2[%c0, %c0_1] : memref<256x128xbf16, #tpu.memory_space<vmem>>, vector<256x128xbf16>
    %c0_2 = arith.constant 0 : index
    %c0_3 = arith.constant 0 : index
    %4 = vector.load %arg3[%c0_2, %c0_3] : memref<128x256xbf16, #tpu.memory_space<vmem>>, vector<128x256xbf16>
    %cst = arith.constant dense<0.000000e+00> : vector<256x256xf32>
    %5 = tpu.matmul %3, %4, %cst {dimension_numbers = #tpu.dot_dimension_numbers<[1], [0], [0], [1], [0, 0, 1, 1], [], []>} : vector<256x128xbf16>, vector<128x256xbf16>, vector<256x256xf32> -> vector<256x256xf32>
    %c0_4 = arith.constant 0 : index
    %c0_5 = arith.constant 0 : index
    %6 = vector.load %arg4[%c0_4, %c0_5] : memref<1x256xf32, #tpu.memory_space<vmem>>, vector<1x256xf32>
    %7 = vector.broadcast %6 : vector<1x256xf32> to vector<256x256xf32>
    %8 = arith.addf %5, %7 : vector<256x256xf32>
    %cst_6 = arith.constant 5.000000e-01 : f32
    %9 = vector.broadcast %cst_6 : f32 to vector<256x256xf32>
    %10 = arith.mulf %9, %8 : vector<256x256xf32>
    %cst_7 = arith.constant 0.707106769 : f32
    %11 = vector.broadcast %cst_7 : f32 to vector<256x256xf32>
    %12 = arith.mulf %8, %11 : vector<256x256xf32>
    %13 = math.absf %12 : vector<256x256xf32>
    %cst_8 = arith.constant 0.327591091 : f32
    %14 = vector.broadcast %cst_8 : f32 to vector<256x256xf32>
    %15 = arith.mulf %14, %13 : vector<256x256xf32>
    %cst_9 = arith.constant 1.000000e+00 : f32
    %16 = vector.broadcast %cst_9 : f32 to vector<256x256xf32>
    %17 = arith.addf %16, %15 : vector<256x256xf32>
    %18 = tpu.reciprocal %17 {approx = true} : vector<256x256xf32> -> vector<256x256xf32>
    %cst_10 = arith.constant 1.06140542 : f32
    %19 = vector.broadcast %cst_10 : f32 to vector<256x256xf32>
    %20 = arith.mulf %19, %18 : vector<256x256xf32>
    %cst_11 = arith.constant -1.45315206 : f32
    %21 = vector.broadcast %cst_11 : f32 to vector<256x256xf32>
    %22 = arith.addf %20, %21 : vector<256x256xf32>
    %23 = arith.mulf %22, %18 : vector<256x256xf32>
    %cst_12 = arith.constant 1.42141378 : f32
    %24 = vector.broadcast %cst_12 : f32 to vector<256x256xf32>
    %25 = arith.addf %23, %24 : vector<256x256xf32>
    %26 = arith.mulf %25, %18 : vector<256x256xf32>
    %cst_13 = arith.constant -0.284496725 : f32
    %27 = vector.broadcast %cst_13 : f32 to vector<256x256xf32>
    %28 = arith.addf %26, %27 : vector<256x256xf32>
    %29 = arith.mulf %28, %18 : vector<256x256xf32>
    %cst_14 = arith.constant 0.254829586 : f32
    %30 = vector.broadcast %cst_14 : f32 to vector<256x256xf32>
    %31 = arith.addf %29, %30 : vector<256x256xf32>
    %32 = arith.mulf %31, %18 : vector<256x256xf32>
    %cst_15 = arith.constant 0.000000e+00 : f32
    %33 = vector.broadcast %cst_15 : f32 to vector<256x256xf32>
    %34 = arith.subf %33, %13 : vector<256x256xf32>
    %35 = arith.mulf %34, %13 : vector<256x256xf32>
    %36 = math.exp %35 : vector<256x256xf32>
    %37 = arith.mulf %32, %36 : vector<256x256xf32>
    %cst_16 = arith.constant 1.000000e+00 : f32
    %38 = vector.broadcast %cst_16 : f32 to vector<256x256xf32>
    %39 = arith.subf %38, %37 : vector<256x256xf32>
    %cst_17 = arith.constant 0.000000e+00 : f32
    %40 = vector.broadcast %cst_17 : f32 to vector<256x256xf32>
    %41 = arith.cmpf oge, %12, %40 : vector<256x256xf32>
    %cst_18 = arith.constant 0.000000e+00 : f32
    %42 = vector.broadcast %cst_18 : f32 to vector<256x256xf32>
    %43 = arith.subf %42, %39 : vector<256x256xf32>
    %44 = arith.select %41, %39, %43 : vector<256x256xi1>, vector<256x256xf32>
    %cst_19 = arith.constant 1.000000e+00 : f32
    %45 = vector.broadcast %cst_19 : f32 to vector<256x256xf32>
    %46 = arith.addf %45, %44 : vector<256x256xf32>
    %47 = arith.mulf %10, %46 : vector<256x256xf32>
    %c0_20 = arith.constant 0 : index
    %c0_21 = arith.constant 0 : index
    %48 = vector.load %arg8[%c0_20, %c0_21] : memref<256x128xf32, #tpu.memory_space<vmem>>, vector<256x128xf32>
    %49 = arith.truncf %47 : vector<256x256xf32> to vector<256x256xbf16>
    %c0_22 = arith.constant 0 : index
    %c0_23 = arith.constant 0 : index
    %50 = vector.load %arg5[%c0_22, %c0_23] : memref<256x128xbf16, #tpu.memory_space<vmem>>, vector<256x128xbf16>
    %cst_24 = arith.constant dense<0.000000e+00> : vector<256x128xf32>
    %51 = tpu.matmul %49, %50, %cst_24 {dimension_numbers = #tpu.dot_dimension_numbers<[1], [0], [0], [1], [0, 0, 1, 1], [], []>} : vector<256x256xbf16>, vector<256x128xbf16>, vector<256x128xf32> -> vector<256x128xf32>
    %52 = arith.addf %48, %51 : vector<256x128xf32>
    %c0_25 = arith.constant 0 : index
    %c0_26 = arith.constant 0 : index
    %53 = vector.load %arg8[%c0_25, %c0_26] : memref<256x128xf32, #tpu.memory_space<vmem>>, vector<256x128xf32>
    tpu.vector_store %arg8[%c0_25, %c0_26], %52 {strides = array<i32>} : memref<256x128xf32, #tpu.memory_space<vmem>>, vector<256x128xf32>,
    %c1_i32 = arith.constant 1 : i32
    %54 = arith.cmpi eq, %arg1, %c1_i32 : i32
    %55 = arith.extui %54 : i1 to i32
    %c0_i32_27 = arith.constant 0 : i32
    %56 = arith.cmpi ne, %55, %c0_i32_27 : i32
    scf.if %56 {
      %c0_28 = arith.constant 0 : index
      %c0_29 = arith.constant 0 : index
      %57 = vector.load %arg8[%c0_28, %c0_29] : memref<256x128xf32, #tpu.memory_space<vmem>>, vector<256x128xf32>
      %c0_30 = arith.constant 0 : index
      %c0_31 = arith.constant 0 : index
      %58 = vector.load %arg6[%c0_30, %c0_31] : memref<1x128xf32, #tpu.memory_space<vmem>>, vector<1x128xf32>
      %59 = vector.broadcast %58 : vector<1x128xf32> to vector<256x128xf32>
      %60 = arith.addf %57, %59 : vector<256x128xf32>
      %c0_32 = arith.constant 0 : index
      %c0_33 = arith.constant 0 : index
      %61 = vector.load %arg7[%c0_32, %c0_33] : memref<256x128xf32, #tpu.memory_space<vmem>>, vector<256x128xf32>
      tpu.vector_store %arg7[%c0_32, %c0_33], %60 {strides = array<i32>} : memref<256x128xf32, #tpu.memory_space<vmem>>, vector<256x128xf32>,
    } else {
    }
    return
  }
  func.func @transform_0(%arg0: i32, %arg1: i32) -> (i32, i32) {
    %c0_i32 = arith.constant 0 : i32
    %c0_i32_0 = arith.constant 0 : i32
    return %arg0, %c0_i32 : i32, i32
  }
  func.func @transform_1(%arg0: i32, %arg1: i32) -> (i32, i32) {
    %c0_i32 = arith.constant 0 : i32
    %c0_i32_0 = arith.constant 0 : i32
    return %c0_i32, %arg1 : i32, i32
  }
  func.func @transform_2(%arg0: i32, %arg1: i32) -> (i32, i32) {
    %c0_i32 = arith.constant 0 : i32
    %c0_i32_0 = arith.constant 0 : i32
    return %c0_i32, %arg1 : i32, i32
  }
  func.func @transform_3(%arg0: i32, %arg1: i32) -> (i32, i32) {
    %c0_i32 = arith.constant 0 : i32
    %c0_i32_0 = arith.constant 0 : i32
    return %arg1, %c0_i32 : i32, i32
  }
  func.func @transform_4(%arg0: i32, %arg1: i32) -> (i32, i32) {
    %c0_i32 = arith.constant 0 : i32
    %c0_i32_0 = arith.constant 0 : i32
    %c0_i32_1 = arith.constant 0 : i32
    return %c0_i32, %c0_i32_0 : i32, i32
  }
  func.func @transform_5(%arg0: i32, %arg1: i32) -> (i32, i32) {
    %c0_i32 = arith.constant 0 : i32
    %c0_i32_0 = arith.constant 0 : i32
    return %arg0, %c0_i32 : i32, i32
  }
}

</mosaic_0001>

<llo_original>
// kernel: tpu_custom_call.1
$region0: #{tpu_custom_call.1}
  #allocation0 [shape = 'u32[]', space=smem, size = 0x4, offset = 0x4, fixed_abs, tag = 'smem constant byte address 0x4 - core index']
  #allocation1 [shape = 'u32[144,128]{1,0:T(1,128)}', space=vmem, size = 0x12000, scoped, tag = 'internal scratch']
  #allocation2 [shape = 'f32[256,128]{1,0:T(8,128)}', space=vmem, size = 0x20000, scoped, tag = 'scratch operand']
  %s0 = inlined_call_operand.hbm [shape: bf16[384,128], index: 0, kind: input, shape index: {}]
  %s1 = inlined_call_operand.hbm [shape: bf16[128,512], index: 1, kind: input, shape index: {}]
  %s2 = inlined_call_operand.vmem [shape: f32[1,512], index: 2, kind: input, shape index: {}]
  %s3 = inlined_call_operand.hbm [shape: bf16[512,128], index: 3, kind: input, shape index: {}]
  %s4 = inlined_call_operand.vmem [shape: f32[1,128], index: 4, kind: input, shape index: {}]
  %s5 = inlined_call_operand.hbm [shape: f32[384,128], index: 5, kind: output, shape index: {}]
  %s6 = sld [smem:[#allocation0]]
  $region73: #{tpu_custom_call.1} parent=0
    _
  %s8 = ssub.s32 1, %s6
  %s9 = scalar_select 0, %s8, %s6
  $region1: #{tpu_custom_call.1} parent=0
    #allocation3 [shape = 'u8[131072]{0}', space=vmem, size = 0x20000, scoped, tag = 'input window, operand 0']
    #allocation4 [shape = 's32[2]{0}', space=sflag, size = 0x8, scoped, tag = 'scoped memory for tpu_custom_call.1']
    #allocation5 [shape = 's32[2]{0}', space=sflag, size = 0x8, scoped, tag = 'scoped memory for tpu_custom_call.1']
    #allocation6 [shape = 'u8[131072]{0}', space=vmem, size = 0x20000, scoped, tag = 'input window, operand 1']
    #allocation7 [shape = 's32[2]{0}', space=sflag, size = 0x8, scoped, tag = 'scoped memory for tpu_custom_call.1']
    #allocation8 [shape = 'u8[131072]{0}', space=vmem, size = 0x20000, scoped, tag = 'input window, operand 3']
    #allocation9 [shape = 'u8[262144]{0}', space=vmem, size = 0x40000, scoped, tag = 'output window, operand 0']
    %10 = vsyncpa [#allocation4], 0
    %s11 = scalar_lea.sflag [#allocation4], 1
    %12 = vsyncpa %s11, 0
    %13 = vsyncpa [#allocation7], 0
    %s14 = scalar_lea.sflag [#allocation7], 1
    %15 = vsyncpa %s14, 0
    %16 = vsyncpa [#allocation5], 0
    %s17 = scalar_lea.sflag [#allocation5], 1
    %18 = vsyncpa %s17, 0
    loop: start=0, step=1, limit=6
    $region2: #{tpu_custom_call.1} parent=1 // loop_pre_header
      _
    $region3: #{tpu_custom_call.1} parent=1 // loop_header
      %s20 = sphi 0, %s24
      %p21 = scmp.ge.s32.totalorder %s20, 6
      %s27 = sphi 0, %s39
      %s28 = sphi 0, %s35
      %s29 = sphi 0, %s27
      %s30 = sphi 0, %s28
      %s31 = sphi 0, %s29
      %s32 = sphi 0, %s30
      %s42 = sphi 0, %s44
      %s45 = sphi 0, %s42
      %s46 = sphi 0, %s45
      %s62 = sphi 0, %s46
      %s68 = sphi 0, %s70
      %s71 = sphi 0, %s68
      %s72 = sphi 0, %s71
      %s88 = sphi 0, %s72
      %s94 = sphi 0, %s96
      %s97 = sphi 0, %s94
      %s98 = sphi 0, %s97
      %s114 = sphi 0, %s98
      %s120 = sphi 0, %s122
      %s123 = sphi 0, %s120
      %s124 = sphi 0, %s123
      %s140 = sphi 0, %s124
      %s144 = sphi 0, %s144
      %s146 = sphi 0, %s144
      %s147 = sphi 0, %s146
      %s161 = sphi 0, %s147
      %s167 = sphi 0, %s169
      %s170 = sphi 0, %s167
      %s171 = sphi 0, %s170
      %s187 = sphi 0, %s171
    $region4: #{tpu_custom_call.1} parent=1 // loop_header_branch
      %23 = sbr.rel (%p21) target = $region8
    $region5: #{tpu_custom_call.1} parent=1 // loop_body
      %s25 = ssub.s32 %s20, 1
      %s26 = ssub.s32 %s20, 2
      %s33 = sadd.s32 1, %s28
      %p34 = scmp.ge.s32.totalorder %s33, 2
      %s35 = scalar_select %p34, 0, %s33
      %s36 = sadd.s32 1, %s27
      %s37 = scalar_select %p34, %s36, %s27
      %p38 = scmp.ge.s32.totalorder %s37, 2
      %s39 = scalar_select %p38, 0, %s37
      %s40 = ssub.s32 %s27, %s39
      %p41 = scmp.eq.s32.totalorder %s40, 0
      %s43 = sadd.s32 %s42, 1
      %s44 = scalar_select %p41, %s42, %s43
      %p47 = pneg %p41
      %p48 = scmp.eq.s32.totalorder %s20, 3
      %p49 = por %p47, %p48
      %p50 = scmp.ne.s32.totalorder %s42, %s45
      %p51 = scmp.eq.s32.totalorder %s20, 0
      %p52 = por %p50, %p51
      %p53 = scmp.ne.s32.totalorder %s42, %s45
      %p54 = scmp.eq.s32.totalorder %s25, 3
      %p55 = por %p53, %p54
      %p56 = scmp.ne.s32.totalorder %s45, %s46
      %p57 = scmp.eq.s32.totalorder %s25, 0
      %p58 = por %p56, %p57
      %p59 = scmp.ne.s32.totalorder %s45, %s46
      %p60 = scmp.eq.s32.totalorder %s26, 3
      %p61 = por %p59, %p60
      %p63 = scmp.ne.s32.totalorder %s46, %s62
      %p64 = scmp.eq.s32.totalorder %s26, 0
      %p65 = por %p63, %p64
      %s66 = ssub.s32 %s28, %s35
      %p67 = scmp.eq.s32.totalorder %s66, 0
      %s69 = sadd.s32 %s68, 1
      %s70 = scalar_select %p67, %s68, %s69
      %p73 = pneg %p67
      %p74 = scmp.eq.s32.totalorder %s20, 3
      %p75 = por %p73, %p74
      %p76 = scmp.ne.s32.totalorder %s68, %s71
      %p77 = scmp.eq.s32.totalorder %s20, 0
      %p78 = por %p76, %p77
      %p79 = scmp.ne.s32.totalorder %s68, %s71
      %p80 = scmp.eq.s32.totalorder %s25, 3
      %p81 = por %p79, %p80
      %p82 = scmp.ne.s32.totalorder %s71, %s72
      %p83 = scmp.eq.s32.totalorder %s25, 0
      %p84 = por %p82, %p83
      %p85 = scmp.ne.s32.totalorder %s71, %s72
      %p86 = scmp.eq.s32.totalorder %s26, 3
      %p87 = por %p85, %p86
      %p89 = scmp.ne.s32.totalorder %s72, %s88
      %p90 = scmp.eq.s32.totalorder %s26, 0
      %p91 = por %p89, %p90
      %s92 = ssub.s32 %s28, %s35
      %p93 = scmp.eq.s32.totalorder %s92, 0
      %s95 = sadd.s32 %s94, 1
      %s96 = scalar_select %p93, %s94, %s95
      %p99 = pneg %p93
      %p100 = scmp.eq.s32.totalorder %s20, 3
      %p101 = por %p99, %p100
      %p102 = scmp.ne.s32.totalorder %s94, %s97
      %p103 = scmp.eq.s32.totalorder %s20, 0
      %p104 = por %p102, %p103
      %p105 = scmp.ne.s32.totalorder %s94, %s97
      %p106 = scmp.eq.s32.totalorder %s25, 3
      %p107 = por %p105, %p106
      %p108 = scmp.ne.s32.totalorder %s97, %s98
      %p109 = scmp.eq.s32.totalorder %s25, 0
      %p110 = por %p108, %p109
      %p111 = scmp.ne.s32.totalorder %s97, %s98
      %p112 = scmp.eq.s32.totalorder %s26, 3
      %p113 = por %p111, %p112
      %p115 = scmp.ne.s32.totalorder %s98, %s114
      %p116 = scmp.eq.s32.totalorder %s26, 0
      %p117 = por %p115, %p116
      %s118 = ssub.s32 %s28, %s35
      %p119 = scmp.eq.s32.totalorder %s118, 0
      %s121 = sadd.s32 %s120, 1
      %s122 = scalar_select %p119, %s120, %s121
      %p125 = pneg %p119
      %p126 = scmp.eq.s32.totalorder %s20, 3
      %p127 = por %p125, %p126
      %p128 = scmp.ne.s32.totalorder %s120, %s123
      %p129 = scmp.eq.s32.totalorder %s20, 0
      %p130 = por %p128, %p129
      %p131 = scmp.ne.s32.totalorder %s120, %s123
      %p132 = scmp.eq.s32.totalorder %s25, 3
      %p133 = por %p131, %p132
      %p134 = scmp.ne.s32.totalorder %s123, %s124
      %p135 = scmp.eq.s32.totalorder %s25, 0
      %p136 = por %p134, %p135
      %p137 = scmp.ne.s32.totalorder %s123, %s124
      %p138 = scmp.eq.s32.totalorder %s26, 3
      %p139 = por %p137, %p138
      %p141 = scmp.ne.s32.totalorder %s124, %s140
      %p142 = scmp.eq.s32.totalorder %s26, 0
      %p143 = por %p141, %p142
      %s145 = sadd.s32 %s144, 1
      %p148 = scmp.eq.s32.totalorder %s20, 3
      %p149 = scmp.ne.s32.totalorder %s144, %s146
      %p150 = scmp.eq.s32.totalorder %s20, 0
      %p151 = por %p149, %p150
      %p152 = scmp.ne.s32.totalorder %s144, %s146
      %p153 = scmp.eq.s32.totalorder %s25, 3
      %p154 = por %p152, %p153
      %p155 = scmp.ne.s32.totalorder %s146, %s147
      %p156 = scmp.eq.s32.totalorder %s25, 0
      %p157 = por %p155, %p156
      %p158 = scmp.ne.s32.totalorder %s146, %s147
      %p159 = scmp.eq.s32.totalorder %s26, 3
      %p160 = por %p158, %p159
      %p162 = scmp.ne.s32.totalorder %s147, %s161
      %p163 = scmp.eq.s32.totalorder %s26, 0
      %p164 = por %p162, %p163
      %s165 = ssub.s32 %s27, %s39
      %p166 = scmp.eq.s32.totalorder %s165, 0
      %s168 = sadd.s32 %s167, 1
      %s169 = scalar_select %p166, %s167, %s168
      %p172 = pneg %p166
      %p173 = scmp.eq.s32.totalorder %s20, 3
      %p174 = por %p172, %p173
      %p175 = scmp.ne.s32.totalorder %s167, %s170
      %p176 = scmp.eq.s32.totalorder %s20, 0
      %p177 = por %p175, %p176
      %p178 = scmp.ne.s32.totalorder %s167, %s170
      %p179 = scmp.eq.s32.totalorder %s25, 3
      %p180 = por %p178, %p179
      %p181 = scmp.ne.s32.totalorder %s170, %s171
      %p182 = scmp.eq.s32.totalorder %s25, 0
      %p183 = por %p181, %p182
      %p184 = scmp.ne.s32.totalorder %s170, %s171
      %p185 = scmp.eq.s32.totalorder %s26, 3
      %p186 = por %p184, %p185
      %p188 = scmp.ne.s32.totalorder %s171, %s187
      %p189 = scmp.eq.s32.totalorder %s26, 0
      %p190 = por %p188, %p189
      %p191 = scmp.le.s32.totalorder 1, %s20
      %p192 = scmp.lt.s32.totalorder %s20, 5
      %p193 = pnand %p191, %p192
      %p194 = pneg %p193
      // Predicated region
      $region9: #{tpu_custom_call.1} parent=5 // pred_check
        _
      $region10: #{tpu_custom_call.1} parent=5 // pred_check_branch
        %196 = sbr.rel (%p193) target = $region12
      $region11: #{tpu_custom_call.1} parent=5 // pred_region
        %s197 = ssub.s32 %s20, 1
        // Predicated region
        $region13: #{tpu_custom_call.1} parent=11 // pred_check
          %p198 = pneg %p157
        $region14: #{tpu_custom_call.1} parent=11 // pred_check_branch
          %200 = sbr.rel (%p198) target = $region16
        $region15: #{tpu_custom_call.1} parent=11 // pred_region
          _
        $region16: #{tpu_custom_call.1} parent=11 // pred_fallthru
          _
      $region12: #{tpu_custom_call.1} parent=5 // pred_fallthru
        _
      %p201 = scmp.lt.s32.totalorder %s20, 4
      // Predicated region
      $region17: #{tpu_custom_call.1} parent=5 // pred_check
        %p202 = pneg %p201
      $region18: #{tpu_custom_call.1} parent=5 // pred_check_branch
        %204 = sbr.rel (%p202) target = $region20
      $region19: #{tpu_custom_call.1} parent=5 // pred_region
        // Predicated region
        $region21: #{tpu_custom_call.1} parent=19 // pred_check
          %p205 = pneg %p52
        $region22: #{tpu_custom_call.1} parent=19 // pred_check_branch
          %207 = sbr.rel (%p205) target = $region24
        $region23: #{tpu_custom_call.1} parent=19 // pred_region
          %s208 = sand.u32 %s42, 1
          %s209 = scalar_lea.sflag [#allocation4], %s208
          %s210 = sand.u32 %s42, 1
          %s211 = smul.addr %s210, 128
          %s212 = scalar_lea.vmem [#allocation3], %s211
          %s213 = smul.u32 32, %s27
          %s214 = ssub.s32 48, %s213
          %p215 = scmp.lt.s32.totalorder %s214, 32
          %s216 = scalar_select %p215, %s214, 32
          %s217 = smul.u32 64, %s216
          %s219 = ssub.s32 2048, %s217
          %220 = vsyncadd %s209, %s219
          %p221 = scmp.ne.s32.totalorder 0, %s217
          %s222 = smul.addr %s213, 64
          %s223 = scalar_lea.hbm %s0, %s222
          %s224 = smul.u32 4, %s216
          %s225 = sshll.u32 %s212, 4
          %s226 = int_to_ptr.vmem [resolvable:$true] %s225
          %s227 = sshll.u32 %s224, 4
          %231 = dma.hbm_to_vmem [thread:$0]  (%p221), %s223, %s227, %s226, %s209, 64, 64, 4
        $region24: #{tpu_custom_call.1} parent=19 // pred_fallthru
          _
        // Predicated region
        $region25: #{tpu_custom_call.1} parent=19 // pred_check
          %p232 = pneg %p78
        $region26: #{tpu_custom_call.1} parent=19 // pred_check_branch
          %234 = sbr.rel (%p232) target = $region28
        $region27: #{tpu_custom_call.1} parent=19 // pred_region
          %s235 = sand.u32 %s20, 1
          %s236 = scalar_lea.sflag [#allocation7], %s235
          %s237 = sand.u32 %s68, 1
          %s238 = smul.addr %s237, 128
          %s239 = scalar_lea.vmem [#allocation6], %s238
          %s240 = smul.u32 2, %s28
          %s242 = ssub.s32 2048, 2048
          %243 = vsyncadd %s236, %s242
          %s244 = smul.addr %s240, 64
          %s245 = scalar_lea.hbm %s1, %s244
          %s246 = sshll.u32 %s239, 4
          %s247 = int_to_ptr.vmem [resolvable:$true] %s246
          %252 = dma.hbm_to_vmem [thread:$0]  %s245, 2048, %s247, %s236, 256, 128, 8
        $region28: #{tpu_custom_call.1} parent=19 // pred_fallthru
          _
        // Predicated region
        $region29: #{tpu_custom_call.1} parent=19 // pred_check
          %p253 = pneg %p104
        $region30: #{tpu_custom_call.1} parent=19 // pred_check_branch
          %255 = sbr.rel (%p253) target = $region32
        $region31: #{tpu_custom_call.1} parent=19 // pred_region
          %s256 = smul.u32 2, %s28
          %p257 = scmp.lt.s32.totalorder %s256, 3
          %s258 = scalar_select %p257, %s256, 3
          %s259 = scalar_lea.vmem %s2, %s258
          %s260 = smul.u32 2, %s28
        $region32: #{tpu_custom_call.1} parent=19 // pred_fallthru
          _
        // Predicated region
        $region33: #{tpu_custom_call.1} parent=19 // pred_check
          %p261 = pneg %p130
        $region34: #{tpu_custom_call.1} parent=19 // pred_check_branch
          %263 = sbr.rel (%p261) target = $region36
        $region35: #{tpu_custom_call.1} parent=19 // pred_region
          %s264 = sand.u32 %s20, 1
          %s265 = scalar_lea.sflag [#allocation7], %s264
          %s266 = sand.u32 %s120, 1
          %s267 = smul.addr %s266, 128
          %s268 = scalar_lea.vmem [#allocation8], %s267
          %s269 = smul.u32 32, %s28
          %s271 = ssub.s32 2048, 2048
          %272 = vsyncadd %s265, %s271
          %s273 = smul.addr %s269, 64
          %s274 = scalar_lea.hbm %s3, %s273
          %s275 = sshll.u32 %s268, 4
          %s276 = int_to_ptr.vmem [resolvable:$true] %s275
          %281 = dma.hbm_to_vmem [thread:$0]  %s274, 2048, %s276, %s265, 64, 64, 4
        $region36: #{tpu_custom_call.1} parent=19 // pred_fallthru
          _
      $region20: #{tpu_custom_call.1} parent=5 // pred_fallthru
        _
      %p282 = scmp.le.s32.totalorder 1, %s20
      %p283 = scmp.lt.s32.totalorder %s20, 5
      %p284 = pnand %p282, %p283
      %p285 = pneg %p284
      // Predicated region
      $region37: #{tpu_custom_call.1} parent=5 // pred_check
        _
      $region38: #{tpu_custom_call.1} parent=5 // pred_check_branch
        %287 = sbr.rel (%p284) target = $region40
      $region39: #{tpu_custom_call.1} parent=5 // pred_region
        %s288 = ssub.s32 %s20, 1
        %s289 = sand.u32 %s45, 1
        %s290 = scalar_lea.sflag [#allocation4], %s289
        %s291 = sand.u32 %s45, 1
        %s292 = smul.addr %s291, 128
        %s293 = scalar_lea.vmem [#allocation3], %s292
        // Predicated region
        $region41: #{tpu_custom_call.1} parent=39 // pred_check
          %p294 = pneg %p58
        $region42: #{tpu_custom_call.1} parent=39 // pred_check_branch
          %296 = sbr.rel (%p294) target = $region44
        $region43: #{tpu_custom_call.1} parent=39 // pred_region
          %297 = dma.done %s290, 2048
        $region44: #{tpu_custom_call.1} parent=39 // pred_fallthru
          _
        %s298 = sand.u32 %s25, 1
        %s299 = scalar_lea.sflag [#allocation7], %s298
        %s300 = sand.u32 %s71, 1
        %s301 = smul.addr %s300, 128
        %s302 = scalar_lea.vmem [#allocation6], %s301
        // Predicated region
        $region45: #{tpu_custom_call.1} parent=39 // pred_check
          %p303 = pneg %p84
        $region46: #{tpu_custom_call.1} parent=39 // pred_check_branch
          %305 = sbr.rel (%p303) target = $region48
        $region47: #{tpu_custom_call.1} parent=39 // pred_region
          %306 = dma.done %s299, 2048
        $region48: #{tpu_custom_call.1} parent=39 // pred_fallthru
          _
        %s307 = sand.u32 %s25, 1
        %s308 = scalar_lea.sflag [#allocation7], %s307
        %s309 = sand.u32 %s123, 1
        %s310 = smul.addr %s309, 128
        %s311 = scalar_lea.vmem [#allocation8], %s310
        // Predicated region
        $region49: #{tpu_custom_call.1} parent=39 // pred_check
          %p312 = pneg %p136
        $region50: #{tpu_custom_call.1} parent=39 // pred_check_branch
          %314 = sbr.rel (%p312) target = $region52
        $region51: #{tpu_custom_call.1} parent=39 // pred_region
          %315 = dma.done %s308, 2048
        $region52: #{tpu_custom_call.1} parent=39 // pred_fallthru
          _
        %s316 = sand.u32 %s45, 1
        %s317 = scalar_lea.sflag [#allocation4], %s316
        %s318 = sand.u32 %s45, 1
        %s319 = smul.addr %s318, 128
        %s320 = scalar_lea.vmem [#allocation3], %s319
        %p321 = pneg %p58
        %p322 = pneg %p55
        %s323 = sand.u32 %s25, 1
        %s324 = scalar_lea.sflag [#allocation7], %s323
        %s325 = sand.u32 %s71, 1
        %s326 = smul.addr %s325, 128
        %s327 = scalar_lea.vmem [#allocation6], %s326
        %p328 = pneg %p84
        %p329 = pneg %p81
        %s330 = smul.u32 2, %s30
        %p331 = scmp.lt.s32.totalorder %s330, 3
        %s332 = scalar_select %p331, %s330, 3
        %s333 = scalar_lea.vmem %s2, %s332
        %p334 = pneg %p110
        %p335 = pneg %p107
        %s336 = sand.u32 %s25, 1
        %s337 = scalar_lea.sflag [#allocation7], %s336
        %s338 = sand.u32 %s123, 1
        %s339 = smul.addr %s338, 128
        %s340 = scalar_lea.vmem [#allocation8], %s339
        %p341 = pneg %p136
        %p342 = pneg %p133
        %p343 = pneg %p157
        %p344 = pneg %p154
        %p345 = pneg %p183
        %p346 = pneg %p180
        %s347 = sand.u32 %s170, 1
        %s348 = scalar_lea.sflag [#allocation5], %s347
        %s349 = sand.u32 %s170, 1
        %s350 = smul.addr %s349, 256
        %s351 = scalar_lea.vmem [#allocation9], %s350
        %s352 = smul.u32 32, %s29
        %s353 = ssub.s32 48, %s352
        %p354 = scmp.lt.s32.totalorder %s353, 32
        %s355 = scalar_select %p354, %s353, 32
        %s356 = smul.u32 64, %s355
        %s357 = smul.u32 2, %s30
        %s358 = smul.u32 2, %s30
        %p359 = scmp.lt.s32.totalorder %s358, 3
        %s360 = scalar_select %p359, %s358, 3
        %s361 = scalar_lea.vmem %s2, %s360
        %s362 = smul.u32 2, %s30
        %s363 = smul.u32 32, %s30
        %s364 = smul.u32 32, %s29
        %s365 = ssub.s32 48, %s364
        %p366 = scmp.lt.s32.totalorder %s365, 32
        %s367 = scalar_select %p366, %s365, 32
        %s368 = smul.u32 128, %s367
        %p370 = scmp.eq.s32.totalorder %s30, 0
        // Predicated region
        $region53: #{tpu_custom_call.1} parent=39 // pred_check
          %p371 = pneg %p370
        $region54: #{tpu_custom_call.1} parent=39 // pred_check_branch
          %373 = sbr.rel (%p371) target = $region56
        $region55: #{tpu_custom_call.1} parent=39 // pred_region
          %374 = vst [vmem:[#allocation2] sm:$0xff] 0.0
          %375 = vst [vmem:[#allocation2 + $0x8] sm:$0xff] 0.0
          %376 = vst [vmem:[#allocation2 + $0x10] sm:$0xff] 0.0
          %377 = vst [vmem:[#allocation2 + $0x18] sm:$0xff] 0.0
          %378 = vst [vmem:[#allocation2 + $0x20] sm:$0xff] 0.0
          %379 = vst [vmem:[#allocation2 + $0x28] sm:$0xff] 0.0
          %380 = vst [vmem:[#allocation2 + $0x30] sm:$0xff] 0.0
          %381 = vst [vmem:[#allocation2 + $0x38] sm:$0xff] 0.0
          %382 = vst [vmem:[#allocation2 + $0x40] sm:$0xff] 0.0
          %383 = vst [vmem:[#allocation2 + $0x48] sm:$0xff] 0.0
          %384 = vst [vmem:[#allocation2 + $0x50] sm:$0xff] 0.0
          %385 = vst [vmem:[#allocation2 + $0x58] sm:$0xff] 0.0
          %386 = vst [vmem:[#allocation2 + $0x60] sm:$0xff] 0.0
          %387 = vst [vmem:[#allocation2 + $0x68] sm:$0xff] 0.0
          %388 = vst [vmem:[#allocation2 + $0x70] sm:$0xff] 0.0
          %389 = vst [vmem:[#allocation2 + $0x78] sm:$0xff] 0.0
          %390 = vst [vmem:[#allocation2 + $0x80] sm:$0xff] 0.0
          %391 = vst [vmem:[#allocation2 + $0x88] sm:$0xff] 0.0
          %392 = vst [vmem:[#allocation2 + $0x90] sm:$0xff] 0.0
          %393 = vst [vmem:[#allocation2 + $0x98] sm:$0xff] 0.0
          %394 = vst [vmem:[#allocation2 + $0xa0] sm:$0xff] 0.0
          %395 = vst [vmem:[#allocation2 + $0xa8] sm:$0xff] 0.0
          %396 = vst [vmem:[#allocation2 + $0xb0] sm:$0xff] 0.0
          %397 = vst [vmem:[#allocation2 + $0xb8] sm:$0xff] 0.0
          %398 = vst [vmem:[#allocation2 + $0xc0] sm:$0xff] 0.0
          %399 = vst [vmem:[#allocation2 + $0xc8] sm:$0xff] 0.0
          %400 = vst [vmem:[#allocation2 + $0xd0] sm:$0xff] 0.0
          %401 = vst [vmem:[#allocation2 + $0xd8] sm:$0xff] 0.0
          %402 = vst [vmem:[#allocation2 + $0xe0] sm:$0xff] 0.0
          %403 = vst [vmem:[#allocation2 + $0xe8] sm:$0xff] 0.0
          %404 = vst [vmem:[#allocation2 + $0xf0] sm:$0xff] 0.0
          %405 = vst [vmem:[#allocation2 + $0xf8] sm:$0xff] 0.0
        $region56: #{tpu_custom_call.1} parent=39 // pred_fallthru
          _
        %v406 = vld [vmem:[%s293] sm:$0xf]
        %v407 = vld [vmem:[%s293 + $0x4] sm:$0xf]
        %v408 = vld [vmem:[%s293 + $0x8] sm:$0xf]
        %v409 = vld [vmem:[%s293 + $0xc] sm:$0xf]
        %v410 = vld [vmem:[%s293 + $0x10] sm:$0xf]
        %v411 = vld [vmem:[%s293 + $0x14] sm:$0xf]
        %v412 = vld [vmem:[%s293 + $0x18] sm:$0xf]
        %v413 = vld [vmem:[%s293 + $0x1c] sm:$0xf]
        %v414 = vld [vmem:[%s293 + $0x20] sm:$0xf]
        %v415 = vld [vmem:[%s293 + $0x24] sm:$0xf]
        %v416 = vld [vmem:[%s293 + $0x28] sm:$0xf]
        %v417 = vld [vmem:[%s293 + $0x2c] sm:$0xf]
        %v418 = vld [vmem:[%s293 + $0x30] sm:$0xf]
        %v419 = vld [vmem:[%s293 + $0x34] sm:$0xf]
        %v420 = vld [vmem:[%s293 + $0x38] sm:$0xf]
        %v421 = vld [vmem:[%s293 + $0x3c] sm:$0xf]
        %v422 = vld [vmem:[%s293 + $0x40] sm:$0xf]
        %v423 = vld [vmem:[%s293 + $0x44] sm:$0xf]
        %v424 = vld [vmem:[%s293 + $0x48] sm:$0xf]
        %v425 = vld [vmem:[%s293 + $0x4c] sm:$0xf]
        %v426 = vld [vmem:[%s293 + $0x50] sm:$0xf]
        %v427 = vld [vmem:[%s293 + $0x54] sm:$0xf]
        %v428 = vld [vmem:[%s293 + $0x58] sm:$0xf]
        %v429 = vld [vmem:[%s293 + $0x5c] sm:$0xf]
        %v430 = vld [vmem:[%s293 + $0x60] sm:$0xf]
        %v431 = vld [vmem:[%s293 + $0x64] sm:$0xf]
        %v432 = vld [vmem:[%s293 + $0x68] sm:$0xf]
        %v433 = vld [vmem:[%s293 + $0x6c] sm:$0xf]
        %v434 = vld [vmem:[%s293 + $0x70] sm:$0xf]
        %v435 = vld [vmem:[%s293 + $0x74] sm:$0xf]
        %v436 = vld [vmem:[%s293 + $0x78] sm:$0xf]
        %v437 = vld [vmem:[%s293 + $0x7c] sm:$0xf]
        %v438 = vld [vmem:[%s302] sm:$0xff]
        %v439 = vld [vmem:[%s302 + $0x8] sm:$0xff]
        %v440 = vld [vmem:[%s302 + $0x10] sm:$0xff]
        %v441 = vld [vmem:[%s302 + $0x18] sm:$0xff]
        %v442 = vld [vmem:[%s302 + $0x20] sm:$0xff]
        %v443 = vld [vmem:[%s302 + $0x28] sm:$0xff]
        %v444 = vld [vmem:[%s302 + $0x30] sm:$0xff]
        %v445 = vld [vmem:[%s302 + $0x38] sm:$0xff]
        %v446 = vld [vmem:[%s302 + $0x40] sm:$0xff]
        %v447 = vld [vmem:[%s302 + $0x48] sm:$0xff]
        %v448 = vld [vmem:[%s302 + $0x50] sm:$0xff]
        %v449 = vld [vmem:[%s302 + $0x58] sm:$0xff]
        %v450 = vld [vmem:[%s302 + $0x60] sm:$0xff]
        %v451 = vld [vmem:[%s302 + $0x68] sm:$0xff]
        %v452 = vld [vmem:[%s302 + $0x70] sm:$0xff]
        %v453 = vld [vmem:[%s302 + $0x78] sm:$0xff]
        %v454 = vld [vmem:[%s361] sm:$0x3]
        %v456 = vlaneseq
        %v457 = vshrl.u32 %v456, 7
        %v458 = vsub.s32 0, %v457
        %v459 = vrot.slane %v454, %v458
        %v460 = vlaneseq
        %v461 = vshrl.u32 %v460, 7
        %v462 = vsub.s32 1, %v461
        %v463 = vrot.slane %v454, %v462
        %v498 = vunpack.c.l.b16 %v406
        %v499 = vunpack.c.l.b16 %v407
        %v500 = vunpack.c.l.b16 %v408
        %v501 = vunpack.c.l.b16 %v409
        %v502 = vunpack.c.l.b16 %v410
        %v503 = vunpack.c.l.b16 %v411
        %v504 = vunpack.c.l.b16 %v412
        %v505 = vunpack.c.l.b16 %v413
        %v506 = vunpack.c.l.b16 %v414
        %v507 = vunpack.c.l.b16 %v415
        %v508 = vunpack.c.l.b16 %v416
        %v509 = vunpack.c.l.b16 %v417
        %v510 = vunpack.c.l.b16 %v418
        %v511 = vunpack.c.l.b16 %v419
        %v512 = vunpack.c.l.b16 %v420
        %v513 = vunpack.c.l.b16 %v421
        %v514 = vunpack.c.l.b16 %v422
        %v515 = vunpack.c.l.b16 %v423
        %v516 = vunpack.c.l.b16 %v424
        %v517 = vunpack.c.l.b16 %v425
        %v518 = vunpack.c.l.b16 %v426
        %v519 = vunpack.c.l.b16 %v427
        %v520 = vunpack.c.l.b16 %v428
        %v521 = vunpack.c.l.b16 %v429
        %v522 = vunpack.c.l.b16 %v430
        %v523 = vunpack.c.l.b16 %v431
        %v524 = vunpack.c.l.b16 %v432
        %v525 = vunpack.c.l.b16 %v433
        %v526 = vunpack.c.l.b16 %v434
        %v527 = vunpack.c.l.b16 %v435
        %v528 = vunpack.c.l.b16 %v436
        %v529 = vunpack.c.l.b16 %v437
        %v530 = vpack.c.b16 %v499, %v498
        %v531 = vpack.c.b16 %v501, %v500
        %v532 = vpack.c.b16 %v503, %v502
        %v533 = vpack.c.b16 %v505, %v504
        %v534 = vpack.c.b16 %v507, %v506
        %v535 = vpack.c.b16 %v509, %v508
        %v536 = vpack.c.b16 %v511, %v510
        %v537 = vpack.c.b16 %v513, %v512
        %v538 = vpack.c.b16 %v515, %v514
        %v539 = vpack.c.b16 %v517, %v516
        %v540 = vpack.c.b16 %v519, %v518
        %v541 = vpack.c.b16 %v521, %v520
        %v542 = vpack.c.b16 %v523, %v522
        %v543 = vpack.c.b16 %v525, %v524
        %v544 = vpack.c.b16 %v527, %v526
        %v545 = vpack.c.b16 %v529, %v528
        %v578 = vunpack.c.l.b16 %v438
        %v579 = vunpack.c.h.b16 %v438
        %v580 = vunpack.c.l.b16 %v439
        %v581 = vunpack.c.h.b16 %v439
        %v582 = vunpack.c.l.b16 %v440
        %v583 = vunpack.c.h.b16 %v440
        %v584 = vunpack.c.l.b16 %v441
        %v585 = vunpack.c.h.b16 %v441
        %v586 = vunpack.c.l.b16 %v442
        %v587 = vunpack.c.h.b16 %v442
        %v588 = vunpack.c.l.b16 %v443
        %v589 = vunpack.c.h.b16 %v443
        %v590 = vunpack.c.l.b16 %v444
        %v591 = vunpack.c.h.b16 %v444
        %v592 = vunpack.c.l.b16 %v445
        %v593 = vunpack.c.h.b16 %v445
        %v594 = vunpack.c.l.b16 %v446
        %v595 = vunpack.c.h.b16 %v446
        %v596 = vunpack.c.l.b16 %v447
        %v597 = vunpack.c.h.b16 %v447
        %v598 = vunpack.c.l.b16 %v448
        %v599 = vunpack.c.h.b16 %v448
        %v600 = vunpack.c.l.b16 %v449
        %v601 = vunpack.c.h.b16 %v449
        %v602 = vunpack.c.l.b16 %v450
        %v603 = vunpack.c.h.b16 %v450
        %v604 = vunpack.c.l.b16 %v451
        %v605 = vunpack.c.h.b16 %v451
        %v606 = vunpack.c.l.b16 %v452
        %v607 = vunpack.c.h.b16 %v452
        %v608 = vunpack.c.l.b16 %v453
        %v609 = vunpack.c.h.b16 %v453
        %v610 = vpack.c.b16 %v580, %v578
        %v611 = vpack.c.b16 %v581, %v579
        %v612 = vpack.c.b16 %v584, %v582
        %v613 = vpack.c.b16 %v585, %v583
        %v614 = vpack.c.b16 %v588, %v586
        %v615 = vpack.c.b16 %v589, %v587
        %v616 = vpack.c.b16 %v592, %v590
        %v617 = vpack.c.b16 %v593, %v591
        %v618 = vpack.c.b16 %v596, %v594
        %v619 = vpack.c.b16 %v597, %v595
        %v620 = vpack.c.b16 %v600, %v598
        %v621 = vpack.c.b16 %v601, %v599
        %v622 = vpack.c.b16 %v604, %v602
        %v623 = vpack.c.b16 %v605, %v603
        %v624 = vpack.c.b16 %v608, %v606
        %v625 = vpack.c.b16 %v609, %v607
        %642 = vmatprep.subr.bf16.mxu0 %v611
        %643 = vmatpush1.bf16.msra.mxu0 %v610
        %644 = vmatprep.subr.bf16.mxu0 %v613
        %645 = vmatpush1.bf16.msra.mxu0 %v612
        %646 = vmatprep.subr.bf16.mxu0 %v615
        %647 = vmatpush1.bf16.msra.mxu0 %v614
        %648 = vmatprep.subr.bf16.mxu0 %v617
        %649 = vmatpush1.bf16.msra.mxu0 %v616
        %650 = vmatprep.subr.bf16.mxu0 %v619
        %651 = vmatpush1.bf16.msra.mxu0 %v618
        %652 = vmatprep.subr.bf16.mxu0 %v621
        %653 = vmatpush1.bf16.msra.mxu0 %v620
        %654 = vmatprep.subr.bf16.mxu0 %v623
        %655 = vmatpush1.bf16.msra.mxu0 %v622
        %656 = vmatprep.subr.bf16.mxu0 %v625
        %657 = vmatpush1.bf16.msra.mxu0 %v624
        %658 = vmatprep.subr.bf16.mxu0 0
        %659 = vmatpush1.bf16.msra.mxu0 0
        %660 = vmatprep.subr.bf16.mxu0 0
        %661 = vmatpush1.bf16.msra.mxu0 0
        %662 = vmatprep.subr.bf16.mxu0 0
        %663 = vmatpush1.bf16.msra.mxu0 0
        %664 = vmatprep.subr.bf16.mxu0 0
        %665 = vmatpush1.bf16.msra.mxu0 0
        %666 = vmatprep.subr.bf16.mxu0 0
        %667 = vmatpush1.bf16.msra.mxu0 0
        %668 = vmatprep.subr.bf16.mxu0 0
        %669 = vmatpush1.bf16.msra.mxu0 0
        %670 = vmatprep.subr.bf16.mxu0 0
        %671 = vmatpush1.bf16.msra.mxu0 0
        %672 = vmatprep.subr.bf16.mxu0 0
        %673 = vmatpush1.bf16.msra.mxu0 0
        %674 = vmatprep.mubr.bf16.mxu0 0
        %675 = vmatmul.mubr.bf16.gmra.mrb[0].mxu0 %v530
        %v676 = vpop.f32.mrb[0].mxu0
        %v677 = vadd.f32 %v459, %v676
        %v678 = vpop.f32.mrb[0].mxu0
        %v679 = vadd.f32 %v463, %v678
        %v680 = vpop.f32.mrb[0].mxu0
        %v681 = vadd.f32 %v459, %v680
        %v682 = vpop.f32.mrb[0].mxu0
        %v683 = vadd.f32 %v463, %v682
        %684 = vmatprep.mubr.bf16.mxu0 0
        %685 = vmatmul.mubr.bf16.gmra.mrb[0].mxu0 %v531
        %v686 = vpop.f32.mrb[0].mxu0
        %v687 = vadd.f32 %v459, %v686
        %v688 = vpop.f32.mrb[0].mxu0
        %v689 = vadd.f32 %v463, %v688
        %v690 = vpop.f32.mrb[0].mxu0
        %v691 = vadd.f32 %v459, %v690
        %v692 = vpop.f32.mrb[0].mxu0
        %v693 = vadd.f32 %v463, %v692
        %694 = vmatprep.mubr.bf16.mxu0 0
        %695 = vmatmul.mubr.bf16.gmra.mrb[0].mxu0 %v532
        %v696 = vpop.f32.mrb[0].mxu0
        %v697 = vadd.f32 %v459, %v696
        %v698 = vpop.f32.mrb[0].mxu0
        %v699 = vadd.f32 %v463, %v698
        %v700 = vpop.f32.mrb[0].mxu0
        %v701 = vadd.f32 %v459, %v700
        %v702 = vpop.f32.mrb[0].mxu0
        %v703 = vadd.f32 %v463, %v702
        %704 = vmatprep.mubr.bf16.mxu0 0
        %705 = vmatmul.mubr.bf16.gmra.mrb[0].mxu0 %v533
        %v706 = vpop.f32.mrb[0].mxu0
        %v707 = vadd.f32 %v459, %v706
        %v708 = vpop.f32.mrb[0].mxu0
        %v709 = vadd.f32 %v463, %v708
        %v710 = vpop.f32.mrb[0].mxu0
        %v711 = vadd.f32 %v459, %v710
        %v712 = vpop.f32.mrb[0].mxu0
        %v713 = vadd.f32 %v463, %v712
        %714 = vmatprep.mubr.bf16.mxu0 0
        %715 = vmatmul.mubr.bf16.gmra.mrb[0].mxu0 %v534
        %v716 = vpop.f32.mrb[0].mxu0
        %v717 = vadd.f32 %v459, %v716
        %v718 = vpop.f32.mrb[0].mxu0
        %v719 = vadd.f32 %v463, %v718
        %v720 = vpop.f32.mrb[0].mxu0
        %v721 = vadd.f32 %v459, %v720
        %v722 = vpop.f32.mrb[0].mxu0
        %v723 = vadd.f32 %v463, %v722
        %724 = vmatprep.mubr.bf16.mxu0 0
        %725 = vmatmul.mubr.bf16.gmra.mrb[0].mxu0 %v535
        %v726 = vpop.f32.mrb[0].mxu0
        %v727 = vadd.f32 %v459, %v726
        %v728 = vpop.f32.mrb[0].mxu0
        %v729 = vadd.f32 %v463, %v728
        %v730 = vpop.f32.mrb[0].mxu0
        %v731 = vadd.f32 %v459, %v730
        %v732 = vpop.f32.mrb[0].mxu0
        %v733 = vadd.f32 %v463, %v732
        %734 = vmatprep.mubr.bf16.mxu0 0
        %735 = vmatmul.mubr.bf16.gmra.mrb[0].mxu0 %v536
        %v736 = vpop.f32.mrb[0].mxu0
        %v737 = vadd.f32 %v459, %v736
        %v738 = vpop.f32.mrb[0].mxu0
        %v739 = vadd.f32 %v463, %v738
        %v740 = vpop.f32.mrb[0].mxu0
        %v741 = vadd.f32 %v459, %v740
        %v742 = vpop.f32.mrb[0].mxu0
        %v743 = vadd.f32 %v463, %v742
        %744 = vmatprep.mubr.bf16.mxu0 0
        %745 = vmatmul.mubr.bf16.gmra.mrb[0].mxu0 %v537
        %v746 = vpop.f32.mrb[0].mxu0
        %v747 = vadd.f32 %v459, %v746
        %v748 = vpop.f32.mrb[0].mxu0
        %v749 = vadd.f32 %v463, %v748
        %v750 = vpop.f32.mrb[0].mxu0
        %v751 = vadd.f32 %v459, %v750
        %v752 = vpop.f32.mrb[0].mxu0
        %v753 = vadd.f32 %v463, %v752
        %754 = vmatprep.mubr.bf16.mxu0 0
        %755 = vmatmul.mubr.bf16.gmra.mrb[0].mxu0 %v538
        %v756 = vpop.f32.mrb[0].mxu0
        %v757 = vadd.f32 %v459, %v756
        %v758 = vpop.f32.mrb[0].mxu0
        %v759 = vadd.f32 %v463, %v758
        %v760 = vpop.f32.mrb[0].mxu0
        %v761 = vadd.f32 %v459, %v760
        %v762 = vpop.f32.mrb[0].mxu0
        %v763 = vadd.f32 %v463, %v762
        %764 = vmatprep.mubr.bf16.mxu0 0
        %765 = vmatmul.mubr.bf16.gmra.mrb[0].mxu0 %v539
        %v766 = vpop.f32.mrb[0].mxu0
        %v767 = vadd.f32 %v459, %v766
        %v768 = vpop.f32.mrb[0].mxu0
        %v769 = vadd.f32 %v463, %v768
        %v770 = vpop.f32.mrb[0].mxu0
        %v771 = vadd.f32 %v459, %v770
        %v772 = vpop.f32.mrb[0].mxu0
        %v773 = vadd.f32 %v463, %v772
        %774 = vmatprep.mubr.bf16.mxu0 0
        %775 = vmatmul.mubr.bf16.gmra.mrb[0].mxu0 %v540
        %v776 = vpop.f32.mrb[0].mxu0
        %v777 = vadd.f32 %v459, %v776
        %v778 = vpop.f32.mrb[0].mxu0
        %v779 = vadd.f32 %v463, %v778
        %v780 = vpop.f32.mrb[0].mxu0
        %v781 = vadd.f32 %v459, %v780
        %v782 = vpop.f32.mrb[0].mxu0
        %v783 = vadd.f32 %v463, %v782
        %784 = vmatprep.mubr.bf16.mxu0 0
        %785 = vmatmul.mubr.bf16.gmra.mrb[0].mxu0 %v541
        %v786 = vpop.f32.mrb[0].mxu0
        %v787 = vadd.f32 %v459, %v786
        %v788 = vpop.f32.mrb[0].mxu0
        %v789 = vadd.f32 %v463, %v788
        %v790 = vpop.f32.mrb[0].mxu0
        %v791 = vadd.f32 %v459, %v790
        %v792 = vpop.f32.mrb[0].mxu0
        %v793 = vadd.f32 %v463, %v792
        %794 = vmatprep.mubr.bf16.mxu0 0
        %795 = vmatmul.mubr.bf16.gmra.mrb[0].mxu0 %v542
        %v796 = vpop.f32.mrb[0].mxu0
        %v797 = vadd.f32 %v459, %v796
        %v798 = vpop.f32.mrb[0].mxu0
        %v799 = vadd.f32 %v463, %v798
        %v800 = vpop.f32.mrb[0].mxu0
        %v801 = vadd.f32 %v459, %v800
        %v802 = vpop.f32.mrb[0].mxu0
        %v803 = vadd.f32 %v463, %v802
        %804 = vmatprep.mubr.bf16.mxu0 0
        %805 = vmatmul.mubr.bf16.gmra.mrb[0].mxu0 %v543
        %v806 = vpop.f32.mrb[0].mxu0
        %v807 = vadd.f32 %v459, %v806
        %v808 = vpop.f32.mrb[0].mxu0
        %v809 = vadd.f32 %v463, %v808
        %v810 = vpop.f32.mrb[0].mxu0
        %v811 = vadd.f32 %v459, %v810
        %v812 = vpop.f32.mrb[0].mxu0
        %v813 = vadd.f32 %v463, %v812
        %814 = vmatprep.mubr.bf16.mxu0 0
        %815 = vmatmul.mubr.bf16.gmra.mrb[0].mxu0 %v544
        %v816 = vpop.f32.mrb[0].mxu0
        %v817 = vadd.f32 %v459, %v816
        %v818 = vpop.f32.mrb[0].mxu0
        %v819 = vadd.f32 %v463, %v818
        %v820 = vpop.f32.mrb[0].mxu0
        %v821 = vadd.f32 %v459, %v820
        %v822 = vpop.f32.mrb[0].mxu0
        %v823 = vadd.f32 %v463, %v822
        %824 = vmatprep.mubr.bf16.mxu0 0
        %825 = vmatmul.mubr.bf16.gmra.mrb[0].mxu0 %v545
        %v826 = vpop.f32.mrb[0].mxu0
        %v827 = vadd.f32 %v459, %v826
        %v828 = vpop.f32.mrb[0].mxu0
        %v829 = vadd.f32 %v463, %v828
        %v830 = vpop.f32.mrb[0].mxu0
        %v831 = vadd.f32 %v459, %v830
        %v832 = vpop.f32.mrb[0].mxu0
        %v833 = vadd.f32 %v463, %v832
        %834 = vdwg.mxu0
        %v835 = vmul.f32 %v677, 0.5
        %v836 = vmul.f32 %v679, 0.5
        %v837 = vmul.f32 %v681, 0.5
        %v838 = vmul.f32 %v683, 0.5
        %v839 = vmul.f32 %v687, 0.5
        %v840 = vmul.f32 %v689, 0.5
        %v841 = vmul.f32 %v691, 0.5
        %v842 = vmul.f32 %v693, 0.5
        %v843 = vmul.f32 %v697, 0.5
        %v844 = vmul.f32 %v699, 0.5
        %v845 = vmul.f32 %v701, 0.5
        %v846 = vmul.f32 %v703, 0.5
        %v847 = vmul.f32 %v707, 0.5
        %v848 = vmul.f32 %v709, 0.5
        %v849 = vmul.f32 %v711, 0.5
        %v850 = vmul.f32 %v713, 0.5
        %v851 = vmul.f32 %v717, 0.5
        %v852 = vmul.f32 %v719, 0.5
        %v853 = vmul.f32 %v721, 0.5
        %v854 = vmul.f32 %v723, 0.5
        %v855 = vmul.f32 %v727, 0.5
        %v856 = vmul.f32 %v729, 0.5
        %v857 = vmul.f32 %v731, 0.5
        %v858 = vmul.f32 %v733, 0.5
        %v859 = vmul.f32 %v737, 0.5
        %v860 = vmul.f32 %v739, 0.5
        %v861 = vmul.f32 %v741, 0.5
        %v862 = vmul.f32 %v743, 0.5
        %v863 = vmul.f32 %v747, 0.5
        %v864 = vmul.f32 %v749, 0.5
        %v865 = vmul.f32 %v751, 0.5
        %v866 = vmul.f32 %v753, 0.5
        %v867 = vmul.f32 %v757, 0.5
        %v868 = vmul.f32 %v759, 0.5
        %v869 = vmul.f32 %v761, 0.5
        %v870 = vmul.f32 %v763, 0.5
        %v871 = vmul.f32 %v767, 0.5
        %v872 = vmul.f32 %v769, 0.5
        %v873 = vmul.f32 %v771, 0.5
        %v874 = vmul.f32 %v773, 0.5
        %v875 = vmul.f32 %v777, 0.5
        %v876 = vmul.f32 %v779, 0.5
        %v877 = vmul.f32 %v781, 0.5
        %v878 = vmul.f32 %v783, 0.5
        %v879 = vmul.f32 %v787, 0.5
        %v880 = vmul.f32 %v789, 0.5
        %v881 = vmul.f32 %v791, 0.5
        %v882 = vmul.f32 %v793, 0.5
        %v883 = vmul.f32 %v797, 0.5
        %v884 = vmul.f32 %v799, 0.5
        %v885 = vmul.f32 %v801, 0.5
        %v886 = vmul.f32 %v803, 0.5
        %v887 = vmul.f32 %v807, 0.5
        %v888 = vmul.f32 %v809, 0.5
        %v889 = vmul.f32 %v811, 0.5
        %v890 = vmul.f32 %v813, 0.5
        %v891 = vmul.f32 %v817, 0.5
        %v892 = vmul.f32 %v819, 0.5
        %v893 = vmul.f32 %v821, 0.5
        %v894 = vmul.f32 %v823, 0.5
        %v895 = vmul.f32 %v827, 0.5
        %v896 = vmul.f32 %v829, 0.5
        %v897 = vmul.f32 %v831, 0.5
        %v898 = vmul.f32 %v833, 0.5
        %v899 = vmul.f32 %v677, 0.70710677
        %v900 = vmul.f32 %v679, 0.70710677
        %v901 = vmul.f32 %v681, 0.70710677
        %v902 = vmul.f32 %v683, 0.70710677
        %v903 = vmul.f32 %v687, 0.70710677
        %v904 = vmul.f32 %v689, 0.70710677
        %v905 = vmul.f32 %v691, 0.70710677
        %v906 = vmul.f32 %v693, 0.70710677
        %v907 = vmul.f32 %v697, 0.70710677
        %v908 = vmul.f32 %v699, 0.70710677
        %v909 = vmul.f32 %v701, 0.70710677
        %v910 = vmul.f32 %v703, 0.70710677
        %v911 = vmul.f32 %v707, 0.70710677
        %v912 = vmul.f32 %v709, 0.70710677
        %v913 = vmul.f32 %v711, 0.70710677
        %v914 = vmul.f32 %v713, 0.70710677
        %v915 = vmul.f32 %v717, 0.70710677
        %v916 = vmul.f32 %v719, 0.70710677
        %v917 = vmul.f32 %v721, 0.70710677
        %v918 = vmul.f32 %v723, 0.70710677
        %v919 = vmul.f32 %v727, 0.70710677
        %v920 = vmul.f32 %v729, 0.70710677
        %v921 = vmul.f32 %v731, 0.70710677
        %v922 = vmul.f32 %v733, 0.70710677
        %v923 = vmul.f32 %v737, 0.70710677
        %v924 = vmul.f32 %v739, 0.70710677
        %v925 = vmul.f32 %v741, 0.70710677
        %v926 = vmul.f32 %v743, 0.70710677
        %v927 = vmul.f32 %v747, 0.70710677
        %v928 = vmul.f32 %v749, 0.70710677
        %v929 = vmul.f32 %v751, 0.70710677
        %v930 = vmul.f32 %v753, 0.70710677
        %v931 = vmul.f32 %v757, 0.70710677
        %v932 = vmul.f32 %v759, 0.70710677
        %v933 = vmul.f32 %v761, 0.70710677
        %v934 = vmul.f32 %v763, 0.70710677
        %v935 = vmul.f32 %v767, 0.70710677
        %v936 = vmul.f32 %v769, 0.70710677
        %v937 = vmul.f32 %v771, 0.70710677
        %v938 = vmul.f32 %v773, 0.70710677
        %v939 = vmul.f32 %v777, 0.70710677
        %v940 = vmul.f32 %v779, 0.70710677
        %v941 = vmul.f32 %v781, 0.70710677
        %v942 = vmul.f32 %v783, 0.70710677
        %v943 = vmul.f32 %v787, 0.70710677
        %v944 = vmul.f32 %v789, 0.70710677
        %v945 = vmul.f32 %v791, 0.70710677
        %v946 = vmul.f32 %v793, 0.70710677
        %v947 = vmul.f32 %v797, 0.70710677
        %v948 = vmul.f32 %v799, 0.70710677
        %v949 = vmul.f32 %v801, 0.70710677
        %v950 = vmul.f32 %v803, 0.70710677
        %v951 = vmul.f32 %v807, 0.70710677
        %v952 = vmul.f32 %v809, 0.70710677
        %v953 = vmul.f32 %v811, 0.70710677
        %v954 = vmul.f32 %v813, 0.70710677
        %v955 = vmul.f32 %v817, 0.70710677
        %v956 = vmul.f32 %v819, 0.70710677
        %v957 = vmul.f32 %v821, 0.70710677
        %v958 = vmul.f32 %v823, 0.70710677
        %v959 = vmul.f32 %v827, 0.70710677
        %v960 = vmul.f32 %v829, 0.70710677
        %v961 = vmul.f32 %v831, 0.70710677
        %v962 = vmul.f32 %v833, 0.70710677
        %v963 = vand.u32 2147483647, %v899
        %v964 = vand.u32 2147483647, %v900
        %v965 = vand.u32 2147483647, %v901
        %v966 = vand.u32 2147483647, %v902
        %v967 = vand.u32 2147483647, %v903
        %v968 = vand.u32 2147483647, %v904
        %v969 = vand.u32 2147483647, %v905
        %v970 = vand.u32 2147483647, %v906
        %v971 = vand.u32 2147483647, %v907
        %v972 = vand.u32 2147483647, %v908
        %v973 = vand.u32 2147483647, %v909
        %v974 = vand.u32 2147483647, %v910
        %v975 = vand.u32 2147483647, %v911
        %v976 = vand.u32 2147483647, %v912
        %v977 = vand.u32 2147483647, %v913
        %v978 = vand.u32 2147483647, %v914
        %v979 = vand.u32 2147483647, %v915
        %v980 = vand.u32 2147483647, %v916
        %v981 = vand.u32 2147483647, %v917
        %v982 = vand.u32 2147483647, %v918
        %v983 = vand.u32 2147483647, %v919
        %v984 = vand.u32 2147483647, %v920
        %v985 = vand.u32 2147483647, %v921
        %v986 = vand.u32 2147483647, %v922
        %v987 = vand.u32 2147483647, %v923
        %v988 = vand.u32 2147483647, %v924
        %v989 = vand.u32 2147483647, %v925
        %v990 = vand.u32 2147483647, %v926
        %v991 = vand.u32 2147483647, %v927
        %v992 = vand.u32 2147483647, %v928
        %v993 = vand.u32 2147483647, %v929
        %v994 = vand.u32 2147483647, %v930
        %v995 = vand.u32 2147483647, %v931
        %v996 = vand.u32 2147483647, %v932
        %v997 = vand.u32 2147483647, %v933
        %v998 = vand.u32 2147483647, %v934
        %v999 = vand.u32 2147483647, %v935
        %v1000 = vand.u32 2147483647, %v936
        %v1001 = vand.u32 2147483647, %v937
        %v1002 = vand.u32 2147483647, %v938
        %v1003 = vand.u32 2147483647, %v939
        %v1004 = vand.u32 2147483647, %v940
        %v1005 = vand.u32 2147483647, %v941
        %v1006 = vand.u32 2147483647, %v942
        %v1007 = vand.u32 2147483647, %v943
        %v1008 = vand.u32 2147483647, %v944
        %v1009 = vand.u32 2147483647, %v945
        %v1010 = vand.u32 2147483647, %v946
        %v1011 = vand.u32 2147483647, %v947
        %v1012 = vand.u32 2147483647, %v948
        %v1013 = vand.u32 2147483647, %v949
        %v1014 = vand.u32 2147483647, %v950
        %v1015 = vand.u32 2147483647, %v951
        %v1016 = vand.u32 2147483647, %v952
        %v1017 = vand.u32 2147483647, %v953
        %v1018 = vand.u32 2147483647, %v954
        %v1019 = vand.u32 2147483647, %v955
        %v1020 = vand.u32 2147483647, %v956
        %v1021 = vand.u32 2147483647, %v957
        %v1022 = vand.u32 2147483647, %v958
        %v1023 = vand.u32 2147483647, %v959
        %v1024 = vand.u32 2147483647, %v960
        %v1025 = vand.u32 2147483647, %v961
        %v1026 = vand.u32 2147483647, %v962
        %v1027 = vmul.f32 %v963, 0.3275911
        %v1028 = vmul.f32 %v964, 0.3275911
        %v1029 = vmul.f32 %v965, 0.3275911
        %v1030 = vmul.f32 %v966, 0.3275911
        %v1031 = vmul.f32 %v967, 0.3275911
        %v1032 = vmul.f32 %v968, 0.3275911
        %v1033 = vmul.f32 %v969, 0.3275911
        %v1034 = vmul.f32 %v970, 0.3275911
        %v1035 = vmul.f32 %v971, 0.3275911
        %v1036 = vmul.f32 %v972, 0.3275911
        %v1037 = vmul.f32 %v973, 0.3275911
        %v1038 = vmul.f32 %v974, 0.3275911
        %v1039 = vmul.f32 %v975, 0.3275911
        %v1040 = vmul.f32 %v976, 0.3275911
        %v1041 = vmul.f32 %v977, 0.3275911
        %v1042 = vmul.f32 %v978, 0.3275911
        %v1043 = vmul.f32 %v979, 0.3275911
        %v1044 = vmul.f32 %v980, 0.3275911
        %v1045 = vmul.f32 %v981, 0.3275911
        %v1046 = vmul.f32 %v982, 0.3275911
        %v1047 = vmul.f32 %v983, 0.3275911
        %v1048 = vmul.f32 %v984, 0.3275911
        %v1049 = vmul.f32 %v985, 0.3275911
        %v1050 = vmul.f32 %v986, 0.3275911
        %v1051 = vmul.f32 %v987, 0.3275911
        %v1052 = vmul.f32 %v988, 0.3275911
        %v1053 = vmul.f32 %v989, 0.3275911
        %v1054 = vmul.f32 %v990, 0.3275911
        %v1055 = vmul.f32 %v991, 0.3275911
        %v1056 = vmul.f32 %v992, 0.3275911
        %v1057 = vmul.f32 %v993, 0.3275911
        %v1058 = vmul.f32 %v994, 0.3275911
        %v1059 = vmul.f32 %v995, 0.3275911
        %v1060 = vmul.f32 %v996, 0.3275911
        %v1061 = vmul.f32 %v997, 0.3275911
        %v1062 = vmul.f32 %v998, 0.3275911
        %v1063 = vmul.f32 %v999, 0.3275911
        %v1064 = vmul.f32 %v1000, 0.3275911
        %v1065 = vmul.f32 %v1001, 0.3275911
        %v1066 = vmul.f32 %v1002, 0.3275911
        %v1067 = vmul.f32 %v1003, 0.3275911
        %v1068 = vmul.f32 %v1004, 0.3275911
        %v1069 = vmul.f32 %v1005, 0.3275911
        %v1070 = vmul.f32 %v1006, 0.3275911
        %v1071 = vmul.f32 %v1007, 0.3275911
        %v1072 = vmul.f32 %v1008, 0.3275911
        %v1073 = vmul.f32 %v1009, 0.3275911
        %v1074 = vmul.f32 %v1010, 0.3275911
        %v1075 = vmul.f32 %v1011, 0.3275911
        %v1076 = vmul.f32 %v1012, 0.3275911
        %v1077 = vmul.f32 %v1013, 0.3275911
        %v1078 = vmul.f32 %v1014, 0.3275911
        %v1079 = vmul.f32 %v1015, 0.3275911
        %v1080 = vmul.f32 %v1016, 0.3275911
        %v1081 = vmul.f32 %v1017, 0.3275911
        %v1082 = vmul.f32 %v1018, 0.3275911
        %v1083 = vmul.f32 %v1019, 0.3275911
        %v1084 = vmul.f32 %v1020, 0.3275911
        %v1085 = vmul.f32 %v1021, 0.3275911
        %v1086 = vmul.f32 %v1022, 0.3275911
        %v1087 = vmul.f32 %v1023, 0.3275911
        %v1088 = vmul.f32 %v1024, 0.3275911
        %v1089 = vmul.f32 %v1025, 0.3275911
        %v1090 = vmul.f32 %v1026, 0.3275911
        %v1091 = vadd.f32 %v1027, 1.0
        %v1092 = vadd.f32 %v1028, 1.0
        %v1093 = vadd.f32 %v1029, 1.0
        %v1094 = vadd.f32 %v1030, 1.0
        %v1095 = vadd.f32 %v1031, 1.0
        %v1096 = vadd.f32 %v1032, 1.0
        %v1097 = vadd.f32 %v1033, 1.0
        %v1098 = vadd.f32 %v1034, 1.0
        %v1099 = vadd.f32 %v1035, 1.0
        %v1100 = vadd.f32 %v1036, 1.0
        %v1101 = vadd.f32 %v1037, 1.0
        %v1102 = vadd.f32 %v1038, 1.0
        %v1103 = vadd.f32 %v1039, 1.0
        %v1104 = vadd.f32 %v1040, 1.0
        %v1105 = vadd.f32 %v1041, 1.0
        %v1106 = vadd.f32 %v1042, 1.0
        %v1107 = vadd.f32 %v1043, 1.0
        %v1108 = vadd.f32 %v1044, 1.0
        %v1109 = vadd.f32 %v1045, 1.0
        %v1110 = vadd.f32 %v1046, 1.0
        %v1111 = vadd.f32 %v1047, 1.0
        %v1112 = vadd.f32 %v1048, 1.0
        %v1113 = vadd.f32 %v1049, 1.0
        %v1114 = vadd.f32 %v1050, 1.0
        %v1115 = vadd.f32 %v1051, 1.0
        %v1116 = vadd.f32 %v1052, 1.0
        %v1117 = vadd.f32 %v1053, 1.0
        %v1118 = vadd.f32 %v1054, 1.0
        %v1119 = vadd.f32 %v1055, 1.0
        %v1120 = vadd.f32 %v1056, 1.0
        %v1121 = vadd.f32 %v1057, 1.0
        %v1122 = vadd.f32 %v1058, 1.0
        %v1123 = vadd.f32 %v1059, 1.0
        %v1124 = vadd.f32 %v1060, 1.0
        %v1125 = vadd.f32 %v1061, 1.0
        %v1126 = vadd.f32 %v1062, 1.0
        %v1127 = vadd.f32 %v1063, 1.0
        %v1128 = vadd.f32 %v1064, 1.0
        %v1129 = vadd.f32 %v1065, 1.0
        %v1130 = vadd.f32 %v1066, 1.0
        %v1131 = vadd.f32 %v1067, 1.0
        %v1132 = vadd.f32 %v1068, 1.0
        %v1133 = vadd.f32 %v1069, 1.0
        %v1134 = vadd.f32 %v1070, 1.0
        %v1135 = vadd.f32 %v1071, 1.0
        %v1136 = vadd.f32 %v1072, 1.0
        %v1137 = vadd.f32 %v1073, 1.0
        %v1138 = vadd.f32 %v1074, 1.0
        %v1139 = vadd.f32 %v1075, 1.0
        %v1140 = vadd.f32 %v1076, 1.0
        %v1141 = vadd.f32 %v1077, 1.0
        %v1142 = vadd.f32 %v1078, 1.0
        %v1143 = vadd.f32 %v1079, 1.0
        %v1144 = vadd.f32 %v1080, 1.0
        %v1145 = vadd.f32 %v1081, 1.0
        %v1146 = vadd.f32 %v1082, 1.0
        %v1147 = vadd.f32 %v1083, 1.0
        %v1148 = vadd.f32 %v1084, 1.0
        %v1149 = vadd.f32 %v1085, 1.0
        %v1150 = vadd.f32 %v1086, 1.0
        %v1151 = vadd.f32 %v1087, 1.0
        %v1152 = vadd.f32 %v1088, 1.0
        %v1153 = vadd.f32 %v1089, 1.0
        %v1154 = vadd.f32 %v1090, 1.0
        %v1155 = vrcp.pop %v1091
        %v1156 = vrcp.pop %v1092
        %v1157 = vrcp.pop %v1093
        %v1158 = vrcp.pop %v1094
        %v1159 = vrcp.pop %v1095
        %v1160 = vrcp.pop %v1096
        %v1161 = vrcp.pop %v1097
        %v1162 = vrcp.pop %v1098
        %v1163 = vrcp.pop %v1099
        %v1164 = vrcp.pop %v1100
        %v1165 = vrcp.pop %v1101
        %v1166 = vrcp.pop %v1102
        %v1167 = vrcp.pop %v1103
        %v1168 = vrcp.pop %v1104
        %v1169 = vrcp.pop %v1105
        %v1170 = vrcp.pop %v1106
        %v1171 = vrcp.pop %v1107
        %v1172 = vrcp.pop %v1108
        %v1173 = vrcp.pop %v1109
        %v1174 = vrcp.pop %v1110
        %v1175 = vrcp.pop %v1111
        %v1176 = vrcp.pop %v1112
        %v1177 = vrcp.pop %v1113
        %v1178 = vrcp.pop %v1114
        %v1179 = vrcp.pop %v1115
        %v1180 = vrcp.pop %v1116
        %v1181 = vrcp.pop %v1117
        %v1182 = vrcp.pop %v1118
        %v1183 = vrcp.pop %v1119
        %v1184 = vrcp.pop %v1120
        %v1185 = vrcp.pop %v1121
        %v1186 = vrcp.pop %v1122
        %v1187 = vrcp.pop %v1123
        %v1188 = vrcp.pop %v1124
        %v1189 = vrcp.pop %v1125
        %v1190 = vrcp.pop %v1126
        %v1191 = vrcp.pop %v1127
        %v1192 = vrcp.pop %v1128
        %v1193 = vrcp.pop %v1129
        %v1194 = vrcp.pop %v1130
        %v1195 = vrcp.pop %v1131
        %v1196 = vrcp.pop %v1132
        %v1197 = vrcp.pop %v1133
        %v1198 = vrcp.pop %v1134
        %v1199 = vrcp.pop %v1135
        %v1200 = vrcp.pop %v1136
        %v1201 = vrcp.pop %v1137
        %v1202 = vrcp.pop %v1138
        %v1203 = vrcp.pop %v1139
        %v1204 = vrcp.pop %v1140
        %v1205 = vrcp.pop %v1141
        %v1206 = vrcp.pop %v1142
        %v1207 = vrcp.pop %v1143
        %v1208 = vrcp.pop %v1144
        %v1209 = vrcp.pop %v1145
        %v1210 = vrcp.pop %v1146
        %v1211 = vrcp.pop %v1147
        %v1212 = vrcp.pop %v1148
        %v1213 = vrcp.pop %v1149
        %v1214 = vrcp.pop %v1150
        %v1215 = vrcp.pop %v1151
        %v1216 = vrcp.pop %v1152
        %v1217 = vrcp.pop %v1153
        %v1218 = vrcp.pop %v1154
        %v1219 = vmul.f32 %v1155, 1.0614054
        %v1220 = vmul.f32 %v1156, 1.0614054
        %v1221 = vmul.f32 %v1157, 1.0614054
        %v1222 = vmul.f32 %v1158, 1.0614054
        %v1223 = vmul.f32 %v1159, 1.0614054
        %v1224 = vmul.f32 %v1160, 1.0614054
        %v1225 = vmul.f32 %v1161, 1.0614054
        %v1226 = vmul.f32 %v1162, 1.0614054
        %v1227 = vmul.f32 %v1163, 1.0614054
        %v1228 = vmul.f32 %v1164, 1.0614054
        %v1229 = vmul.f32 %v1165, 1.0614054
        %v1230 = vmul.f32 %v1166, 1.0614054
        %v1231 = vmul.f32 %v1167, 1.0614054
        %v1232 = vmul.f32 %v1168, 1.0614054
        %v1233 = vmul.f32 %v1169, 1.0614054
        %v1234 = vmul.f32 %v1170, 1.0614054
        %v1235 = vmul.f32 %v1171, 1.0614054
        %v1236 = vmul.f32 %v1172, 1.0614054
        %v1237 = vmul.f32 %v1173, 1.0614054
        %v1238 = vmul.f32 %v1174, 1.0614054
        %v1239 = vmul.f32 %v1175, 1.0614054
        %v1240 = vmul.f32 %v1176, 1.0614054
        %v1241 = vmul.f32 %v1177, 1.0614054
        %v1242 = vmul.f32 %v1178, 1.0614054
        %v1243 = vmul.f32 %v1179, 1.0614054
        %v1244 = vmul.f32 %v1180, 1.0614054
        %v1245 = vmul.f32 %v1181, 1.0614054
        %v1246 = vmul.f32 %v1182, 1.0614054
        %v1247 = vmul.f32 %v1183, 1.0614054
        %v1248 = vmul.f32 %v1184, 1.0614054
        %v1249 = vmul.f32 %v1185, 1.0614054
        %v1250 = vmul.f32 %v1186, 1.0614054
        %v1251 = vmul.f32 %v1187, 1.0614054
        %v1252 = vmul.f32 %v1188, 1.0614054
        %v1253 = vmul.f32 %v1189, 1.0614054
        %v1254 = vmul.f32 %v1190, 1.0614054
        %v1255 = vmul.f32 %v1191, 1.0614054
        %v1256 = vmul.f32 %v1192, 1.0614054
        %v1257 = vmul.f32 %v1193, 1.0614054
        %v1258 = vmul.f32 %v1194, 1.0614054
        %v1259 = vmul.f32 %v1195, 1.0614054
        %v1260 = vmul.f32 %v1196, 1.0614054
        %v1261 = vmul.f32 %v1197, 1.0614054
        %v1262 = vmul.f32 %v1198, 1.0614054
        %v1263 = vmul.f32 %v1199, 1.0614054
        %v1264 = vmul.f32 %v1200, 1.0614054
        %v1265 = vmul.f32 %v1201, 1.0614054
        %v1266 = vmul.f32 %v1202, 1.0614054
        %v1267 = vmul.f32 %v1203, 1.0614054
        %v1268 = vmul.f32 %v1204, 1.0614054
        %v1269 = vmul.f32 %v1205, 1.0614054
        %v1270 = vmul.f32 %v1206, 1.0614054
        %v1271 = vmul.f32 %v1207, 1.0614054
        %v1272 = vmul.f32 %v1208, 1.0614054
        %v1273 = vmul.f32 %v1209, 1.0614054
        %v1274 = vmul.f32 %v1210, 1.0614054
        %v1275 = vmul.f32 %v1211, 1.0614054
        %v1276 = vmul.f32 %v1212, 1.0614054
        %v1277 = vmul.f32 %v1213, 1.0614054
        %v1278 = vmul.f32 %v1214, 1.0614054
        %v1279 = vmul.f32 %v1215, 1.0614054
        %v1280 = vmul.f32 %v1216, 1.0614054
        %v1281 = vmul.f32 %v1217, 1.0614054
        %v1282 = vmul.f32 %v1218, 1.0614054
        %v1283 = vadd.f32 %v1219, -1.4531521
        %v1284 = vadd.f32 %v1220, -1.4531521
        %v1285 = vadd.f32 %v1221, -1.4531521
        %v1286 = vadd.f32 %v1222, -1.4531521
        %v1287 = vadd.f32 %v1223, -1.4531521
        %v1288 = vadd.f32 %v1224, -1.4531521
        %v1289 = vadd.f32 %v1225, -1.4531521
        %v1290 = vadd.f32 %v1226, -1.4531521
        %v1291 = vadd.f32 %v1227, -1.4531521
        %v1292 = vadd.f32 %v1228, -1.4531521
        %v1293 = vadd.f32 %v1229, -1.4531521
        %v1294 = vadd.f32 %v1230, -1.4531521
        %v1295 = vadd.f32 %v1231, -1.4531521
        %v1296 = vadd.f32 %v1232, -1.4531521
        %v1297 = vadd.f32 %v1233, -1.4531521
        %v1298 = vadd.f32 %v1234, -1.4531521
        %v1299 = vadd.f32 %v1235, -1.4531521
        %v1300 = vadd.f32 %v1236, -1.4531521
        %v1301 = vadd.f32 %v1237, -1.4531521
        %v1302 = vadd.f32 %v1238, -1.4531521
        %v1303 = vadd.f32 %v1239, -1.4531521
        %v1304 = vadd.f32 %v1240, -1.4531521
        %v1305 = vadd.f32 %v1241, -1.4531521
        %v1306 = vadd.f32 %v1242, -1.4531521
        %v1307 = vadd.f32 %v1243, -1.4531521
        %v1308 = vadd.f32 %v1244, -1.4531521
        %v1309 = vadd.f32 %v1245, -1.4531521
        %v1310 = vadd.f32 %v1246, -1.4531521
        %v1311 = vadd.f32 %v1247, -1.4531521
        %v1312 = vadd.f32 %v1248, -1.4531521
        %v1313 = vadd.f32 %v1249, -1.4531521
        %v1314 = vadd.f32 %v1250, -1.4531521
        %v1315 = vadd.f32 %v1251, -1.4531521
        %v1316 = vadd.f32 %v1252, -1.4531521
        %v1317 = vadd.f32 %v1253, -1.4531521
        %v1318 = vadd.f32 %v1254, -1.4531521
        %v1319 = vadd.f32 %v1255, -1.4531521
        %v1320 = vadd.f32 %v1256, -1.4531521
        %v1321 = vadd.f32 %v1257, -1.4531521
        %v1322 = vadd.f32 %v1258, -1.4531521
        %v1323 = vadd.f32 %v1259, -1.4531521
        %v1324 = vadd.f32 %v1260, -1.4531521
        %v1325 = vadd.f32 %v1261, -1.4531521
        %v1326 = vadd.f32 %v1262, -1.4531521
        %v1327 = vadd.f32 %v1263, -1.4531521
        %v1328 = vadd.f32 %v1264, -1.4531521
        %v1329 = vadd.f32 %v1265, -1.4531521
        %v1330 = vadd.f32 %v1266, -1.4531521
        %v1331 = vadd.f32 %v1267, -1.4531521
        %v1332 = vadd.f32 %v1268, -1.4531521
        %v1333 = vadd.f32 %v1269, -1.4531521
        %v1334 = vadd.f32 %v1270, -1.4531521
        %v1335 = vadd.f32 %v1271, -1.4531521
        %v1336 = vadd.f32 %v1272, -1.4531521
        %v1337 = vadd.f32 %v1273, -1.4531521
        %v1338 = vadd.f32 %v1274, -1.4531521
        %v1339 = vadd.f32 %v1275, -1.4531521
        %v1340 = vadd.f32 %v1276, -1.4531521
        %v1341 = vadd.f32 %v1277, -1.4531521
        %v1342 = vadd.f32 %v1278, -1.4531521
        %v1343 = vadd.f32 %v1279, -1.4531521
        %v1344 = vadd.f32 %v1280, -1.4531521
        %v1345 = vadd.f32 %v1281, -1.4531521
        %v1346 = vadd.f32 %v1282, -1.4531521
        %v1347 = vmul.f32 %v1283, %v1155
        %v1348 = vmul.f32 %v1284, %v1156
        %v1349 = vmul.f32 %v1285, %v1157
        %v1350 = vmul.f32 %v1286, %v1158
        %v1351 = vmul.f32 %v1287, %v1159
        %v1352 = vmul.f32 %v1288, %v1160
        %v1353 = vmul.f32 %v1289, %v1161
        %v1354 = vmul.f32 %v1290, %v1162
        %v1355 = vmul.f32 %v1291, %v1163
        %v1356 = vmul.f32 %v1292, %v1164
        %v1357 = vmul.f32 %v1293, %v1165
        %v1358 = vmul.f32 %v1294, %v1166
        %v1359 = vmul.f32 %v1295, %v1167
        %v1360 = vmul.f32 %v1296, %v1168
        %v1361 = vmul.f32 %v1297, %v1169
        %v1362 = vmul.f32 %v1298, %v1170
        %v1363 = vmul.f32 %v1299, %v1171
        %v1364 = vmul.f32 %v1300, %v1172
        %v1365 = vmul.f32 %v1301, %v1173
        %v1366 = vmul.f32 %v1302, %v1174
        %v1367 = vmul.f32 %v1303, %v1175
        %v1368 = vmul.f32 %v1304, %v1176
        %v1369 = vmul.f32 %v1305, %v1177
        %v1370 = vmul.f32 %v1306, %v1178
        %v1371 = vmul.f32 %v1307, %v1179
        %v1372 = vmul.f32 %v1308, %v1180
        %v1373 = vmul.f32 %v1309, %v1181
        %v1374 = vmul.f32 %v1310, %v1182
        %v1375 = vmul.f32 %v1311, %v1183
        %v1376 = vmul.f32 %v1312, %v1184
        %v1377 = vmul.f32 %v1313, %v1185
        %v1378 = vmul.f32 %v1314, %v1186
        %v1379 = vmul.f32 %v1315, %v1187
        %v1380 = vmul.f32 %v1316, %v1188
        %v1381 = vmul.f32 %v1317, %v1189
        %v1382 = vmul.f32 %v1318, %v1190
        %v1383 = vmul.f32 %v1319, %v1191
        %v1384 = vmul.f32 %v1320, %v1192
        %v1385 = vmul.f32 %v1321, %v1193
        %v1386 = vmul.f32 %v1322, %v1194
        %v1387 = vmul.f32 %v1323, %v1195
        %v1388 = vmul.f32 %v1324, %v1196
        %v1389 = vmul.f32 %v1325, %v1197
        %v1390 = vmul.f32 %v1326, %v1198
        %v1391 = vmul.f32 %v1327, %v1199
        %v1392 = vmul.f32 %v1328, %v1200
        %v1393 = vmul.f32 %v1329, %v1201
        %v1394 = vmul.f32 %v1330, %v1202
        %v1395 = vmul.f32 %v1331, %v1203
        %v1396 = vmul.f32 %v1332, %v1204
        %v1397 = vmul.f32 %v1333, %v1205
        %v1398 = vmul.f32 %v1334, %v1206
        %v1399 = vmul.f32 %v1335, %v1207
        %v1400 = vmul.f32 %v1336, %v1208
        %v1401 = vmul.f32 %v1337, %v1209
        %v1402 = vmul.f32 %v1338, %v1210
        %v1403 = vmul.f32 %v1339, %v1211
        %v1404 = vmul.f32 %v1340, %v1212
        %v1405 = vmul.f32 %v1341, %v1213
        %v1406 = vmul.f32 %v1342, %v1214
        %v1407 = vmul.f32 %v1343, %v1215
        %v1408 = vmul.f32 %v1344, %v1216
        %v1409 = vmul.f32 %v1345, %v1217
        %v1410 = vmul.f32 %v1346, %v1218
        %v1411 = vadd.f32 %v1347, 1.4214138
        %v1412 = vadd.f32 %v1348, 1.4214138
        %v1413 = vadd.f32 %v1349, 1.4214138
        %v1414 = vadd.f32 %v1350, 1.4214138
        %v1415 = vadd.f32 %v1351, 1.4214138
        %v1416 = vadd.f32 %v1352, 1.4214138
        %v1417 = vadd.f32 %v1353, 1.4214138
        %v1418 = vadd.f32 %v1354, 1.4214138
        %v1419 = vadd.f32 %v1355, 1.4214138
        %v1420 = vadd.f32 %v1356, 1.4214138
        %v1421 = vadd.f32 %v1357, 1.4214138
        %v1422 = vadd.f32 %v1358, 1.4214138
        %v1423 = vadd.f32 %v1359, 1.4214138
        %v1424 = vadd.f32 %v1360, 1.4214138
        %v1425 = vadd.f32 %v1361, 1.4214138
        %v1426 = vadd.f32 %v1362, 1.4214138
        %v1427 = vadd.f32 %v1363, 1.4214138
        %v1428 = vadd.f32 %v1364, 1.4214138
        %v1429 = vadd.f32 %v1365, 1.4214138
        %v1430 = vadd.f32 %v1366, 1.4214138
        %v1431 = vadd.f32 %v1367, 1.4214138
        %v1432 = vadd.f32 %v1368, 1.4214138
        %v1433 = vadd.f32 %v1369, 1.4214138
        %v1434 = vadd.f32 %v1370, 1.4214138
        %v1435 = vadd.f32 %v1371, 1.4214138
        %v1436 = vadd.f32 %v1372, 1.4214138
        %v1437 = vadd.f32 %v1373, 1.4214138
        %v1438 = vadd.f32 %v1374, 1.4214138
        %v1439 = vadd.f32 %v1375, 1.4214138
        %v1440 = vadd.f32 %v1376, 1.4214138
        %v1441 = vadd.f32 %v1377, 1.4214138
        %v1442 = vadd.f32 %v1378, 1.4214138
        %v1443 = vadd.f32 %v1379, 1.4214138
        %v1444 = vadd.f32 %v1380, 1.4214138
        %v1445 = vadd.f32 %v1381, 1.4214138
        %v1446 = vadd.f32 %v1382, 1.4214138
        %v1447 = vadd.f32 %v1383, 1.4214138
        %v1448 = vadd.f32 %v1384, 1.4214138
        %v1449 = vadd.f32 %v1385, 1.4214138
        %v1450 = vadd.f32 %v1386, 1.4214138
        %v1451 = vadd.f32 %v1387, 1.4214138
        %v1452 = vadd.f32 %v1388, 1.4214138
        %v1453 = vadd.f32 %v1389, 1.4214138
        %v1454 = vadd.f32 %v1390, 1.4214138
        %v1455 = vadd.f32 %v1391, 1.4214138
        %v1456 = vadd.f32 %v1392, 1.4214138
        %v1457 = vadd.f32 %v1393, 1.4214138
        %v1458 = vadd.f32 %v1394, 1.4214138
        %v1459 = vadd.f32 %v1395, 1.4214138
        %v1460 = vadd.f32 %v1396, 1.4214138
        %v1461 = vadd.f32 %v1397, 1.4214138
        %v1462 = vadd.f32 %v1398, 1.4214138
        %v1463 = vadd.f32 %v1399, 1.4214138
        %v1464 = vadd.f32 %v1400, 1.4214138
        %v1465 = vadd.f32 %v1401, 1.4214138
        %v1466 = vadd.f32 %v1402, 1.4214138
        %v1467 = vadd.f32 %v1403, 1.4214138
        %v1468 = vadd.f32 %v1404, 1.4214138
        %v1469 = vadd.f32 %v1405, 1.4214138
        %v1470 = vadd.f32 %v1406, 1.4214138
        %v1471 = vadd.f32 %v1407, 1.4214138
        %v1472 = vadd.f32 %v1408, 1.4214138
        %v1473 = vadd.f32 %v1409, 1.4214138
        %v1474 = vadd.f32 %v1410, 1.4214138
        %v1475 = vmul.f32 %v1411, %v1155
        %v1476 = vmul.f32 %v1412, %v1156
        %v1477 = vmul.f32 %v1413, %v1157
        %v1478 = vmul.f32 %v1414, %v1158
        %v1479 = vmul.f32 %v1415, %v1159
        %v1480 = vmul.f32 %v1416, %v1160
        %v1481 = vmul.f32 %v1417, %v1161
        %v1482 = vmul.f32 %v1418, %v1162
        %v1483 = vmul.f32 %v1419, %v1163
        %v1484 = vmul.f32 %v1420, %v1164
        %v1485 = vmul.f32 %v1421, %v1165
        %v1486 = vmul.f32 %v1422, %v1166
        %v1487 = vmul.f32 %v1423, %v1167
        %v1488 = vmul.f32 %v1424, %v1168
        %v1489 = vmul.f32 %v1425, %v1169
        %v1490 = vmul.f32 %v1426, %v1170
        %v1491 = vmul.f32 %v1427, %v1171
        %v1492 = vmul.f32 %v1428, %v1172
        %v1493 = vmul.f32 %v1429, %v1173
        %v1494 = vmul.f32 %v1430, %v1174
        %v1495 = vmul.f32 %v1431, %v1175
        %v1496 = vmul.f32 %v1432, %v1176
        %v1497 = vmul.f32 %v1433, %v1177
        %v1498 = vmul.f32 %v1434, %v1178
        %v1499 = vmul.f32 %v1435, %v1179
        %v1500 = vmul.f32 %v1436, %v1180
        %v1501 = vmul.f32 %v1437, %v1181
        %v1502 = vmul.f32 %v1438, %v1182
        %v1503 = vmul.f32 %v1439, %v1183
        %v1504 = vmul.f32 %v1440, %v1184
        %v1505 = vmul.f32 %v1441, %v1185
        %v1506 = vmul.f32 %v1442, %v1186
        %v1507 = vmul.f32 %v1443, %v1187
        %v1508 = vmul.f32 %v1444, %v1188
        %v1509 = vmul.f32 %v1445, %v1189
        %v1510 = vmul.f32 %v1446, %v1190
        %v1511 = vmul.f32 %v1447, %v1191
        %v1512 = vmul.f32 %v1448, %v1192
        %v1513 = vmul.f32 %v1449, %v1193
        %v1514 = vmul.f32 %v1450, %v1194
        %v1515 = vmul.f32 %v1451, %v1195
        %v1516 = vmul.f32 %v1452, %v1196
        %v1517 = vmul.f32 %v1453, %v1197
        %v1518 = vmul.f32 %v1454, %v1198
        %v1519 = vmul.f32 %v1455, %v1199
        %v1520 = vmul.f32 %v1456, %v1200
        %v1521 = vmul.f32 %v1457, %v1201
        %v1522 = vmul.f32 %v1458, %v1202
        %v1523 = vmul.f32 %v1459, %v1203
        %v1524 = vmul.f32 %v1460, %v1204
        %v1525 = vmul.f32 %v1461, %v1205
        %v1526 = vmul.f32 %v1462, %v1206
        %v1527 = vmul.f32 %v1463, %v1207
        %v1528 = vmul.f32 %v1464, %v1208
        %v1529 = vmul.f32 %v1465, %v1209
        %v1530 = vmul.f32 %v1466, %v1210
        %v1531 = vmul.f32 %v1467, %v1211
        %v1532 = vmul.f32 %v1468, %v1212
        %v1533 = vmul.f32 %v1469, %v1213
        %v1534 = vmul.f32 %v1470, %v1214
        %v1535 = vmul.f32 %v1471, %v1215
        %v1536 = vmul.f32 %v1472, %v1216
        %v1537 = vmul.f32 %v1473, %v1217
        %v1538 = vmul.f32 %v1474, %v1218
        %v1539 = vadd.f32 %v1475, -0.28449672
        %v1540 = vadd.f32 %v1476, -0.28449672
        %v1541 = vadd.f32 %v1477, -0.28449672
        %v1542 = vadd.f32 %v1478, -0.28449672
        %v1543 = vadd.f32 %v1479, -0.28449672
        %v1544 = vadd.f32 %v1480, -0.28449672
        %v1545 = vadd.f32 %v1481, -0.28449672
        %v1546 = vadd.f32 %v1482, -0.28449672
        %v1547 = vadd.f32 %v1483, -0.28449672
        %v1548 = vadd.f32 %v1484, -0.28449672
        %v1549 = vadd.f32 %v1485, -0.28449672
        %v1550 = vadd.f32 %v1486, -0.28449672
        %v1551 = vadd.f32 %v1487, -0.28449672
        %v1552 = vadd.f32 %v1488, -0.28449672
        %v1553 = vadd.f32 %v1489, -0.28449672
        %v1554 = vadd.f32 %v1490, -0.28449672
        %v1555 = vadd.f32 %v1491, -0.28449672
        %v1556 = vadd.f32 %v1492, -0.28449672
        %v1557 = vadd.f32 %v1493, -0.28449672
        %v1558 = vadd.f32 %v1494, -0.28449672
        %v1559 = vadd.f32 %v1495, -0.28449672
        %v1560 = vadd.f32 %v1496, -0.28449672
        %v1561 = vadd.f32 %v1497, -0.28449672
        %v1562 = vadd.f32 %v1498, -0.28449672
        %v1563 = vadd.f32 %v1499, -0.28449672
        %v1564 = vadd.f32 %v1500, -0.28449672
        %v1565 = vadd.f32 %v1501, -0.28449672
        %v1566 = vadd.f32 %v1502, -0.28449672
        %v1567 = vadd.f32 %v1503, -0.28449672
        %v1568 = vadd.f32 %v1504, -0.28449672
        %v1569 = vadd.f32 %v1505, -0.28449672
        %v1570 = vadd.f32 %v1506, -0.28449672
        %v1571 = vadd.f32 %v1507, -0.28449672
        %v1572 = vadd.f32 %v1508, -0.28449672
        %v1573 = vadd.f32 %v1509, -0.28449672
        %v1574 = vadd.f32 %v1510, -0.28449672
        %v1575 = vadd.f32 %v1511, -0.28449672
        %v1576 = vadd.f32 %v1512, -0.28449672
        %v1577 = vadd.f32 %v1513, -0.28449672
        %v1578 = vadd.f32 %v1514, -0.28449672
        %v1579 = vadd.f32 %v1515, -0.28449672
        %v1580 = vadd.f32 %v1516, -0.28449672
        %v1581 = vadd.f32 %v1517, -0.28449672
        %v1582 = vadd.f32 %v1518, -0.28449672
        %v1583 = vadd.f32 %v1519, -0.28449672
        %v1584 = vadd.f32 %v1520, -0.28449672
        %v1585 = vadd.f32 %v1521, -0.28449672
        %v1586 = vadd.f32 %v1522, -0.28449672
        %v1587 = vadd.f32 %v1523, -0.28449672
        %v1588 = vadd.f32 %v1524, -0.28449672
        %v1589 = vadd.f32 %v1525, -0.28449672
        %v1590 = vadd.f32 %v1526, -0.28449672
        %v1591 = vadd.f32 %v1527, -0.28449672
        %v1592 = vadd.f32 %v1528, -0.28449672
        %v1593 = vadd.f32 %v1529, -0.28449672
        %v1594 = vadd.f32 %v1530, -0.28449672
        %v1595 = vadd.f32 %v1531, -0.28449672
        %v1596 = vadd.f32 %v1532, -0.28449672
        %v1597 = vadd.f32 %v1533, -0.28449672
        %v1598 = vadd.f32 %v1534, -0.28449672
        %v1599 = vadd.f32 %v1535, -0.28449672
        %v1600 = vadd.f32 %v1536, -0.28449672
        %v1601 = vadd.f32 %v1537, -0.28449672
        %v1602 = vadd.f32 %v1538, -0.28449672
        %v1603 = vmul.f32 %v1539, %v1155
        %v1604 = vmul.f32 %v1540, %v1156
        %v1605 = vmul.f32 %v1541, %v1157
        %v1606 = vmul.f32 %v1542, %v1158
        %v1607 = vmul.f32 %v1543, %v1159
        %v1608 = vmul.f32 %v1544, %v1160
        %v1609 = vmul.f32 %v1545, %v1161
        %v1610 = vmul.f32 %v1546, %v1162
        %v1611 = vmul.f32 %v1547, %v1163
        %v1612 = vmul.f32 %v1548, %v1164
        %v1613 = vmul.f32 %v1549, %v1165
        %v1614 = vmul.f32 %v1550, %v1166
        %v1615 = vmul.f32 %v1551, %v1167
        %v1616 = vmul.f32 %v1552, %v1168
        %v1617 = vmul.f32 %v1553, %v1169
        %v1618 = vmul.f32 %v1554, %v1170
        %v1619 = vmul.f32 %v1555, %v1171
        %v1620 = vmul.f32 %v1556, %v1172
        %v1621 = vmul.f32 %v1557, %v1173
        %v1622 = vmul.f32 %v1558, %v1174
        %v1623 = vmul.f32 %v1559, %v1175
        %v1624 = vmul.f32 %v1560, %v1176
        %v1625 = vmul.f32 %v1561, %v1177
        %v1626 = vmul.f32 %v1562, %v1178
        %v1627 = vmul.f32 %v1563, %v1179
        %v1628 = vmul.f32 %v1564, %v1180
        %v1629 = vmul.f32 %v1565, %v1181
        %v1630 = vmul.f32 %v1566, %v1182
        %v1631 = vmul.f32 %v1567, %v1183
        %v1632 = vmul.f32 %v1568, %v1184
        %v1633 = vmul.f32 %v1569, %v1185
        %v1634 = vmul.f32 %v1570, %v1186
        %v1635 = vmul.f32 %v1571, %v1187
        %v1636 = vmul.f32 %v1572, %v1188
        %v1637 = vmul.f32 %v1573, %v1189
        %v1638 = vmul.f32 %v1574, %v1190
        %v1639 = vmul.f32 %v1575, %v1191
        %v1640 = vmul.f32 %v1576, %v1192
        %v1641 = vmul.f32 %v1577, %v1193
        %v1642 = vmul.f32 %v1578, %v1194
        %v1643 = vmul.f32 %v1579, %v1195
        %v1644 = vmul.f32 %v1580, %v1196
        %v1645 = vmul.f32 %v1581, %v1197
        %v1646 = vmul.f32 %v1582, %v1198
        %v1647 = vmul.f32 %v1583, %v1199
        %v1648 = vmul.f32 %v1584, %v1200
        %v1649 = vmul.f32 %v1585, %v1201
        %v1650 = vmul.f32 %v1586, %v1202
        %v1651 = vmul.f32 %v1587, %v1203
        %v1652 = vmul.f32 %v1588, %v1204
        %v1653 = vmul.f32 %v1589, %v1205
        %v1654 = vmul.f32 %v1590, %v1206
        %v1655 = vmul.f32 %v1591, %v1207
        %v1656 = vmul.f32 %v1592, %v1208
        %v1657 = vmul.f32 %v1593, %v1209
        %v1658 = vmul.f32 %v1594, %v1210
        %v1659 = vmul.f32 %v1595, %v1211
        %v1660 = vmul.f32 %v1596, %v1212
        %v1661 = vmul.f32 %v1597, %v1213
        %v1662 = vmul.f32 %v1598, %v1214
        %v1663 = vmul.f32 %v1599, %v1215
        %v1664 = vmul.f32 %v1600, %v1216
        %v1665 = vmul.f32 %v1601, %v1217
        %v1666 = vmul.f32 %v1602, %v1218
        %v1667 = vadd.f32 %v1603, 0.2548296
        %v1668 = vadd.f32 %v1604, 0.2548296
        %v1669 = vadd.f32 %v1605, 0.2548296
        %v1670 = vadd.f32 %v1606, 0.2548296
        %v1671 = vadd.f32 %v1607, 0.2548296
        %v1672 = vadd.f32 %v1608, 0.2548296
        %v1673 = vadd.f32 %v1609, 0.2548296
        %v1674 = vadd.f32 %v1610, 0.2548296
        %v1675 = vadd.f32 %v1611, 0.2548296
        %v1676 = vadd.f32 %v1612, 0.2548296
        %v1677 = vadd.f32 %v1613, 0.2548296
        %v1678 = vadd.f32 %v1614, 0.2548296
        %v1679 = vadd.f32 %v1615, 0.2548296
        %v1680 = vadd.f32 %v1616, 0.2548296
        %v1681 = vadd.f32 %v1617, 0.2548296
        %v1682 = vadd.f32 %v1618, 0.2548296
        %v1683 = vadd.f32 %v1619, 0.2548296
        %v1684 = vadd.f32 %v1620, 0.2548296
        %v1685 = vadd.f32 %v1621, 0.2548296
        %v1686 = vadd.f32 %v1622, 0.2548296
        %v1687 = vadd.f32 %v1623, 0.2548296
        %v1688 = vadd.f32 %v1624, 0.2548296
        %v1689 = vadd.f32 %v1625, 0.2548296
        %v1690 = vadd.f32 %v1626, 0.2548296
        %v1691 = vadd.f32 %v1627, 0.2548296
        %v1692 = vadd.f32 %v1628, 0.2548296
        %v1693 = vadd.f32 %v1629, 0.2548296
        %v1694 = vadd.f32 %v1630, 0.2548296
        %v1695 = vadd.f32 %v1631, 0.2548296
        %v1696 = vadd.f32 %v1632, 0.2548296
        %v1697 = vadd.f32 %v1633, 0.2548296
        %v1698 = vadd.f32 %v1634, 0.2548296
        %v1699 = vadd.f32 %v1635, 0.2548296
        %v1700 = vadd.f32 %v1636, 0.2548296
        %v1701 = vadd.f32 %v1637, 0.2548296
        %v1702 = vadd.f32 %v1638, 0.2548296
        %v1703 = vadd.f32 %v1639, 0.2548296
        %v1704 = vadd.f32 %v1640, 0.2548296
        %v1705 = vadd.f32 %v1641, 0.2548296
        %v1706 = vadd.f32 %v1642, 0.2548296
        %v1707 = vadd.f32 %v1643, 0.2548296
        %v1708 = vadd.f32 %v1644, 0.2548296
        %v1709 = vadd.f32 %v1645, 0.2548296
        %v1710 = vadd.f32 %v1646, 0.2548296
        %v1711 = vadd.f32 %v1647, 0.2548296
        %v1712 = vadd.f32 %v1648, 0.2548296
        %v1713 = vadd.f32 %v1649, 0.2548296
        %v1714 = vadd.f32 %v1650, 0.2548296
        %v1715 = vadd.f32 %v1651, 0.2548296
        %v1716 = vadd.f32 %v1652, 0.2548296
        %v1717 = vadd.f32 %v1653, 0.2548296
        %v1718 = vadd.f32 %v1654, 0.2548296
        %v1719 = vadd.f32 %v1655, 0.2548296
        %v1720 = vadd.f32 %v1656, 0.2548296
        %v1721 = vadd.f32 %v1657, 0.2548296
        %v1722 = vadd.f32 %v1658, 0.2548296
        %v1723 = vadd.f32 %v1659, 0.2548296
        %v1724 = vadd.f32 %v1660, 0.2548296
        %v1725 = vadd.f32 %v1661, 0.2548296
        %v1726 = vadd.f32 %v1662, 0.2548296
        %v1727 = vadd.f32 %v1663, 0.2548296
        %v1728 = vadd.f32 %v1664, 0.2548296
        %v1729 = vadd.f32 %v1665, 0.2548296
        %v1730 = vadd.f32 %v1666, 0.2548296
        %v1731 = vmul.f32 %v1667, %v1155
        %v1732 = vmul.f32 %v1668, %v1156
        %v1733 = vmul.f32 %v1669, %v1157
        %v1734 = vmul.f32 %v1670, %v1158
        %v1735 = vmul.f32 %v1671, %v1159
        %v1736 = vmul.f32 %v1672, %v1160
        %v1737 = vmul.f32 %v1673, %v1161
        %v1738 = vmul.f32 %v1674, %v1162
        %v1739 = vmul.f32 %v1675, %v1163
        %v1740 = vmul.f32 %v1676, %v1164
        %v1741 = vmul.f32 %v1677, %v1165
        %v1742 = vmul.f32 %v1678, %v1166
        %v1743 = vmul.f32 %v1679, %v1167
        %v1744 = vmul.f32 %v1680, %v1168
        %v1745 = vmul.f32 %v1681, %v1169
        %v1746 = vmul.f32 %v1682, %v1170
        %v1747 = vmul.f32 %v1683, %v1171
        %v1748 = vmul.f32 %v1684, %v1172
        %v1749 = vmul.f32 %v1685, %v1173
        %v1750 = vmul.f32 %v1686, %v1174
        %v1751 = vmul.f32 %v1687, %v1175
        %v1752 = vmul.f32 %v1688, %v1176
        %v1753 = vmul.f32 %v1689, %v1177
        %v1754 = vmul.f32 %v1690, %v1178
        %v1755 = vmul.f32 %v1691, %v1179
        %v1756 = vmul.f32 %v1692, %v1180
        %v1757 = vmul.f32 %v1693, %v1181
        %v1758 = vmul.f32 %v1694, %v1182
        %v1759 = vmul.f32 %v1695, %v1183
        %v1760 = vmul.f32 %v1696, %v1184
        %v1761 = vmul.f32 %v1697, %v1185
        %v1762 = vmul.f32 %v1698, %v1186
        %v1763 = vmul.f32 %v1699, %v1187
        %v1764 = vmul.f32 %v1700, %v1188
        %v1765 = vmul.f32 %v1701, %v1189
        %v1766 = vmul.f32 %v1702, %v1190
        %v1767 = vmul.f32 %v1703, %v1191
        %v1768 = vmul.f32 %v1704, %v1192
        %v1769 = vmul.f32 %v1705, %v1193
        %v1770 = vmul.f32 %v1706, %v1194
        %v1771 = vmul.f32 %v1707, %v1195
        %v1772 = vmul.f32 %v1708, %v1196
        %v1773 = vmul.f32 %v1709, %v1197
        %v1774 = vmul.f32 %v1710, %v1198
        %v1775 = vmul.f32 %v1711, %v1199
        %v1776 = vmul.f32 %v1712, %v1200
        %v1777 = vmul.f32 %v1713, %v1201
        %v1778 = vmul.f32 %v1714, %v1202
        %v1779 = vmul.f32 %v1715, %v1203
        %v1780 = vmul.f32 %v1716, %v1204
        %v1781 = vmul.f32 %v1717, %v1205
        %v1782 = vmul.f32 %v1718, %v1206
        %v1783 = vmul.f32 %v1719, %v1207
        %v1784 = vmul.f32 %v1720, %v1208
        %v1785 = vmul.f32 %v1721, %v1209
        %v1786 = vmul.f32 %v1722, %v1210
        %v1787 = vmul.f32 %v1723, %v1211
        %v1788 = vmul.f32 %v1724, %v1212
        %v1789 = vmul.f32 %v1725, %v1213
        %v1790 = vmul.f32 %v1726, %v1214
        %v1791 = vmul.f32 %v1727, %v1215
        %v1792 = vmul.f32 %v1728, %v1216
        %v1793 = vmul.f32 %v1729, %v1217
        %v1794 = vmul.f32 %v1730, %v1218
        %v1795 = vsub.f32 0.0, %v963
        %v1796 = vsub.f32 0.0, %v964
        %v1797 = vsub.f32 0.0, %v965
        %v1798 = vsub.f32 0.0, %v966
        %v1799 = vsub.f32 0.0, %v967
        %v1800 = vsub.f32 0.0, %v968
        %v1801 = vsub.f32 0.0, %v969
        %v1802 = vsub.f32 0.0, %v970
        %v1803 = vsub.f32 0.0, %v971
        %v1804 = vsub.f32 0.0, %v972
        %v1805 = vsub.f32 0.0, %v973
        %v1806 = vsub.f32 0.0, %v974
        %v1807 = vsub.f32 0.0, %v975
        %v1808 = vsub.f32 0.0, %v976
        %v1809 = vsub.f32 0.0, %v977
        %v1810 = vsub.f32 0.0, %v978
        %v1811 = vsub.f32 0.0, %v979
        %v1812 = vsub.f32 0.0, %v980
        %v1813 = vsub.f32 0.0, %v981
        %v1814 = vsub.f32 0.0, %v982
        %v1815 = vsub.f32 0.0, %v983
        %v1816 = vsub.f32 0.0, %v984
        %v1817 = vsub.f32 0.0, %v985
        %v1818 = vsub.f32 0.0, %v986
        %v1819 = vsub.f32 0.0, %v987
        %v1820 = vsub.f32 0.0, %v988
        %v1821 = vsub.f32 0.0, %v989
        %v1822 = vsub.f32 0.0, %v990
        %v1823 = vsub.f32 0.0, %v991
        %v1824 = vsub.f32 0.0, %v992
        %v1825 = vsub.f32 0.0, %v993
        %v1826 = vsub.f32 0.0, %v994
        %v1827 = vsub.f32 0.0, %v995
        %v1828 = vsub.f32 0.0, %v996
        %v1829 = vsub.f32 0.0, %v997
        %v1830 = vsub.f32 0.0, %v998
        %v1831 = vsub.f32 0.0, %v999
        %v1832 = vsub.f32 0.0, %v1000
        %v1833 = vsub.f32 0.0, %v1001
        %v1834 = vsub.f32 0.0, %v1002
        %v1835 = vsub.f32 0.0, %v1003
        %v1836 = vsub.f32 0.0, %v1004
        %v1837 = vsub.f32 0.0, %v1005
        %v1838 = vsub.f32 0.0, %v1006
        %v1839 = vsub.f32 0.0, %v1007
        %v1840 = vsub.f32 0.0, %v1008
        %v1841 = vsub.f32 0.0, %v1009
        %v1842 = vsub.f32 0.0, %v1010
        %v1843 = vsub.f32 0.0, %v1011
        %v1844 = vsub.f32 0.0, %v1012
        %v1845 = vsub.f32 0.0, %v1013
        %v1846 = vsub.f32 0.0, %v1014
        %v1847 = vsub.f32 0.0, %v1015
        %v1848 = vsub.f32 0.0, %v1016
        %v1849 = vsub.f32 0.0, %v1017
        %v1850 = vsub.f32 0.0, %v1018
        %v1851 = vsub.f32 0.0, %v1019
        %v1852 = vsub.f32 0.0, %v1020
        %v1853 = vsub.f32 0.0, %v1021
        %v1854 = vsub.f32 0.0, %v1022
        %v1855 = vsub.f32 0.0, %v1023
        %v1856 = vsub.f32 0.0, %v1024
        %v1857 = vsub.f32 0.0, %v1025
        %v1858 = vsub.f32 0.0, %v1026
        %v1859 = vmul.f32 %v1795, %v963
        %v1860 = vmul.f32 %v1796, %v964
        %v1861 = vmul.f32 %v1797, %v965
        %v1862 = vmul.f32 %v1798, %v966
        %v1863 = vmul.f32 %v1799, %v967
        %v1864 = vmul.f32 %v1800, %v968
        %v1865 = vmul.f32 %v1801, %v969
        %v1866 = vmul.f32 %v1802, %v970
        %v1867 = vmul.f32 %v1803, %v971
        %v1868 = vmul.f32 %v1804, %v972
        %v1869 = vmul.f32 %v1805, %v973
        %v1870 = vmul.f32 %v1806, %v974
        %v1871 = vmul.f32 %v1807, %v975
        %v1872 = vmul.f32 %v1808, %v976
        %v1873 = vmul.f32 %v1809, %v977
        %v1874 = vmul.f32 %v1810, %v978
        %v1875 = vmul.f32 %v1811, %v979
        %v1876 = vmul.f32 %v1812, %v980
        %v1877 = vmul.f32 %v1813, %v981
        %v1878 = vmul.f32 %v1814, %v982
        %v1879 = vmul.f32 %v1815, %v983
        %v1880 = vmul.f32 %v1816, %v984
        %v1881 = vmul.f32 %v1817, %v985
        %v1882 = vmul.f32 %v1818, %v986
        %v1883 = vmul.f32 %v1819, %v987
        %v1884 = vmul.f32 %v1820, %v988
        %v1885 = vmul.f32 %v1821, %v989
        %v1886 = vmul.f32 %v1822, %v990
        %v1887 = vmul.f32 %v1823, %v991
        %v1888 = vmul.f32 %v1824, %v992
        %v1889 = vmul.f32 %v1825, %v993
        %v1890 = vmul.f32 %v1826, %v994
        %v1891 = vmul.f32 %v1827, %v995
        %v1892 = vmul.f32 %v1828, %v996
        %v1893 = vmul.f32 %v1829, %v997
        %v1894 = vmul.f32 %v1830, %v998
        %v1895 = vmul.f32 %v1831, %v999
        %v1896 = vmul.f32 %v1832, %v1000
        %v1897 = vmul.f32 %v1833, %v1001
        %v1898 = vmul.f32 %v1834, %v1002
        %v1899 = vmul.f32 %v1835, %v1003
        %v1900 = vmul.f32 %v1836, %v1004
        %v1901 = vmul.f32 %v1837, %v1005
        %v1902 = vmul.f32 %v1838, %v1006
        %v1903 = vmul.f32 %v1839, %v1007
        %v1904 = vmul.f32 %v1840, %v1008
        %v1905 = vmul.f32 %v1841, %v1009
        %v1906 = vmul.f32 %v1842, %v1010
        %v1907 = vmul.f32 %v1843, %v1011
        %v1908 = vmul.f32 %v1844, %v1012
        %v1909 = vmul.f32 %v1845, %v1013
        %v1910 = vmul.f32 %v1846, %v1014
        %v1911 = vmul.f32 %v1847, %v1015
        %v1912 = vmul.f32 %v1848, %v1016
        %v1913 = vmul.f32 %v1849, %v1017
        %v1914 = vmul.f32 %v1850, %v1018
        %v1915 = vmul.f32 %v1851, %v1019
        %v1916 = vmul.f32 %v1852, %v1020
        %v1917 = vmul.f32 %v1853, %v1021
        %v1918 = vmul.f32 %v1854, %v1022
        %v1919 = vmul.f32 %v1855, %v1023
        %v1920 = vmul.f32 %v1856, %v1024
        %v1921 = vmul.f32 %v1857, %v1025
        %v1922 = vmul.f32 %v1858, %v1026
        %v1923 = vmul.f32 %v1859, 1.442695
        %v1924 = vpow.pop %v1923
        %v1925 = vmul.f32 %v1860, 1.442695
        %v1926 = vpow.pop %v1925
        %v1927 = vmul.f32 %v1861, 1.442695
        %v1928 = vpow.pop %v1927
        %v1929 = vmul.f32 %v1862, 1.442695
        %v1930 = vpow.pop %v1929
        %v1931 = vmul.f32 %v1863, 1.442695
        %v1932 = vpow.pop %v1931
        %v1933 = vmul.f32 %v1864, 1.442695
        %v1934 = vpow.pop %v1933
        %v1935 = vmul.f32 %v1865, 1.442695
        %v1936 = vpow.pop %v1935
        %v1937 = vmul.f32 %v1866, 1.442695
        %v1938 = vpow.pop %v1937
        %v1939 = vmul.f32 %v1867, 1.442695
        %v1940 = vpow.pop %v1939
        %v1941 = vmul.f32 %v1868, 1.442695
        %v1942 = vpow.pop %v1941
        %v1943 = vmul.f32 %v1869, 1.442695
        %v1944 = vpow.pop %v1943
        %v1945 = vmul.f32 %v1870, 1.442695
        %v1946 = vpow.pop %v1945
        %v1947 = vmul.f32 %v1871, 1.442695
        %v1948 = vpow.pop %v1947
        %v1949 = vmul.f32 %v1872, 1.442695
        %v1950 = vpow.pop %v1949
        %v1951 = vmul.f32 %v1873, 1.442695
        %v1952 = vpow.pop %v1951
        %v1953 = vmul.f32 %v1874, 1.442695
        %v1954 = vpow.pop %v1953
        %v1955 = vmul.f32 %v1875, 1.442695
        %v1956 = vpow.pop %v1955
        %v1957 = vmul.f32 %v1876, 1.442695
        %v1958 = vpow.pop %v1957
        %v1959 = vmul.f32 %v1877, 1.442695
        %v1960 = vpow.pop %v1959
        %v1961 = vmul.f32 %v1878, 1.442695
        %v1962 = vpow.pop %v1961
        %v1963 = vmul.f32 %v1879, 1.442695
        %v1964 = vpow.pop %v1963
        %v1965 = vmul.f32 %v1880, 1.442695
        %v1966 = vpow.pop %v1965
        %v1967 = vmul.f32 %v1881, 1.442695
        %v1968 = vpow.pop %v1967
        %v1969 = vmul.f32 %v1882, 1.442695
        %v1970 = vpow.pop %v1969
        %v1971 = vmul.f32 %v1883, 1.442695
        %v1972 = vpow.pop %v1971
        %v1973 = vmul.f32 %v1884, 1.442695
        %v1974 = vpow.pop %v1973
        %v1975 = vmul.f32 %v1885, 1.442695
        %v1976 = vpow.pop %v1975
        %v1977 = vmul.f32 %v1886, 1.442695
        %v1978 = vpow.pop %v1977
        %v1979 = vmul.f32 %v1887, 1.442695
        %v1980 = vpow.pop %v1979
        %v1981 = vmul.f32 %v1888, 1.442695
        %v1982 = vpow.pop %v1981
        %v1983 = vmul.f32 %v1889, 1.442695
        %v1984 = vpow.pop %v1983
        %v1985 = vmul.f32 %v1890, 1.442695
        %v1986 = vpow.pop %v1985
        %v1987 = vmul.f32 %v1891, 1.442695
        %v1988 = vpow.pop %v1987
        %v1989 = vmul.f32 %v1892, 1.442695
        %v1990 = vpow.pop %v1989
        %v1991 = vmul.f32 %v1893, 1.442695
        %v1992 = vpow.pop %v1991
        %v1993 = vmul.f32 %v1894, 1.442695
        %v1994 = vpow.pop %v1993
        %v1995 = vmul.f32 %v1895, 1.442695
        %v1996 = vpow.pop %v1995
        %v1997 = vmul.f32 %v1896, 1.442695
        %v1998 = vpow.pop %v1997
        %v1999 = vmul.f32 %v1897, 1.442695
        %v2000 = vpow.pop %v1999
        %v2001 = vmul.f32 %v1898, 1.442695
        %v2002 = vpow.pop %v2001
        %v2003 = vmul.f32 %v1899, 1.442695
        %v2004 = vpow.pop %v2003
        %v2005 = vmul.f32 %v1900, 1.442695
        %v2006 = vpow.pop %v2005
        %v2007 = vmul.f32 %v1901, 1.442695
        %v2008 = vpow.pop %v2007
        %v2009 = vmul.f32 %v1902, 1.442695
        %v2010 = vpow.pop %v2009
        %v2011 = vmul.f32 %v1903, 1.442695
        %v2012 = vpow.pop %v2011
        %v2013 = vmul.f32 %v1904, 1.442695
        %v2014 = vpow.pop %v2013
        %v2015 = vmul.f32 %v1905, 1.442695
        %v2016 = vpow.pop %v2015
        %v2017 = vmul.f32 %v1906, 1.442695
        %v2018 = vpow.pop %v2017
        %v2019 = vmul.f32 %v1907, 1.442695
        %v2020 = vpow.pop %v2019
        %v2021 = vmul.f32 %v1908, 1.442695
        %v2022 = vpow.pop %v2021
        %v2023 = vmul.f32 %v1909, 1.442695
        %v2024 = vpow.pop %v2023
        %v2025 = vmul.f32 %v1910, 1.442695
        %v2026 = vpow.pop %v2025
        %v2027 = vmul.f32 %v1911, 1.442695
        %v2028 = vpow.pop %v2027
        %v2029 = vmul.f32 %v1912, 1.442695
        %v2030 = vpow.pop %v2029
        %v2031 = vmul.f32 %v1913, 1.442695
        %v2032 = vpow.pop %v2031
        %v2033 = vmul.f32 %v1914, 1.442695
        %v2034 = vpow.pop %v2033
        %v2035 = vmul.f32 %v1915, 1.442695
        %v2036 = vpow.pop %v2035
        %v2037 = vmul.f32 %v1916, 1.442695
        %v2038 = vpow.pop %v2037
        %v2039 = vmul.f32 %v1917, 1.442695
        %v2040 = vpow.pop %v2039
        %v2041 = vmul.f32 %v1918, 1.442695
        %v2042 = vpow.pop %v2041
        %v2043 = vmul.f32 %v1919, 1.442695
        %v2044 = vpow.pop %v2043
        %v2045 = vmul.f32 %v1920, 1.442695
        %v2046 = vpow.pop %v2045
        %v2047 = vmul.f32 %v1921, 1.442695
        %v2048 = vpow.pop %v2047
        %v2049 = vmul.f32 %v1922, 1.442695
        %v2050 = vpow.pop %v2049
        %v2051 = vmul.f32 %v1731, %v1924
        %v2052 = vmul.f32 %v1732, %v1926
        %v2053 = vmul.f32 %v1733, %v1928
        %v2054 = vmul.f32 %v1734, %v1930
        %v2055 = vmul.f32 %v1735, %v1932
        %v2056 = vmul.f32 %v1736, %v1934
        %v2057 = vmul.f32 %v1737, %v1936
        %v2058 = vmul.f32 %v1738, %v1938
        %v2059 = vmul.f32 %v1739, %v1940
        %v2060 = vmul.f32 %v1740, %v1942
        %v2061 = vmul.f32 %v1741, %v1944
        %v2062 = vmul.f32 %v1742, %v1946
        %v2063 = vmul.f32 %v1743, %v1948
        %v2064 = vmul.f32 %v1744, %v1950
        %v2065 = vmul.f32 %v1745, %v1952
        %v2066 = vmul.f32 %v1746, %v1954
        %v2067 = vmul.f32 %v1747, %v1956
        %v2068 = vmul.f32 %v1748, %v1958
        %v2069 = vmul.f32 %v1749, %v1960
        %v2070 = vmul.f32 %v1750, %v1962
        %v2071 = vmul.f32 %v1751, %v1964
        %v2072 = vmul.f32 %v1752, %v1966
        %v2073 = vmul.f32 %v1753, %v1968
        %v2074 = vmul.f32 %v1754, %v1970
        %v2075 = vmul.f32 %v1755, %v1972
        %v2076 = vmul.f32 %v1756, %v1974
        %v2077 = vmul.f32 %v1757, %v1976
        %v2078 = vmul.f32 %v1758, %v1978
        %v2079 = vmul.f32 %v1759, %v1980
        %v2080 = vmul.f32 %v1760, %v1982
        %v2081 = vmul.f32 %v1761, %v1984
        %v2082 = vmul.f32 %v1762, %v1986
        %v2083 = vmul.f32 %v1763, %v1988
        %v2084 = vmul.f32 %v1764, %v1990
        %v2085 = vmul.f32 %v1765, %v1992
        %v2086 = vmul.f32 %v1766, %v1994
        %v2087 = vmul.f32 %v1767, %v1996
        %v2088 = vmul.f32 %v1768, %v1998
        %v2089 = vmul.f32 %v1769, %v2000
        %v2090 = vmul.f32 %v1770, %v2002
        %v2091 = vmul.f32 %v1771, %v2004
        %v2092 = vmul.f32 %v1772, %v2006
        %v2093 = vmul.f32 %v1773, %v2008
        %v2094 = vmul.f32 %v1774, %v2010
        %v2095 = vmul.f32 %v1775, %v2012
        %v2096 = vmul.f32 %v1776, %v2014
        %v2097 = vmul.f32 %v1777, %v2016
        %v2098 = vmul.f32 %v1778, %v2018
        %v2099 = vmul.f32 %v1779, %v2020
        %v2100 = vmul.f32 %v1780, %v2022
        %v2101 = vmul.f32 %v1781, %v2024
        %v2102 = vmul.f32 %v1782, %v2026
        %v2103 = vmul.f32 %v1783, %v2028
        %v2104 = vmul.f32 %v1784, %v2030
        %v2105 = vmul.f32 %v1785, %v2032
        %v2106 = vmul.f32 %v1786, %v2034
        %v2107 = vmul.f32 %v1787, %v2036
        %v2108 = vmul.f32 %v1788, %v2038
        %v2109 = vmul.f32 %v1789, %v2040
        %v2110 = vmul.f32 %v1790, %v2042
        %v2111 = vmul.f32 %v1791, %v2044
        %v2112 = vmul.f32 %v1792, %v2046
        %v2113 = vmul.f32 %v1793, %v2048
        %v2114 = vmul.f32 %v1794, %v2050
        %v2115 = vsub.f32 1.0, %v2051
        %v2116 = vsub.f32 1.0, %v2052
        %v2117 = vsub.f32 1.0, %v2053
        %v2118 = vsub.f32 1.0, %v2054
        %v2119 = vsub.f32 1.0, %v2055
        %v2120 = vsub.f32 1.0, %v2056
        %v2121 = vsub.f32 1.0, %v2057
        %v2122 = vsub.f32 1.0, %v2058
        %v2123 = vsub.f32 1.0, %v2059
        %v2124 = vsub.f32 1.0, %v2060
        %v2125 = vsub.f32 1.0, %v2061
        %v2126 = vsub.f32 1.0, %v2062
        %v2127 = vsub.f32 1.0, %v2063
        %v2128 = vsub.f32 1.0, %v2064
        %v2129 = vsub.f32 1.0, %v2065
        %v2130 = vsub.f32 1.0, %v2066
        %v2131 = vsub.f32 1.0, %v2067
        %v2132 = vsub.f32 1.0, %v2068
        %v2133 = vsub.f32 1.0, %v2069
        %v2134 = vsub.f32 1.0, %v2070
        %v2135 = vsub.f32 1.0, %v2071
        %v2136 = vsub.f32 1.0, %v2072
        %v2137 = vsub.f32 1.0, %v2073
        %v2138 = vsub.f32 1.0, %v2074
        %v2139 = vsub.f32 1.0, %v2075
        %v2140 = vsub.f32 1.0, %v2076
        %v2141 = vsub.f32 1.0, %v2077
        %v2142 = vsub.f32 1.0, %v2078
        %v2143 = vsub.f32 1.0, %v2079
        %v2144 = vsub.f32 1.0, %v2080
        %v2145 = vsub.f32 1.0, %v2081
        %v2146 = vsub.f32 1.0, %v2082
        %v2147 = vsub.f32 1.0, %v2083
        %v2148 = vsub.f32 1.0, %v2084
        %v2149 = vsub.f32 1.0, %v2085
        %v2150 = vsub.f32 1.0, %v2086
        %v2151 = vsub.f32 1.0, %v2087
        %v2152 = vsub.f32 1.0, %v2088
        %v2153 = vsub.f32 1.0, %v2089
        %v2154 = vsub.f32 1.0, %v2090
        %v2155 = vsub.f32 1.0, %v2091
        %v2156 = vsub.f32 1.0, %v2092
        %v2157 = vsub.f32 1.0, %v2093
        %v2158 = vsub.f32 1.0, %v2094
        %v2159 = vsub.f32 1.0, %v2095
        %v2160 = vsub.f32 1.0, %v2096
        %v2161 = vsub.f32 1.0, %v2097
        %v2162 = vsub.f32 1.0, %v2098
        %v2163 = vsub.f32 1.0, %v2099
        %v2164 = vsub.f32 1.0, %v2100
        %v2165 = vsub.f32 1.0, %v2101
        %v2166 = vsub.f32 1.0, %v2102
        %v2167 = vsub.f32 1.0, %v2103
        %v2168 = vsub.f32 1.0, %v2104
        %v2169 = vsub.f32 1.0, %v2105
        %v2170 = vsub.f32 1.0, %v2106
        %v2171 = vsub.f32 1.0, %v2107
        %v2172 = vsub.f32 1.0, %v2108
        %v2173 = vsub.f32 1.0, %v2109
        %v2174 = vsub.f32 1.0, %v2110
        %v2175 = vsub.f32 1.0, %v2111
        %v2176 = vsub.f32 1.0, %v2112
        %v2177 = vsub.f32 1.0, %v2113
        %v2178 = vsub.f32 1.0, %v2114
        %vm2179 = vcmp.ge.f32.partialorder %v899, 0.0
        %vm2180 = vcmp.ge.f32.partialorder %v900, 0.0
        %vm2181 = vcmp.ge.f32.partialorder %v901, 0.0
        %vm2182 = vcmp.ge.f32.partialorder %v902, 0.0
        %vm2183 = vcmp.ge.f32.partialorder %v903, 0.0
        %vm2184 = vcmp.ge.f32.partialorder %v904, 0.0
        %vm2185 = vcmp.ge.f32.partialorder %v905, 0.0
        %vm2186 = vcmp.ge.f32.partialorder %v906, 0.0
        %vm2187 = vcmp.ge.f32.partialorder %v907, 0.0
        %vm2188 = vcmp.ge.f32.partialorder %v908, 0.0
        %vm2189 = vcmp.ge.f32.partialorder %v909, 0.0
        %vm2190 = vcmp.ge.f32.partialorder %v910, 0.0
        %vm2191 = vcmp.ge.f32.partialorder %v911, 0.0
        %vm2192 = vcmp.ge.f32.partialorder %v912, 0.0
        %vm2193 = vcmp.ge.f32.partialorder %v913, 0.0
        %vm2194 = vcmp.ge.f32.partialorder %v914, 0.0
        %vm2195 = vcmp.ge.f32.partialorder %v915, 0.0
        %vm2196 = vcmp.ge.f32.partialorder %v916, 0.0
        %vm2197 = vcmp.ge.f32.partialorder %v917, 0.0
        %vm2198 = vcmp.ge.f32.partialorder %v918, 0.0
        %vm2199 = vcmp.ge.f32.partialorder %v919, 0.0
        %vm2200 = vcmp.ge.f32.partialorder %v920, 0.0
        %vm2201 = vcmp.ge.f32.partialorder %v921, 0.0
        %vm2202 = vcmp.ge.f32.partialorder %v922, 0.0
        %vm2203 = vcmp.ge.f32.partialorder %v923, 0.0
        %vm2204 = vcmp.ge.f32.partialorder %v924, 0.0
        %vm2205 = vcmp.ge.f32.partialorder %v925, 0.0
        %vm2206 = vcmp.ge.f32.partialorder %v926, 0.0
        %vm2207 = vcmp.ge.f32.partialorder %v927, 0.0
        %vm2208 = vcmp.ge.f32.partialorder %v928, 0.0
        %vm2209 = vcmp.ge.f32.partialorder %v929, 0.0
        %vm2210 = vcmp.ge.f32.partialorder %v930, 0.0
        %vm2211 = vcmp.ge.f32.partialorder %v931, 0.0
        %vm2212 = vcmp.ge.f32.partialorder %v932, 0.0
        %vm2213 = vcmp.ge.f32.partialorder %v933, 0.0
        %vm2214 = vcmp.ge.f32.partialorder %v934, 0.0
        %vm2215 = vcmp.ge.f32.partialorder %v935, 0.0
        %vm2216 = vcmp.ge.f32.partialorder %v936, 0.0
        %vm2217 = vcmp.ge.f32.partialorder %v937, 0.0
        %vm2218 = vcmp.ge.f32.partialorder %v938, 0.0
        %vm2219 = vcmp.ge.f32.partialorder %v939, 0.0
        %vm2220 = vcmp.ge.f32.partialorder %v940, 0.0
        %vm2221 = vcmp.ge.f32.partialorder %v941, 0.0
        %vm2222 = vcmp.ge.f32.partialorder %v942, 0.0
        %vm2223 = vcmp.ge.f32.partialorder %v943, 0.0
        %vm2224 = vcmp.ge.f32.partialorder %v944, 0.0
        %vm2225 = vcmp.ge.f32.partialorder %v945, 0.0
        %vm2226 = vcmp.ge.f32.partialorder %v946, 0.0
        %vm2227 = vcmp.ge.f32.partialorder %v947, 0.0
        %vm2228 = vcmp.ge.f32.partialorder %v948, 0.0
        %vm2229 = vcmp.ge.f32.partialorder %v949, 0.0
        %vm2230 = vcmp.ge.f32.partialorder %v950, 0.0
        %vm2231 = vcmp.ge.f32.partialorder %v951, 0.0
        %vm2232 = vcmp.ge.f32.partialorder %v952, 0.0
        %vm2233 = vcmp.ge.f32.partialorder %v953, 0.0
        %vm2234 = vcmp.ge.f32.partialorder %v954, 0.0
        %vm2235 = vcmp.ge.f32.partialorder %v955, 0.0
        %vm2236 = vcmp.ge.f32.partialorder %v956, 0.0
        %vm2237 = vcmp.ge.f32.partialorder %v957, 0.0
        %vm2238 = vcmp.ge.f32.partialorder %v958, 0.0
        %vm2239 = vcmp.ge.f32.partialorder %v959, 0.0
        %vm2240 = vcmp.ge.f32.partialorder %v960, 0.0
        %vm2241 = vcmp.ge.f32.partialorder %v961, 0.0
        %vm2242 = vcmp.ge.f32.partialorder %v962, 0.0
        %v2243 = vsub.f32 0.0, %v2115
        %v2244 = vsub.f32 0.0, %v2116
        %v2245 = vsub.f32 0.0, %v2117
        %v2246 = vsub.f32 0.0, %v2118
        %v2247 = vsub.f32 0.0, %v2119
        %v2248 = vsub.f32 0.0, %v2120
        %v2249 = vsub.f32 0.0, %v2121
        %v2250 = vsub.f32 0.0, %v2122
        %v2251 = vsub.f32 0.0, %v2123
        %v2252 = vsub.f32 0.0, %v2124
        %v2253 = vsub.f32 0.0, %v2125
        %v2254 = vsub.f32 0.0, %v2126
        %v2255 = vsub.f32 0.0, %v2127
        %v2256 = vsub.f32 0.0, %v2128
        %v2257 = vsub.f32 0.0, %v2129
        %v2258 = vsub.f32 0.0, %v2130
        %v2259 = vsub.f32 0.0, %v2131
        %v2260 = vsub.f32 0.0, %v2132
        %v2261 = vsub.f32 0.0, %v2133
        %v2262 = vsub.f32 0.0, %v2134
        %v2263 = vsub.f32 0.0, %v2135
        %v2264 = vsub.f32 0.0, %v2136
        %v2265 = vsub.f32 0.0, %v2137
        %v2266 = vsub.f32 0.0, %v2138
        %v2267 = vsub.f32 0.0, %v2139
        %v2268 = vsub.f32 0.0, %v2140
        %v2269 = vsub.f32 0.0, %v2141
        %v2270 = vsub.f32 0.0, %v2142
        %v2271 = vsub.f32 0.0, %v2143
        %v2272 = vsub.f32 0.0, %v2144
        %v2273 = vsub.f32 0.0, %v2145
        %v2274 = vsub.f32 0.0, %v2146
        %v2275 = vsub.f32 0.0, %v2147
        %v2276 = vsub.f32 0.0, %v2148
        %v2277 = vsub.f32 0.0, %v2149
        %v2278 = vsub.f32 0.0, %v2150
        %v2279 = vsub.f32 0.0, %v2151
        %v2280 = vsub.f32 0.0, %v2152
        %v2281 = vsub.f32 0.0, %v2153
        %v2282 = vsub.f32 0.0, %v2154
        %v2283 = vsub.f32 0.0, %v2155
        %v2284 = vsub.f32 0.0, %v2156
        %v2285 = vsub.f32 0.0, %v2157
        %v2286 = vsub.f32 0.0, %v2158
        %v2287 = vsub.f32 0.0, %v2159
        %v2288 = vsub.f32 0.0, %v2160
        %v2289 = vsub.f32 0.0, %v2161
        %v2290 = vsub.f32 0.0, %v2162
        %v2291 = vsub.f32 0.0, %v2163
        %v2292 = vsub.f32 0.0, %v2164
        %v2293 = vsub.f32 0.0, %v2165
        %v2294 = vsub.f32 0.0, %v2166
        %v2295 = vsub.f32 0.0, %v2167
        %v2296 = vsub.f32 0.0, %v2168
        %v2297 = vsub.f32 0.0, %v2169
        %v2298 = vsub.f32 0.0, %v2170
        %v2299 = vsub.f32 0.0, %v2171
        %v2300 = vsub.f32 0.0, %v2172
        %v2301 = vsub.f32 0.0, %v2173
        %v2302 = vsub.f32 0.0, %v2174
        %v2303 = vsub.f32 0.0, %v2175
        %v2304 = vsub.f32 0.0, %v2176
        %v2305 = vsub.f32 0.0, %v2177
        %v2306 = vsub.f32 0.0, %v2178
        %v2307 = vsel %vm2179, %v2115, %v2243
        %v2308 = vsel %vm2180, %v2116, %v2244
        %v2309 = vsel %vm2181, %v2117, %v2245
        %v2310 = vsel %vm2182, %v2118, %v2246
        %v2311 = vsel %vm2183, %v2119, %v2247
        %v2312 = vsel %vm2184, %v2120, %v2248
        %v2313 = vsel %vm2185, %v2121, %v2249
        %v2314 = vsel %vm2186, %v2122, %v2250
        %v2315 = vsel %vm2187, %v2123, %v2251
        %v2316 = vsel %vm2188, %v2124, %v2252
        %v2317 = vsel %vm2189, %v2125, %v2253
        %v2318 = vsel %vm2190, %v2126, %v2254
        %v2319 = vsel %vm2191, %v2127, %v2255
        %v2320 = vsel %vm2192, %v2128, %v2256
        %v2321 = vsel %vm2193, %v2129, %v2257
        %v2322 = vsel %vm2194, %v2130, %v2258
        %v2323 = vsel %vm2195, %v2131, %v2259
        %v2324 = vsel %vm2196, %v2132, %v2260
        %v2325 = vsel %vm2197, %v2133, %v2261
        %v2326 = vsel %vm2198, %v2134, %v2262
        %v2327 = vsel %vm2199, %v2135, %v2263
        %v2328 = vsel %vm2200, %v2136, %v2264
        %v2329 = vsel %vm2201, %v2137, %v2265
        %v2330 = vsel %vm2202, %v2138, %v2266
        %v2331 = vsel %vm2203, %v2139, %v2267
        %v2332 = vsel %vm2204, %v2140, %v2268
        %v2333 = vsel %vm2205, %v2141, %v2269
        %v2334 = vsel %vm2206, %v2142, %v2270
        %v2335 = vsel %vm2207, %v2143, %v2271
        %v2336 = vsel %vm2208, %v2144, %v2272
        %v2337 = vsel %vm2209, %v2145, %v2273
        %v2338 = vsel %vm2210, %v2146, %v2274
        %v2339 = vsel %vm2211, %v2147, %v2275
        %v2340 = vsel %vm2212, %v2148, %v2276
        %v2341 = vsel %vm2213, %v2149, %v2277
        %v2342 = vsel %vm2214, %v2150, %v2278
        %v2343 = vsel %vm2215, %v2151, %v2279
        %v2344 = vsel %vm2216, %v2152, %v2280
        %v2345 = vsel %vm2217, %v2153, %v2281
        %v2346 = vsel %vm2218, %v2154, %v2282
        %v2347 = vsel %vm2219, %v2155, %v2283
        %v2348 = vsel %vm2220, %v2156, %v2284
        %v2349 = vsel %vm2221, %v2157, %v2285
        %v2350 = vsel %vm2222, %v2158, %v2286
        %v2351 = vsel %vm2223, %v2159, %v2287
        %v2352 = vsel %vm2224, %v2160, %v2288
        %v2353 = vsel %vm2225, %v2161, %v2289
        %v2354 = vsel %vm2226, %v2162, %v2290
        %v2355 = vsel %vm2227, %v2163, %v2291
        %v2356 = vsel %vm2228, %v2164, %v2292
        %v2357 = vsel %vm2229, %v2165, %v2293
        %v2358 = vsel %vm2230, %v2166, %v2294
        %v2359 = vsel %vm2231, %v2167, %v2295
        %v2360 = vsel %vm2232, %v2168, %v2296
        %v2361 = vsel %vm2233, %v2169, %v2297
        %v2362 = vsel %vm2234, %v2170, %v2298
        %v2363 = vsel %vm2235, %v2171, %v2299
        %v2364 = vsel %vm2236, %v2172, %v2300
        %v2365 = vsel %vm2237, %v2173, %v2301
        %v2366 = vsel %vm2238, %v2174, %v2302
        %v2367 = vsel %vm2239, %v2175, %v2303
        %v2368 = vsel %vm2240, %v2176, %v2304
        %v2369 = vsel %vm2241, %v2177, %v2305
        %v2370 = vsel %vm2242, %v2178, %v2306
        %v2371 = vadd.f32 %v2307, 1.0
        %v2372 = vadd.f32 %v2308, 1.0
        %v2373 = vadd.f32 %v2309, 1.0
        %v2374 = vadd.f32 %v2310, 1.0
        %v2375 = vadd.f32 %v2311, 1.0
        %v2376 = vadd.f32 %v2312, 1.0
        %v2377 = vadd.f32 %v2313, 1.0
        %v2378 = vadd.f32 %v2314, 1.0
        %v2379 = vadd.f32 %v2315, 1.0
        %v2380 = vadd.f32 %v2316, 1.0
        %v2381 = vadd.f32 %v2317, 1.0
        %v2382 = vadd.f32 %v2318, 1.0
        %v2383 = vadd.f32 %v2319, 1.0
        %v2384 = vadd.f32 %v2320, 1.0
        %v2385 = vadd.f32 %v2321, 1.0
        %v2386 = vadd.f32 %v2322, 1.0
        %v2387 = vadd.f32 %v2323, 1.0
        %v2388 = vadd.f32 %v2324, 1.0
        %v2389 = vadd.f32 %v2325, 1.0
        %v2390 = vadd.f32 %v2326, 1.0
        %v2391 = vadd.f32 %v2327, 1.0
        %v2392 = vadd.f32 %v2328, 1.0
        %v2393 = vadd.f32 %v2329, 1.0
        %v2394 = vadd.f32 %v2330, 1.0
        %v2395 = vadd.f32 %v2331, 1.0
        %v2396 = vadd.f32 %v2332, 1.0
        %v2397 = vadd.f32 %v2333, 1.0
        %v2398 = vadd.f32 %v2334, 1.0
        %v2399 = vadd.f32 %v2335, 1.0
        %v2400 = vadd.f32 %v2336, 1.0
        %v2401 = vadd.f32 %v2337, 1.0
        %v2402 = vadd.f32 %v2338, 1.0
        %v2403 = vadd.f32 %v2339, 1.0
        %v2404 = vadd.f32 %v2340, 1.0
        %v2405 = vadd.f32 %v2341, 1.0
        %v2406 = vadd.f32 %v2342, 1.0
        %v2407 = vadd.f32 %v2343, 1.0
        %v2408 = vadd.f32 %v2344, 1.0
        %v2409 = vadd.f32 %v2345, 1.0
        %v2410 = vadd.f32 %v2346, 1.0
        %v2411 = vadd.f32 %v2347, 1.0
        %v2412 = vadd.f32 %v2348, 1.0
        %v2413 = vadd.f32 %v2349, 1.0
        %v2414 = vadd.f32 %v2350, 1.0
        %v2415 = vadd.f32 %v2351, 1.0
        %v2416 = vadd.f32 %v2352, 1.0
        %v2417 = vadd.f32 %v2353, 1.0
        %v2418 = vadd.f32 %v2354, 1.0
        %v2419 = vadd.f32 %v2355, 1.0
        %v2420 = vadd.f32 %v2356, 1.0
        %v2421 = vadd.f32 %v2357, 1.0
        %v2422 = vadd.f32 %v2358, 1.0
        %v2423 = vadd.f32 %v2359, 1.0
        %v2424 = vadd.f32 %v2360, 1.0
        %v2425 = vadd.f32 %v2361, 1.0
        %v2426 = vadd.f32 %v2362, 1.0
        %v2427 = vadd.f32 %v2363, 1.0
        %v2428 = vadd.f32 %v2364, 1.0
        %v2429 = vadd.f32 %v2365, 1.0
        %v2430 = vadd.f32 %v2366, 1.0
        %v2431 = vadd.f32 %v2367, 1.0
        %v2432 = vadd.f32 %v2368, 1.0
        %v2433 = vadd.f32 %v2369, 1.0
        %v2434 = vadd.f32 %v2370, 1.0
        %v2435 = vmul.f32 %v835, %v2371
        %v2436 = vmul.f32 %v836, %v2372
        %v2437 = vmul.f32 %v837, %v2373
        %v2438 = vmul.f32 %v838, %v2374
        %v2439 = vmul.f32 %v839, %v2375
        %v2440 = vmul.f32 %v840, %v2376
        %v2441 = vmul.f32 %v841, %v2377
        %v2442 = vmul.f32 %v842, %v2378
        %v2443 = vmul.f32 %v843, %v2379
        %v2444 = vmul.f32 %v844, %v2380
        %v2445 = vmul.f32 %v845, %v2381
        %v2446 = vmul.f32 %v846, %v2382
        %v2447 = vmul.f32 %v847, %v2383
        %v2448 = vmul.f32 %v848, %v2384
        %v2449 = vmul.f32 %v849, %v2385
        %v2450 = vmul.f32 %v850, %v2386
        %v2451 = vmul.f32 %v851, %v2387
        %v2452 = vmul.f32 %v852, %v2388
        %v2453 = vmul.f32 %v853, %v2389
        %v2454 = vmul.f32 %v854, %v2390
        %v2455 = vmul.f32 %v855, %v2391
        %v2456 = vmul.f32 %v856, %v2392
        %v2457 = vmul.f32 %v857, %v2393
        %v2458 = vmul.f32 %v858, %v2394
        %v2459 = vmul.f32 %v859, %v2395
        %v2460 = vmul.f32 %v860, %v2396
        %v2461 = vmul.f32 %v861, %v2397
        %v2462 = vmul.f32 %v862, %v2398
        %v2463 = vmul.f32 %v863, %v2399
        %v2464 = vmul.f32 %v864, %v2400
        %v2465 = vmul.f32 %v865, %v2401
        %v2466 = vmul.f32 %v866, %v2402
        %v2467 = vmul.f32 %v867, %v2403
        %v2468 = vmul.f32 %v868, %v2404
        %v2469 = vmul.f32 %v869, %v2405
        %v2470 = vmul.f32 %v870, %v2406
        %v2471 = vmul.f32 %v871, %v2407
        %v2472 = vmul.f32 %v872, %v2408
        %v2473 = vmul.f32 %v873, %v2409
        %v2474 = vmul.f32 %v874, %v2410
        %v2475 = vmul.f32 %v875, %v2411
        %v2476 = vmul.f32 %v876, %v2412
        %v2477 = vmul.f32 %v877, %v2413
        %v2478 = vmul.f32 %v878, %v2414
        %v2479 = vmul.f32 %v879, %v2415
        %v2480 = vmul.f32 %v880, %v2416
        %v2481 = vmul.f32 %v881, %v2417
        %v2482 = vmul.f32 %v882, %v2418
        %v2483 = vmul.f32 %v883, %v2419
        %v2484 = vmul.f32 %v884, %v2420
        %v2485 = vmul.f32 %v885, %v2421
        %v2486 = vmul.f32 %v886, %v2422
        %v2487 = vmul.f32 %v887, %v2423
        %v2488 = vmul.f32 %v888, %v2424
        %v2489 = vmul.f32 %v889, %v2425
        %v2490 = vmul.f32 %v890, %v2426
        %v2491 = vmul.f32 %v891, %v2427
        %v2492 = vmul.f32 %v892, %v2428
        %v2493 = vmul.f32 %v893, %v2429
        %v2494 = vmul.f32 %v894, %v2430
        %v2495 = vmul.f32 %v895, %v2431
        %v2496 = vmul.f32 %v896, %v2432
        %v2497 = vmul.f32 %v897, %v2433
        %v2498 = vmul.f32 %v898, %v2434
        %v2499 = vld [vmem:[#allocation2] sm:$0xff]
        %v2500 = vld [vmem:[#allocation2 + $0x8] sm:$0xff]
        %v2501 = vld [vmem:[#allocation2 + $0x10] sm:$0xff]
        %v2502 = vld [vmem:[#allocation2 + $0x18] sm:$0xff]
        %v2503 = vld [vmem:[#allocation2 + $0x20] sm:$0xff]
        %v2504 = vld [vmem:[#allocation2 + $0x28] sm:$0xff]
        %v2505 = vld [vmem:[#allocation2 + $0x30] sm:$0xff]
        %v2506 = vld [vmem:[#allocation2 + $0x38] sm:$0xff]
        %v2507 = vld [vmem:[#allocation2 + $0x40] sm:$0xff]
        %v2508 = vld [vmem:[#allocation2 + $0x48] sm:$0xff]
        %v2509 = vld [vmem:[#allocation2 + $0x50] sm:$0xff]
        %v2510 = vld [vmem:[#allocation2 + $0x58] sm:$0xff]
        %v2511 = vld [vmem:[#allocation2 + $0x60] sm:$0xff]
        %v2512 = vld [vmem:[#allocation2 + $0x68] sm:$0xff]
        %v2513 = vld [vmem:[#allocation2 + $0x70] sm:$0xff]
        %v2514 = vld [vmem:[#allocation2 + $0x78] sm:$0xff]
        %v2515 = vld [vmem:[#allocation2 + $0x80] sm:$0xff]
        %v2516 = vld [vmem:[#allocation2 + $0x88] sm:$0xff]
        %v2517 = vld [vmem:[#allocation2 + $0x90] sm:$0xff]
        %v2518 = vld [vmem:[#allocation2 + $0x98] sm:$0xff]
        %v2519 = vld [vmem:[#allocation2 + $0xa0] sm:$0xff]
        %v2520 = vld [vmem:[#allocation2 + $0xa8] sm:$0xff]
        %v2521 = vld [vmem:[#allocation2 + $0xb0] sm:$0xff]
        %v2522 = vld [vmem:[#allocation2 + $0xb8] sm:$0xff]
        %v2523 = vld [vmem:[#allocation2 + $0xc0] sm:$0xff]
        %v2524 = vld [vmem:[#allocation2 + $0xc8] sm:$0xff]
        %v2525 = vld [vmem:[#allocation2 + $0xd0] sm:$0xff]
        %v2526 = vld [vmem:[#allocation2 + $0xd8] sm:$0xff]
        %v2527 = vld [vmem:[#allocation2 + $0xe0] sm:$0xff]
        %v2528 = vld [vmem:[#allocation2 + $0xe8] sm:$0xff]
        %v2529 = vld [vmem:[#allocation2 + $0xf0] sm:$0xff]
        %v2530 = vld [vmem:[#allocation2 + $0xf8] sm:$0xff]
        %v2531 = vpack.c.bf16 %v2437, %v2435
        %v2532 = vpack.c.bf16 %v2438, %v2436
        %v2533 = vpack.c.bf16 %v2441, %v2439
        %v2534 = vpack.c.bf16 %v2442, %v2440
        %v2535 = vpack.c.bf16 %v2445, %v2443
        %v2536 = vpack.c.bf16 %v2446, %v2444
        %v2537 = vpack.c.bf16 %v2449, %v2447
        %v2538 = vpack.c.bf16 %v2450, %v2448
        %v2539 = vpack.c.bf16 %v2453, %v2451
        %v2540 = vpack.c.bf16 %v2454, %v2452
        %v2541 = vpack.c.bf16 %v2457, %v2455
        %v2542 = vpack.c.bf16 %v2458, %v2456
        %v2543 = vpack.c.bf16 %v2461, %v2459
        %v2544 = vpack.c.bf16 %v2462, %v2460
        %v2545 = vpack.c.bf16 %v2465, %v2463
        %v2546 = vpack.c.bf16 %v2466, %v2464
        %v2547 = vpack.c.bf16 %v2469, %v2467
        %v2548 = vpack.c.bf16 %v2470, %v2468
        %v2549 = vpack.c.bf16 %v2473, %v2471
        %v2550 = vpack.c.bf16 %v2474, %v2472
        %v2551 = vpack.c.bf16 %v2477, %v2475
        %v2552 = vpack.c.bf16 %v2478, %v2476
        %v2553 = vpack.c.bf16 %v2481, %v2479
        %v2554 = vpack.c.bf16 %v2482, %v2480
        %v2555 = vpack.c.bf16 %v2485, %v2483
        %v2556 = vpack.c.bf16 %v2486, %v2484
        %v2557 = vpack.c.bf16 %v2489, %v2487
        %v2558 = vpack.c.bf16 %v2490, %v2488
        %v2559 = vpack.c.bf16 %v2493, %v2491
        %v2560 = vpack.c.bf16 %v2494, %v2492
        %v2561 = vpack.c.bf16 %v2497, %v2495
        %v2562 = vpack.c.bf16 %v2498, %v2496
        %v2563 = vld [vmem:[%s311] sm:$0xf]
        %v2564 = vld [vmem:[%s311 + $0x4] sm:$0xf]
        %v2565 = vld [vmem:[%s311 + $0x8] sm:$0xf]
        %v2566 = vld [vmem:[%s311 + $0xc] sm:$0xf]
        %v2567 = vld [vmem:[%s311 + $0x10] sm:$0xf]
        %v2568 = vld [vmem:[%s311 + $0x14] sm:$0xf]
        %v2569 = vld [vmem:[%s311 + $0x18] sm:$0xf]
        %v2570 = vld [vmem:[%s311 + $0x1c] sm:$0xf]
        %v2571 = vld [vmem:[%s311 + $0x20] sm:$0xf]
        %v2572 = vld [vmem:[%s311 + $0x24] sm:$0xf]
        %v2573 = vld [vmem:[%s311 + $0x28] sm:$0xf]
        %v2574 = vld [vmem:[%s311 + $0x2c] sm:$0xf]
        %v2575 = vld [vmem:[%s311 + $0x30] sm:$0xf]
        %v2576 = vld [vmem:[%s311 + $0x34] sm:$0xf]
        %v2577 = vld [vmem:[%s311 + $0x38] sm:$0xf]
        %v2578 = vld [vmem:[%s311 + $0x3c] sm:$0xf]
        %v2579 = vld [vmem:[%s311 + $0x40] sm:$0xf]
        %v2580 = vld [vmem:[%s311 + $0x44] sm:$0xf]
        %v2581 = vld [vmem:[%s311 + $0x48] sm:$0xf]
        %v2582 = vld [vmem:[%s311 + $0x4c] sm:$0xf]
        %v2583 = vld [vmem:[%s311 + $0x50] sm:$0xf]
        %v2584 = vld [vmem:[%s311 + $0x54] sm:$0xf]
        %v2585 = vld [vmem:[%s311 + $0x58] sm:$0xf]
        %v2586 = vld [vmem:[%s311 + $0x5c] sm:$0xf]
        %v2587 = vld [vmem:[%s311 + $0x60] sm:$0xf]
        %v2588 = vld [vmem:[%s311 + $0x64] sm:$0xf]
        %v2589 = vld [vmem:[%s311 + $0x68] sm:$0xf]
        %v2590 = vld [vmem:[%s311 + $0x6c] sm:$0xf]
        %v2591 = vld [vmem:[%s311 + $0x70] sm:$0xf]
        %v2592 = vld [vmem:[%s311 + $0x74] sm:$0xf]
        %v2593 = vld [vmem:[%s311 + $0x78] sm:$0xf]
        %v2594 = vld [vmem:[%s311 + $0x7c] sm:$0xf]
        %v2627 = vunpack.c.l.b16 %v2563
        %v2628 = vunpack.c.l.b16 %v2564
        %v2629 = vunpack.c.l.b16 %v2565
        %v2630 = vunpack.c.l.b16 %v2566
        %v2631 = vunpack.c.l.b16 %v2567
        %v2632 = vunpack.c.l.b16 %v2568
        %v2633 = vunpack.c.l.b16 %v2569
        %v2634 = vunpack.c.l.b16 %v2570
        %v2635 = vunpack.c.l.b16 %v2571
        %v2636 = vunpack.c.l.b16 %v2572
        %v2637 = vunpack.c.l.b16 %v2573
        %v2638 = vunpack.c.l.b16 %v2574
        %v2639 = vunpack.c.l.b16 %v2575
        %v2640 = vunpack.c.l.b16 %v2576
        %v2641 = vunpack.c.l.b16 %v2577
        %v2642 = vunpack.c.l.b16 %v2578
        %v2643 = vunpack.c.l.b16 %v2579
        %v2644 = vunpack.c.l.b16 %v2580
        %v2645 = vunpack.c.l.b16 %v2581
        %v2646 = vunpack.c.l.b16 %v2582
        %v2647 = vunpack.c.l.b16 %v2583
        %v2648 = vunpack.c.l.b16 %v2584
        %v2649 = vunpack.c.l.b16 %v2585
        %v2650 = vunpack.c.l.b16 %v2586
        %v2651 = vunpack.c.l.b16 %v2587
        %v2652 = vunpack.c.l.b16 %v2588
        %v2653 = vunpack.c.l.b16 %v2589
        %v2654 = vunpack.c.l.b16 %v2590
        %v2655 = vunpack.c.l.b16 %v2591
        %v2656 = vunpack.c.l.b16 %v2592
        %v2657 = vunpack.c.l.b16 %v2593
        %v2658 = vunpack.c.l.b16 %v2594
        %v2659 = vpack.c.b16 %v2628, %v2627
        %v2660 = vpack.c.b16 %v2630, %v2629
        %v2661 = vpack.c.b16 %v2632, %v2631
        %v2662 = vpack.c.b16 %v2634, %v2633
        %v2663 = vpack.c.b16 %v2636, %v2635
        %v2664 = vpack.c.b16 %v2638, %v2637
        %v2665 = vpack.c.b16 %v2640, %v2639
        %v2666 = vpack.c.b16 %v2642, %v2641
        %v2667 = vpack.c.b16 %v2644, %v2643
        %v2668 = vpack.c.b16 %v2646, %v2645
        %v2669 = vpack.c.b16 %v2648, %v2647
        %v2670 = vpack.c.b16 %v2650, %v2649
        %v2671 = vpack.c.b16 %v2652, %v2651
        %v2672 = vpack.c.b16 %v2654, %v2653
        %v2673 = vpack.c.b16 %v2656, %v2655
        %v2674 = vpack.c.b16 %v2658, %v2657
        %2691 = vmatprep.subr.bf16.mxu0 0
        %2692 = vmatpush1.bf16.msra.mxu0 %v2659
        %2693 = vmatprep.subr.bf16.mxu0 0
        %2694 = vmatpush1.bf16.msra.mxu0 %v2660
        %2695 = vmatprep.subr.bf16.mxu0 0
        %2696 = vmatpush1.bf16.msra.mxu0 %v2661
        %2697 = vmatprep.subr.bf16.mxu0 0
        %2698 = vmatpush1.bf16.msra.mxu0 %v2662
        %2699 = vmatprep.subr.bf16.mxu0 0
        %2700 = vmatpush1.bf16.msra.mxu0 %v2663
        %2701 = vmatprep.subr.bf16.mxu0 0
        %2702 = vmatpush1.bf16.msra.mxu0 %v2664
        %2703 = vmatprep.subr.bf16.mxu0 0
        %2704 = vmatpush1.bf16.msra.mxu0 %v2665
        %2705 = vmatprep.subr.bf16.mxu0 0
        %2706 = vmatpush1.bf16.msra.mxu0 %v2666
        %2707 = vmatprep.subr.bf16.mxu0 0
        %2708 = vmatpush1.bf16.msra.mxu0 %v2667
        %2709 = vmatprep.subr.bf16.mxu0 0
        %2710 = vmatpush1.bf16.msra.mxu0 %v2668
        %2711 = vmatprep.subr.bf16.mxu0 0
        %2712 = vmatpush1.bf16.msra.mxu0 %v2669
        %2713 = vmatprep.subr.bf16.mxu0 0
        %2714 = vmatpush1.bf16.msra.mxu0 %v2670
        %2715 = vmatprep.subr.bf16.mxu0 0
        %2716 = vmatpush1.bf16.msra.mxu0 %v2671
        %2717 = vmatprep.subr.bf16.mxu0 0
        %2718 = vmatpush1.bf16.msra.mxu0 %v2672
        %2719 = vmatprep.subr.bf16.mxu0 0
        %2720 = vmatpush1.bf16.msra.mxu0 %v2673
        %2721 = vmatprep.subr.bf16.mxu0 0
        %2722 = vmatpush1.bf16.msra.mxu0 %v2674
        %2723 = vmatprep.mubr.bf16.mxu0 %v2532
        %2724 = vmatmul.mubr.bf16.gmra.mrb[0].mxu0 %v2531
        %v2725 = vpop.f32.mrb[0].mxu0
        %v2726 = vadd.f32 0.0, %v2725
        %v2727 = vpop.f32.mrb[0].mxu0
        %v2728 = vpop.f32.mrb[0].mxu0
        %v2729 = vadd.f32 0.0, %v2728
        %v2730 = vpop.f32.mrb[0].mxu0
        %2731 = vmatprep.mubr.bf16.mxu0 %v2534
        %2732 = vmatmul.mubr.bf16.gmra.mrb[0].mxu0 %v2533
        %v2733 = vpop.f32.mrb[0].mxu0
        %v2734 = vadd.f32 0.0, %v2733
        %v2735 = vpop.f32.mrb[0].mxu0
        %v2736 = vpop.f32.mrb[0].mxu0
        %v2737 = vadd.f32 0.0, %v2736
        %v2738 = vpop.f32.mrb[0].mxu0
        %2739 = vmatprep.mubr.bf16.mxu0 %v2536
        %2740 = vmatmul.mubr.bf16.gmra.mrb[0].mxu0 %v2535
        %v2741 = vpop.f32.mrb[0].mxu0
        %v2742 = vadd.f32 0.0, %v2741
        %v2743 = vpop.f32.mrb[0].mxu0
        %v2744 = vpop.f32.mrb[0].mxu0
        %v2745 = vadd.f32 0.0, %v2744
        %v2746 = vpop.f32.mrb[0].mxu0
        %2747 = vmatprep.mubr.bf16.mxu0 %v2538
        %2748 = vmatmul.mubr.bf16.gmra.mrb[0].mxu0 %v2537
        %v2749 = vpop.f32.mrb[0].mxu0
        %v2750 = vadd.f32 0.0, %v2749
        %v2751 = vpop.f32.mrb[0].mxu0
        %v2752 = vpop.f32.mrb[0].mxu0
        %v2753 = vadd.f32 0.0, %v2752
        %v2754 = vpop.f32.mrb[0].mxu0
        %2755 = vmatprep.mubr.bf16.mxu0 %v2540
        %2756 = vmatmul.mubr.bf16.gmra.mrb[0].mxu0 %v2539
        %v2757 = vpop.f32.mrb[0].mxu0
        %v2758 = vadd.f32 0.0, %v2757
        %v2759 = vpop.f32.mrb[0].mxu0
        %v2760 = vpop.f32.mrb[0].mxu0
        %v2761 = vadd.f32 0.0, %v2760
        %v2762 = vpop.f32.mrb[0].mxu0
        %2763 = vmatprep.mubr.bf16.mxu0 %v2542
        %2764 = vmatmul.mubr.bf16.gmra.mrb[0].mxu0 %v2541
        %v2765 = vpop.f32.mrb[0].mxu0
        %v2766 = vadd.f32 0.0, %v2765
        %v2767 = vpop.f32.mrb[0].mxu0
        %v2768 = vpop.f32.mrb[0].mxu0
        %v2769 = vadd.f32 0.0, %v2768
        %v2770 = vpop.f32.mrb[0].mxu0
        %2771 = vmatprep.mubr.bf16.mxu0 %v2544
        %2772 = vmatmul.mubr.bf16.gmra.mrb[0].mxu0 %v2543
        %v2773 = vpop.f32.mrb[0].mxu0
        %v2774 = vadd.f32 0.0, %v2773
        %v2775 = vpop.f32.mrb[0].mxu0
        %v2776 = vpop.f32.mrb[0].mxu0
        %v2777 = vadd.f32 0.0, %v2776
        %v2778 = vpop.f32.mrb[0].mxu0
        %2779 = vmatprep.mubr.bf16.mxu0 %v2546
        %2780 = vmatmul.mubr.bf16.gmra.mrb[0].mxu0 %v2545
        %v2781 = vpop.f32.mrb[0].mxu0
        %v2782 = vadd.f32 0.0, %v2781
        %v2783 = vpop.f32.mrb[0].mxu0
        %v2784 = vpop.f32.mrb[0].mxu0
        %v2785 = vadd.f32 0.0, %v2784
        %v2786 = vpop.f32.mrb[0].mxu0
        %2787 = vmatprep.mubr.bf16.mxu0 %v2548
        %2788 = vmatmul.mubr.bf16.gmra.mrb[0].mxu0 %v2547
        %v2789 = vpop.f32.mrb[0].mxu0
        %v2790 = vadd.f32 0.0, %v2789
        %v2791 = vpop.f32.mrb[0].mxu0
        %v2792 = vpop.f32.mrb[0].mxu0
        %v2793 = vadd.f32 0.0, %v2792
        %v2794 = vpop.f32.mrb[0].mxu0
        %2795 = vmatprep.mubr.bf16.mxu0 %v2550
        %2796 = vmatmul.mubr.bf16.gmra.mrb[0].mxu0 %v2549
        %v2797 = vpop.f32.mrb[0].mxu0
        %v2798 = vadd.f32 0.0, %v2797
        %v2799 = vpop.f32.mrb[0].mxu0
        %v2800 = vpop.f32.mrb[0].mxu0
        %v2801 = vadd.f32 0.0, %v2800
        %v2802 = vpop.f32.mrb[0].mxu0
        %2803 = vmatprep.mubr.bf16.mxu0 %v2552
        %2804 = vmatmul.mubr.bf16.gmra.mrb[0].mxu0 %v2551
        %v2805 = vpop.f32.mrb[0].mxu0
        %v2806 = vadd.f32 0.0, %v2805
        %v2807 = vpop.f32.mrb[0].mxu0
        %v2808 = vpop.f32.mrb[0].mxu0
        %v2809 = vadd.f32 0.0, %v2808
        %v2810 = vpop.f32.mrb[0].mxu0
        %2811 = vmatprep.mubr.bf16.mxu0 %v2554
        %2812 = vmatmul.mubr.bf16.gmra.mrb[0].mxu0 %v2553
        %v2813 = vpop.f32.mrb[0].mxu0
        %v2814 = vadd.f32 0.0, %v2813
        %v2815 = vpop.f32.mrb[0].mxu0
        %v2816 = vpop.f32.mrb[0].mxu0
        %v2817 = vadd.f32 0.0, %v2816
        %v2818 = vpop.f32.mrb[0].mxu0
        %2819 = vmatprep.mubr.bf16.mxu0 %v2556
        %2820 = vmatmul.mubr.bf16.gmra.mrb[0].mxu0 %v2555
        %v2821 = vpop.f32.mrb[0].mxu0
        %v2822 = vadd.f32 0.0, %v2821
        %v2823 = vpop.f32.mrb[0].mxu0
        %v2824 = vpop.f32.mrb[0].mxu0
        %v2825 = vadd.f32 0.0, %v2824
        %v2826 = vpop.f32.mrb[0].mxu0
        %2827 = vmatprep.mubr.bf16.mxu0 %v2558
        %2828 = vmatmul.mubr.bf16.gmra.mrb[0].mxu0 %v2557
        %v2829 = vpop.f32.mrb[0].mxu0
        %v2830 = vadd.f32 0.0, %v2829
        %v2831 = vpop.f32.mrb[0].mxu0
        %v2832 = vpop.f32.mrb[0].mxu0
        %v2833 = vadd.f32 0.0, %v2832
        %v2834 = vpop.f32.mrb[0].mxu0
        %2835 = vmatprep.mubr.bf16.mxu0 %v2560
        %2836 = vmatmul.mubr.bf16.gmra.mrb[0].mxu0 %v2559
        %v2837 = vpop.f32.mrb[0].mxu0
        %v2838 = vadd.f32 0.0, %v2837
        %v2839 = vpop.f32.mrb[0].mxu0
        %v2840 = vpop.f32.mrb[0].mxu0
        %v2841 = vadd.f32 0.0, %v2840
        %v2842 = vpop.f32.mrb[0].mxu0
        %2843 = vmatprep.mubr.bf16.mxu0 %v2562
        %2844 = vmatmul.mubr.bf16.gmra.mrb[0].mxu0 %v2561
        %v2845 = vpop.f32.mrb[0].mxu0
        %v2846 = vadd.f32 0.0, %v2845
        %v2847 = vpop.f32.mrb[0].mxu0
        %v2848 = vpop.f32.mrb[0].mxu0
        %v2849 = vadd.f32 0.0, %v2848
        %v2850 = vpop.f32.mrb[0].mxu0
        %2851 = vdwg.mxu0
        %v2852 = vadd.f32 %v2499, %v2726
        %v2853 = vadd.f32 %v2500, %v2729
        %v2854 = vadd.f32 %v2501, %v2734
        %v2855 = vadd.f32 %v2502, %v2737
        %v2856 = vadd.f32 %v2503, %v2742
        %v2857 = vadd.f32 %v2504, %v2745
        %v2858 = vadd.f32 %v2505, %v2750
        %v2859 = vadd.f32 %v2506, %v2753
        %v2860 = vadd.f32 %v2507, %v2758
        %v2861 = vadd.f32 %v2508, %v2761
        %v2862 = vadd.f32 %v2509, %v2766
        %v2863 = vadd.f32 %v2510, %v2769
        %v2864 = vadd.f32 %v2511, %v2774
        %v2865 = vadd.f32 %v2512, %v2777
        %v2866 = vadd.f32 %v2513, %v2782
        %v2867 = vadd.f32 %v2514, %v2785
        %v2868 = vadd.f32 %v2515, %v2790
        %v2869 = vadd.f32 %v2516, %v2793
        %v2870 = vadd.f32 %v2517, %v2798
        %v2871 = vadd.f32 %v2518, %v2801
        %v2872 = vadd.f32 %v2519, %v2806
        %v2873 = vadd.f32 %v2520, %v2809
        %v2874 = vadd.f32 %v2521, %v2814
        %v2875 = vadd.f32 %v2522, %v2817
        %v2876 = vadd.f32 %v2523, %v2822
        %v2877 = vadd.f32 %v2524, %v2825
        %v2878 = vadd.f32 %v2525, %v2830
        %v2879 = vadd.f32 %v2526, %v2833
        %v2880 = vadd.f32 %v2527, %v2838
        %v2881 = vadd.f32 %v2528, %v2841
        %v2882 = vadd.f32 %v2529, %v2846
        %v2883 = vadd.f32 %v2530, %v2849
        %2884 = vst [vmem:[#allocation2] sm:$0xff] %v2852
        %2885 = vst [vmem:[#allocation2 + $0x8] sm:$0xff] %v2853
        %2886 = vst [vmem:[#allocation2 + $0x10] sm:$0xff] %v2854
        %2887 = vst [vmem:[#allocation2 + $0x18] sm:$0xff] %v2855
        %2888 = vst [vmem:[#allocation2 + $0x20] sm:$0xff] %v2856
        %2889 = vst [vmem:[#allocation2 + $0x28] sm:$0xff] %v2857
        %2890 = vst [vmem:[#allocation2 + $0x30] sm:$0xff] %v2858
        %2891 = vst [vmem:[#allocation2 + $0x38] sm:$0xff] %v2859
        %2892 = vst [vmem:[#allocation2 + $0x40] sm:$0xff] %v2860
        %2893 = vst [vmem:[#allocation2 + $0x48] sm:$0xff] %v2861
        %2894 = vst [vmem:[#allocation2 + $0x50] sm:$0xff] %v2862
        %2895 = vst [vmem:[#allocation2 + $0x58] sm:$0xff] %v2863
        %2896 = vst [vmem:[#allocation2 + $0x60] sm:$0xff] %v2864
        %2897 = vst [vmem:[#allocation2 + $0x68] sm:$0xff] %v2865
        %2898 = vst [vmem:[#allocation2 + $0x70] sm:$0xff] %v2866
        %2899 = vst [vmem:[#allocation2 + $0x78] sm:$0xff] %v2867
        %2900 = vst [vmem:[#allocation2 + $0x80] sm:$0xff] %v2868
        %2901 = vst [vmem:[#allocation2 + $0x88] sm:$0xff] %v2869
        %2902 = vst [vmem:[#allocation2 + $0x90] sm:$0xff] %v2870
        %2903 = vst [vmem:[#allocation2 + $0x98] sm:$0xff] %v2871
        %2904 = vst [vmem:[#allocation2 + $0xa0] sm:$0xff] %v2872
        %2905 = vst [vmem:[#allocation2 + $0xa8] sm:$0xff] %v2873
        %2906 = vst [vmem:[#allocation2 + $0xb0] sm:$0xff] %v2874
        %2907 = vst [vmem:[#allocation2 + $0xb8] sm:$0xff] %v2875
        %2908 = vst [vmem:[#allocation2 + $0xc0] sm:$0xff] %v2876
        %2909 = vst [vmem:[#allocation2 + $0xc8] sm:$0xff] %v2877
        %2910 = vst [vmem:[#allocation2 + $0xd0] sm:$0xff] %v2878
        %2911 = vst [vmem:[#allocation2 + $0xd8] sm:$0xff] %v2879
        %2912 = vst [vmem:[#allocation2 + $0xe0] sm:$0xff] %v2880
        %2913 = vst [vmem:[#allocation2 + $0xe8] sm:$0xff] %v2881
        %2914 = vst [vmem:[#allocation2 + $0xf0] sm:$0xff] %v2882
        %2915 = vst [vmem:[#allocation2 + $0xf8] sm:$0xff] %v2883
        %p2916 = scmp.eq.s32.totalorder %s30, 1
        // Predicated region
        $region57: #{tpu_custom_call.1} parent=39 // pred_check
          %p2917 = pneg %p2916
        $region58: #{tpu_custom_call.1} parent=39 // pred_check_branch
          %2919 = sbr.rel (%p2917) target = $region60
        $region59: #{tpu_custom_call.1} parent=39 // pred_region
          %v2920 = vld [vmem:[#allocation2] sm:$0xff]
          %v2921 = vld [vmem:[#allocation2 + $0x8] sm:$0xff]
          %v2922 = vld [vmem:[#allocation2 + $0x10] sm:$0xff]
          %v2923 = vld [vmem:[#allocation2 + $0x18] sm:$0xff]
          %v2924 = vld [vmem:[#allocation2 + $0x20] sm:$0xff]
          %v2925 = vld [vmem:[#allocation2 + $0x28] sm:$0xff]
          %v2926 = vld [vmem:[#allocation2 + $0x30] sm:$0xff]
          %v2927 = vld [vmem:[#allocation2 + $0x38] sm:$0xff]
          %v2928 = vld [vmem:[#allocation2 + $0x40] sm:$0xff]
          %v2929 = vld [vmem:[#allocation2 + $0x48] sm:$0xff]
          %v2930 = vld [vmem:[#allocation2 + $0x50] sm:$0xff]
          %v2931 = vld [vmem:[#allocation2 + $0x58] sm:$0xff]
          %v2932 = vld [vmem:[#allocation2 + $0x60] sm:$0xff]
          %v2933 = vld [vmem:[#allocation2 + $0x68] sm:$0xff]
          %v2934 = vld [vmem:[#allocation2 + $0x70] sm:$0xff]
          %v2935 = vld [vmem:[#allocation2 + $0x78] sm:$0xff]
          %v2936 = vld [vmem:[#allocation2 + $0x80] sm:$0xff]
          %v2937 = vld [vmem:[#allocation2 + $0x88] sm:$0xff]
          %v2938 = vld [vmem:[#allocation2 + $0x90] sm:$0xff]
          %v2939 = vld [vmem:[#allocation2 + $0x98] sm:$0xff]
          %v2940 = vld [vmem:[#allocation2 + $0xa0] sm:$0xff]
          %v2941 = vld [vmem:[#allocation2 + $0xa8] sm:$0xff]
          %v2942 = vld [vmem:[#allocation2 + $0xb0] sm:$0xff]
          %v2943 = vld [vmem:[#allocation2 + $0xb8] sm:$0xff]
          %v2944 = vld [vmem:[#allocation2 + $0xc0] sm:$0xff]
          %v2945 = vld [vmem:[#allocation2 + $0xc8] sm:$0xff]
          %v2946 = vld [vmem:[#allocation2 + $0xd0] sm:$0xff]
          %v2947 = vld [vmem:[#allocation2 + $0xd8] sm:$0xff]
          %v2948 = vld [vmem:[#allocation2 + $0xe0] sm:$0xff]
          %v2949 = vld [vmem:[#allocation2 + $0xe8] sm:$0xff]
          %v2950 = vld [vmem:[#allocation2 + $0xf0] sm:$0xff]
          %v2951 = vld [vmem:[#allocation2 + $0xf8] sm:$0xff]
          %v2952 = vld [vmem:[%s4] sm:$0x1]
          %v2954 = vlaneseq
          %v2955 = vshrl.u32 %v2954, 7
          %v2956 = vsub.s32 0, %v2955
          %v2957 = vrot.slane %v2952, %v2956
          %v2959 = vadd.f32 %v2920, %v2957
          %v2960 = vadd.f32 %v2921, %v2957
          %v2961 = vadd.f32 %v2922, %v2957
          %v2962 = vadd.f32 %v2923, %v2957
          %v2963 = vadd.f32 %v2924, %v2957
          %v2964 = vadd.f32 %v2925, %v2957
          %v2965 = vadd.f32 %v2926, %v2957
          %v2966 = vadd.f32 %v2927, %v2957
          %v2967 = vadd.f32 %v2928, %v2957
          %v2968 = vadd.f32 %v2929, %v2957
          %v2969 = vadd.f32 %v2930, %v2957
          %v2970 = vadd.f32 %v2931, %v2957
          %v2971 = vadd.f32 %v2932, %v2957
          %v2972 = vadd.f32 %v2933, %v2957
          %v2973 = vadd.f32 %v2934, %v2957
          %v2974 = vadd.f32 %v2935, %v2957
          %v2975 = vadd.f32 %v2936, %v2957
          %v2976 = vadd.f32 %v2937, %v2957
          %v2977 = vadd.f32 %v2938, %v2957
          %v2978 = vadd.f32 %v2939, %v2957
          %v2979 = vadd.f32 %v2940, %v2957
          %v2980 = vadd.f32 %v2941, %v2957
          %v2981 = vadd.f32 %v2942, %v2957
          %v2982 = vadd.f32 %v2943, %v2957
          %v2983 = vadd.f32 %v2944, %v2957
          %v2984 = vadd.f32 %v2945, %v2957
          %v2985 = vadd.f32 %v2946, %v2957
          %v2986 = vadd.f32 %v2947, %v2957
          %v2987 = vadd.f32 %v2948, %v2957
          %v2988 = vadd.f32 %v2949, %v2957
          %v2989 = vadd.f32 %v2950, %v2957
          %v2990 = vadd.f32 %v2951, %v2957
          %2991 = vst [vmem:[%s351] sm:$0xff] %v2959
          %2992 = vst [vmem:[%s351 + $0x8] sm:$0xff] %v2960
          %2993 = vst [vmem:[%s351 + $0x10] sm:$0xff] %v2961
          %2994 = vst [vmem:[%s351 + $0x18] sm:$0xff] %v2962
          %2995 = vst [vmem:[%s351 + $0x20] sm:$0xff] %v2963
          %2996 = vst [vmem:[%s351 + $0x28] sm:$0xff] %v2964
          %2997 = vst [vmem:[%s351 + $0x30] sm:$0xff] %v2965
          %2998 = vst [vmem:[%s351 + $0x38] sm:$0xff] %v2966
          %2999 = vst [vmem:[%s351 + $0x40] sm:$0xff] %v2967
          %3000 = vst [vmem:[%s351 + $0x48] sm:$0xff] %v2968
          %3001 = vst [vmem:[%s351 + $0x50] sm:$0xff] %v2969
          %3002 = vst [vmem:[%s351 + $0x58] sm:$0xff] %v2970
          %3003 = vst [vmem:[%s351 + $0x60] sm:$0xff] %v2971
          %3004 = vst [vmem:[%s351 + $0x68] sm:$0xff] %v2972
          %3005 = vst [vmem:[%s351 + $0x70] sm:$0xff] %v2973
          %3006 = vst [vmem:[%s351 + $0x78] sm:$0xff] %v2974
          %3007 = vst [vmem:[%s351 + $0x80] sm:$0xff] %v2975
          %3008 = vst [vmem:[%s351 + $0x88] sm:$0xff] %v2976
          %3009 = vst [vmem:[%s351 + $0x90] sm:$0xff] %v2977
          %3010 = vst [vmem:[%s351 + $0x98] sm:$0xff] %v2978
          %3011 = vst [vmem:[%s351 + $0xa0] sm:$0xff] %v2979
          %3012 = vst [vmem:[%s351 + $0xa8] sm:$0xff] %v2980
          %3013 = vst [vmem:[%s351 + $0xb0] sm:$0xff] %v2981
          %3014 = vst [vmem:[%s351 + $0xb8] sm:$0xff] %v2982
          %3015 = vst [vmem:[%s351 + $0xc0] sm:$0xff] %v2983
          %3016 = vst [vmem:[%s351 + $0xc8] sm:$0xff] %v2984
          %3017 = vst [vmem:[%s351 + $0xd0] sm:$0xff] %v2985
          %3018 = vst [vmem:[%s351 + $0xd8] sm:$0xff] %v2986
          %3019 = vst [vmem:[%s351 + $0xe0] sm:$0xff] %v2987
          %3020 = vst [vmem:[%s351 + $0xe8] sm:$0xff] %v2988
          %3021 = vst [vmem:[%s351 + $0xf0] sm:$0xff] %v2989
          %3022 = vst [vmem:[%s351 + $0xf8] sm:$0xff] %v2990
        $region60: #{tpu_custom_call.1} parent=39 // pred_fallthru
          _
        %s3023 = sand.u32 %s170, 1
        %s3024 = scalar_lea.sflag [#allocation5], %s3023
        %s3025 = sand.u32 %s170, 1
        %s3026 = smul.addr %s3025, 256
        %s3027 = scalar_lea.vmem [#allocation9], %s3026
        // Predicated region
        $region61: #{tpu_custom_call.1} parent=39 // pred_check
          %p3028 = pneg %p180
        $region62: #{tpu_custom_call.1} parent=39 // pred_check_branch
          %3030 = sbr.rel (%p3028) target = $region64
        $region63: #{tpu_custom_call.1} parent=39 // pred_region
          %s3031 = smul.u32 32, %s29
          %s3032 = ssub.s32 48, %s3031
          %p3033 = scmp.lt.s32.totalorder %s3032, 32
          %s3034 = scalar_select %p3033, %s3032, 32
          %s3035 = smul.u32 128, %s3034
          %s3037 = ssub.s32 4096, %s3035
          %3038 = vsyncadd %s3024, %s3037
          %p3039 = scmp.ne.s32.totalorder 0, %s3035
          %s3040 = smul.addr %s3031, 128
          %s3041 = scalar_lea.hbm %s5, %s3040
          %s3042 = smul.u32 8, %s3034
          %s3043 = sshll.u32 %s3027, 4
          %s3044 = int_to_ptr.vmem [resolvable:$true] %s3043
          %s3045 = sshll.u32 %s3042, 4
          %3049 = dma.vmem_to_hbm [thread:$0]  (%p3039), %s3044, %s3045, %s3041, %s3024, 128, 128, 8
        $region64: #{tpu_custom_call.1} parent=39 // pred_fallthru
          _
      $region40: #{tpu_custom_call.1} parent=5 // pred_fallthru
        _
      %p3050 = scmp.le.s32.totalorder 2, %s20
      // Predicated region
      $region65: #{tpu_custom_call.1} parent=5 // pred_check
        %p3051 = pneg %p3050
      $region66: #{tpu_custom_call.1} parent=5 // pred_check_branch
        %3053 = sbr.rel (%p3051) target = $region68
      $region67: #{tpu_custom_call.1} parent=5 // pred_region
        %s3054 = ssub.s32 %s20, 2
        // Predicated region
        $region69: #{tpu_custom_call.1} parent=67 // pred_check
          %p3055 = pneg %p186
        $region70: #{tpu_custom_call.1} parent=67 // pred_check_branch
          %3057 = sbr.rel (%p3055) target = $region72
        $region71: #{tpu_custom_call.1} parent=67 // pred_region
          %s3058 = sand.u32 %s171, 1
          %s3059 = scalar_lea.sflag [#allocation5], %s3058
          %s3060 = sand.u32 %s171, 1
          %s3061 = smul.addr %s3060, 256
          %s3062 = scalar_lea.vmem [#allocation9], %s3061
          %3063 = dma.done %s3059, 4096
        $region72: #{tpu_custom_call.1} parent=67 // pred_fallthru
          _
      $region68: #{tpu_custom_call.1} parent=5 // pred_fallthru
        _
    $region6: #{tpu_custom_call.1} parent=1 // loop_footer
      %s24 = sadd.s32 1, %s20
    $region7: #{tpu_custom_call.1} parent=1 // loop_footer_branch
      %19 = sbr.rel target = $region3
    $region8: #{tpu_custom_call.1} parent=1 // loop_exit
      _
    %3064 = vsyncpa [#allocation4], 1
    %s3065 = scalar_lea.sflag [#allocation4], 1
    %3066 = vsyncpa %s3065, 1
    %3067 = vsyncpa [#allocation7], 1
    %s3068 = scalar_lea.sflag [#allocation7], 1
    %3069 = vsyncpa %s3068, 1
    %3070 = vsyncpa [#allocation5], 1
    %s3071 = scalar_lea.sflag [#allocation5], 1
    %3072 = vsyncpa %s3071, 1

</llo_original>
